<compile_context>
chip_gen: v7x
topology: tpu7x:2x2x1
jax: 0.10.0
libtpu: 0.0.40
codegen_flags: <defaults>
</compile_context>

<pallas_src>
import math
import functools

import jax
import jax.numpy as jnp
import numpy as np
from jax.experimental import pallas as pl
from jax.experimental.pallas import tpu as pltpu

# ---------------- synthetic cfg (small, deterministic) ----------------
FPN_CHANNELS = 32
NUM_CLASSES = 4
ANCHOR_RATIO = (0.5, 1.0, 2.0)
ANCHOR_SCALE = (1.0, 1.26, 1.587)
NUM_ANCHORS = len(ANCHOR_RATIO) * len(ANCHOR_SCALE)       # 9
CLASS_PRIOR_PROB = 0.01
CLS_OUT = NUM_CLASSES * NUM_ANCHORS                       # 36
REG_OUT = NUM_ANCHORS * 4                                 # 36
OUT_ROWS = 8 * pl.cdiv(max(CLS_OUT, REG_OUT), 8)          # 40: sublane-aligned Cout pad
MATMUL_DTYPE = jnp.bfloat16                               # MXU operand dtype


# ---------------- Pallas kernel: one head (5 convs) per grid step ----------------
def _retina_head_kernel(x_ref, wh_ref, bh_ref, wo_ref, bo_ref, o_ref,
                        patch_ref, *, H, W):
    # x_ref:     (1, C, H*W)         one image, channels on sublanes, HW on lanes
    # wh_ref:    (1, 4, C, 9C)       hidden conv weights for THIS head (bf16)
    # bh_ref:    (1, 4, C, 1)        hidden conv biases (f32)
    # wo_ref:    (1, OUT_ROWS, 9C)   output conv weights, Cout zero-padded to 40 (bf16)
    # bo_ref:    (1, OUT_ROWS, 1)    output conv bias (f32)
    # o_ref:     (1, 1, OUT_ROWS, H*W)
    # patch_ref: VMEM scratch (9C, H*W) bf16 — im2col staging for the MXU
    C = x_ref.shape[1]
    HW = H * W
    f32 = jnp.float32

    # Column-boundary masks, pre-broadcast once per invocation.  The row
    # boundary is handled by the zero lane-padding around the flattened map.
    col = jax.lax.broadcasted_iota(jnp.int32, (C, HW), 1) % W
    m_l = col >= 1             # valid positions for taps that read col-1
    m_r = col < (W - 1)        # valid positions for taps that read col+1
    zpad = jnp.zeros((C, W + 1), f32)

    def stage_patches(a):
        # a: (C, HW) f32 activation.  Writes the 9 shifted 3x3 taps into the
        # patch scratch with (kh, kw, cin) ordering along sublanes; every shift
        # is a static lane-offset slice of the lane-padded activation.
        ap = jnp.concatenate([zpad, a, zpad], axis=1)       # (C, HW + 2W + 2)
        for kh in range(3):
            for kw in range(3):
                s = (W + 1) + (kh - 1) * W + (kw - 1)       # static offset
                tap = ap[:, s:s + HW]
                if kw == 0:
                    tap = jnp.where(m_l, tap, 0.0)
                elif kw == 2:
                    tap = jnp.where(m_r, tap, 0.0)
                t = kh * 3 + kw
                patch_ref[t * C:(t + 1) * C, :] = tap.astype(patch_ref.dtype)

    act = x_ref[0].astype(f32)                              # (C, HW)
    for layer in range(4):                                  # conv1..conv4 (+ ReLU)
        stage_patches(act)
        res = jnp.dot(wh_ref[0, layer], patch_ref[...],
                      preferred_element_type=f32)           # (C, HW) on the MXU
        act = jnp.maximum(res + bh_ref[0, layer], 0.0)
    stage_patches(act)                                      # output conv (no ReLU)
    out = jnp.dot(wo_ref[0], patch_ref[...],
                  preferred_element_type=f32) + bo_ref[0]   # (OUT_ROWS, HW)
    o_ref[0, 0] = out.astype(o_ref.dtype)


@jax.jit
def _level_forward(f_nchw, wh, bh, wo, bo):
    """Run both heads (5 convs each) for one FPN level in one pallas_call."""
    N, C, H, W = f_nchw.shape
    HW = H * W
    K = 9 * C
    x = f_nchw.reshape(N, C, HW)             # free reshape (collapses H, W)
    kern = functools.partial(_retina_head_kernel, H=H, W=W)

    flops = 2 * N * 2 * K * HW * (4 * C + OUT_ROWS)
    bytes_accessed = (2 * N * C * HW * x.dtype.itemsize
                      + N * (wh.size * wh.dtype.itemsize
                             + bh.size * bh.dtype.itemsize
                             + wo.size * wo.dtype.itemsize
                             + bo.size * bo.dtype.itemsize)
                      + N * 2 * OUT_ROWS * HW * x.dtype.itemsize)

    out = pl.pallas_call(
        kern,
        out_shape=jax.ShapeDtypeStruct((N, 2, OUT_ROWS, HW), f_nchw.dtype),
        grid=(N, 2),                                       # (image, head)
        in_specs=[
            pl.BlockSpec((1, C, HW), lambda n, h: (n, 0, 0)),
            pl.BlockSpec((1, 4, C, K), lambda n, h: (h, 0, 0, 0)),
            pl.BlockSpec((1, 4, C, 1), lambda n, h: (h, 0, 0, 0)),
            pl.BlockSpec((1, OUT_ROWS, K), lambda n, h: (h, 0, 0)),
            pl.BlockSpec((1, OUT_ROWS, 1), lambda n, h: (h, 0, 0)),
        ],
        out_specs=pl.BlockSpec((1, 1, OUT_ROWS, HW), lambda n, h: (n, h, 0, 0)),
        scratch_shapes=[pltpu.VMEM((K, HW), MATMUL_DTYPE)],
        compiler_params=pltpu.CompilerParams(
            dimension_semantics=("parallel", "parallel")),
        cost_estimate=pl.CostEstimate(
            flops=int(flops), transcendentals=0,
            bytes_accessed=int(bytes_accessed)),
    )(x, wh, bh, wo, bo)

    # Outputs are already channels-first: just slice off the Cout pad rows.
    cls = out[:, 0, :CLS_OUT, :].reshape(N, CLS_OUT, H, W)
    reg = out[:, 1, :REG_OUT, :].reshape(N, REG_OUT, H, W)
    return cls, reg


# ---------------- parameter init (mirrors the PyTorch __init__) ----------------
def init_head(key, out_channels, out_bias_value=0.0, dtype=jnp.float32):
    keys = jax.random.split(key, 5)
    c = FPN_CHANNELS
    params = []
    for i in range(4):                                   # conv1..conv4
        w = 0.01 * jax.random.normal(keys[i], (3, 3, c, c), dtype)   # HWIO
        b = jnp.zeros((c,), dtype)
        params.append((w, b))
    w = 0.01 * jax.random.normal(keys[4], (3, 3, c, out_channels), dtype)
    b = jnp.full((out_channels,), out_bias_value, dtype)  # output conv bias
    params.append((w, b))
    return params


def pack_retina_params(cls_params, reg_params):
    """One-time packing of both heads' params into kernel layout.

    Weights become (Cout, 9*Cin) bf16 with K ordered (kh, kw, cin); biases
    become (Cout, 1) f32; the output conv's Cout (36) is zero-padded to
    OUT_ROWS (40) sublane-aligned rows.
    """
    c = FPN_CHANNELS

    def pack_head(params):
        hw = jnp.stack([w.reshape(9 * c, c).T for w, _ in params[:4]])   # (4, c, 9c)
        hb = jnp.stack([b.reshape(c, 1) for _, b in params[:4]])         # (4, c, 1)
        w5, b5 = params[4]
        cout = w5.shape[-1]
        wo = jnp.zeros((OUT_ROWS, 9 * c), jnp.float32).at[:cout].set(
            w5.reshape(9 * c, cout).T)
        bo = jnp.zeros((OUT_ROWS, 1), jnp.float32).at[:cout].set(
            b5.reshape(cout, 1))
        return hw, hb, wo, bo

    cls_p = pack_head(cls_params)
    reg_p = pack_head(reg_params)
    wh = jnp.stack([cls_p[0], reg_p[0]]).astype(MATMUL_DTYPE)   # (2, 4, 32, 288)
    bh = jnp.stack([cls_p[1], reg_p[1]]).astype(jnp.float32)    # (2, 4, 32, 1)
    wo = jnp.stack([cls_p[2], reg_p[2]]).astype(MATMUL_DTYPE)   # (2, 40, 288)
    bo = jnp.stack([cls_p[3], reg_p[3]]).astype(jnp.float32)    # (2, 40, 1)
    return wh, bh, wo, bo


def retinanet_forward(packed_params, features_nchw):
    """Head portion of retinanet.forward over a list of FPN feature levels.

    features_nchw: list of (N, FPN_CHANNELS, H, W) arrays (NCHW, like PyTorch).
    Returns (cls_preds, reg_preds): lists of NCHW logits per level.
    """
    # TODO(synk): resNet backbone, PyramidFeatures (FPN), Loss and Inference
    # are not part of the provided reference source; only the classier /
    # regressier conv heads are implemented here.
    wh, bh, wo, bo = packed_params
    cls_preds, reg_preds = [], []
    for f in features_nchw:
        cls, reg = _level_forward(f, wh, bh, wo, bo)
        cls_preds.append(cls)
        reg_preds.append(reg)
    return cls_preds, reg_preds


# ---------------- pure-JAX reference (for correctness check) ----------------
def _conv3x3_ref(x_nhwc, w, b, apply_relu):
    out = jax.lax.conv_general_dilated(
        x_nhwc, w, window_strides=(1, 1), padding="SAME",
        dimension_numbers=("NHWC", "HWIO", "NHWC"))
    out = out + b
    return jnp.maximum(out, 0.0) if apply_relu else out


def _head_ref(params, feature_nhwc):
    x = feature_nhwc
    for w, b in params[:4]:
        x = _conv3x3_ref(x, w, b, True)
    w, b = params[4]
    return _conv3x3_ref(x, w, b, False)


if __name__ == "__main__":
    key = jax.random.PRNGKey(0)
    k_cls, k_reg, k_f1, k_f2 = jax.random.split(key, 4)

    bias_value = -math.log((1.0 - CLASS_PRIOR_PROB) / CLASS_PRIOR_PROB)
    cls_params = init_head(k_cls, CLS_OUT, out_bias_value=bias_value)
    reg_params = init_head(k_reg, REG_OUT, out_bias_value=0.0)
    packed = pack_retina_params(cls_params, reg_params)   # hoisted, one-time

    # Two FPN levels (NCHW), small shapes: batch=2, channels=32, spatial 16 & 8.
    features = [
        jax.random.normal(k_f1, (2, FPN_CHANNELS, 16, 16), jnp.float32),
        jax.random.normal(k_f2, (2, FPN_CHANNELS, 8, 8), jnp.float32),
    ]

    cls_preds, reg_preds = retinanet_forward(packed, features)
    jax.block_until_ready(cls_preds)
    jax.block_until_ready(reg_preds)

    assert cls_preds[0].shape == (2, CLS_OUT, 16, 16)
    assert reg_preds[0].shape == (2, REG_OUT, 16, 16)
    assert cls_preds[1].shape == (2, CLS_OUT, 8, 8)
    assert reg_preds[1].shape == (2, REG_OUT, 8, 8)

    # Sanity-check against the pure-JAX f32 conv reference.  Tolerances account
    # for the bf16 MXU operands (f32 accumulation) used inside the kernel.
    rtol, atol = 5e-2, 2e-5
    for lvl, f in enumerate(features):
        f_nhwc = jnp.transpose(f, (0, 2, 3, 1))
        ref_cls = jnp.transpose(_head_ref(cls_params, f_nhwc), (0, 3, 1, 2))
        ref_reg = jnp.transpose(_head_ref(reg_params, f_nhwc), (0, 3, 1, 2))
        np.testing.assert_allclose(np.asarray(cls_preds[lvl]),
                                   np.asarray(ref_cls), rtol=rtol, atol=atol)
        np.testing.assert_allclose(np.asarray(reg_preds[lvl]),
                                   np.asarray(ref_reg), rtol=rtol, atol=atol)

    print("KERNEL_OK")
</pallas_src>

<mosaic_0001>
module attributes {stable_mosaic.version = 11 : i64} {
  func.func @_retina_head_kernel(%arg0: i32, %arg1: i32, %arg2: memref<1x32x256xf32, #tpu.memory_space<vmem>>, %arg3: memref<1x4x32x288xbf16, #tpu.memory_space<vmem>>, %arg4: memref<1x4x32x1xf32, #tpu.memory_space<vmem>>, %arg5: memref<1x40x288xbf16, #tpu.memory_space<vmem>>, %arg6: memref<1x40x1xf32, #tpu.memory_space<vmem>>, %arg7: memref<1x1x40x256xf32, #tpu.memory_space<vmem>>, %arg8: memref<288x256xbf16, #tpu.memory_space<vmem>>) attributes {dimension_semantics = [#tpu.dimension_semantics<parallel>, #tpu.dimension_semantics<parallel>], iteration_bounds = array<i64: 2, 2>, scalar_prefetch = 0 : i64, scratch_operands = 1 : i64, tpu.core_type = #tpu.core_type<tc>, window_params = [{transform_indices = @transform_0, window_bounds = array<i64: 1, 32, 256>}, {transform_indices = @transform_1, window_bounds = array<i64: 1, 4, 32, 288>}, {transform_indices = @transform_2, window_bounds = array<i64: 1, 4, 32, 1>}, {transform_indices = @transform_3, window_bounds = array<i64: 1, 40, 288>}, {transform_indices = @transform_4, window_bounds = array<i64: 1, 40, 1>}, {transform_indices = @transform_5, window_bounds = array<i64: 1, 1, 40, 256>}]} {
    %0 = tpu.iota {dimensions = array<i32: 1>} : vector<32x256xi32>
    %c16_i32 = arith.constant 16 : i32
    %c0_i32 = arith.constant 0 : i32
    %1 = arith.cmpi eq, %c16_i32, %c0_i32 : i32
    %c1_i32 = arith.constant 1 : i32
    %2 = arith.select %1, %c1_i32, %c16_i32 : i32
    %3 = vector.broadcast %2 : i32 to vector<32x256xi32>
    %4 = arith.remsi %0, %3 : vector<32x256xi32>
    %c0_i32_0 = arith.constant 0 : i32
    %5 = vector.broadcast %c0_i32_0 : i32 to vector<32x256xi32>
    %6 = arith.cmpi ne, %4, %5 : vector<32x256xi32>
    %c0_i32_1 = arith.constant 0 : i32
    %7 = vector.broadcast %c0_i32_1 : i32 to vector<32x256xi32>
    %8 = arith.cmpi slt, %4, %7 : vector<32x256xi32>
    %c0_i32_2 = arith.constant 0 : i32
    %9 = arith.cmpi slt, %2, %c0_i32_2 : i32
    %10 = vector.broadcast %9 : i1 to vector<32x256xi1>
    %11 = vector.broadcast %10 : vector<32x256xi1> to vector<32x256xi1>
    %12 = arith.xori %8, %11 : vector<32x256xi1>
    %13 = arith.andi %12, %6 : vector<32x256xi1>
    %14 = vector.broadcast %2 : i32 to vector<32x256xi32>
    %15 = arith.addi %4, %14 : vector<32x256xi32>
    %16 = arith.select %13, %15, %4 : vector<32x256xi1>, vector<32x256xi32>
    %c1_i32_3 = arith.constant 1 : i32
    %17 = vector.broadcast %c1_i32_3 : i32 to vector<32x256xi32>
    %18 = arith.cmpi sge, %16, %17 : vector<32x256xi32>
    %c15_i32 = arith.constant 15 : i32
    %19 = vector.broadcast %c15_i32 : i32 to vector<32x256xi32>
    %20 = arith.cmpi slt, %16, %19 : vector<32x256xi32>
    %cst = arith.constant 0.000000e+00 : f32
    %21 = vector.broadcast %cst : f32 to vector<32x17xf32>
    %c0 = arith.constant 0 : index
    %c0_4 = arith.constant 0 : index
    %c0_5 = arith.constant 0 : index
    %22 = vector.load %arg2[%c0, %c0_4, %c0_5] : memref<1x32x256xf32, #tpu.memory_space<vmem>>, vector<1x32x256xf32>
    %23 = vector.shape_cast %22 : vector<1x32x256xf32> to vector<32x256xf32>
    %24 = tpu.concatenate %21, %23, %21 in 1 : vector<32x17xf32>, vector<32x256xf32>, vector<32x17xf32> -> vector<32x290xf32>
    %25 = vector.extract_strided_slice %24 {offsets = [0, 0], sizes = [32, 256], strides = [1, 1]} : vector<32x290xf32> to vector<32x256xf32>
    %cst_6 = arith.constant 0.000000e+00 : f32
    %26 = vector.broadcast %cst_6 : f32 to vector<32x256xf32>
    %27 = arith.select %18, %25, %26 : vector<32x256xi1>, vector<32x256xf32>
    %28 = arith.truncf %27 : vector<32x256xf32> to vector<32x256xbf16>
    %c0_7 = arith.constant 0 : index
    %c0_8 = arith.constant 0 : index
    %29 = vector.load %arg8[%c0_7, %c0_8] : memref<288x256xbf16, #tpu.memory_space<vmem>>, vector<32x256xbf16>
    tpu.vector_store %arg8[%c0_7, %c0_8], %28 {strides = array<i32>} : memref<288x256xbf16, #tpu.memory_space<vmem>>, vector<32x256xbf16>,
    %30 = vector.extract_strided_slice %24 {offsets = [0, 1], sizes = [32, 256], strides = [1, 1]} : vector<32x290xf32> to vector<32x256xf32>
    %31 = arith.truncf %30 : vector<32x256xf32> to vector<32x256xbf16>
    %c32 = arith.constant 32 : index
    %c0_9 = arith.constant 0 : index
    %32 = vector.load %arg8[%c32, %c0_9] : memref<288x256xbf16, #tpu.memory_space<vmem>>, vector<32x256xbf16>
    tpu.vector_store %arg8[%c32, %c0_9], %31 {strides = array<i32>} : memref<288x256xbf16, #tpu.memory_space<vmem>>, vector<32x256xbf16>,
    %33 = vector.extract_strided_slice %24 {offsets = [0, 2], sizes = [32, 256], strides = [1, 1]} : vector<32x290xf32> to vector<32x256xf32>
    %cst_10 = arith.constant 0.000000e+00 : f32
    %34 = vector.broadcast %cst_10 : f32 to vector<32x256xf32>
    %35 = arith.select %20, %33, %34 : vector<32x256xi1>, vector<32x256xf32>
    %36 = arith.truncf %35 : vector<32x256xf32> to vector<32x256xbf16>
    %c64 = arith.constant 64 : index
    %c0_11 = arith.constant 0 : index
    %37 = vector.load %arg8[%c64, %c0_11] : memref<288x256xbf16, #tpu.memory_space<vmem>>, vector<32x256xbf16>
    tpu.vector_store %arg8[%c64, %c0_11], %36 {strides = array<i32>} : memref<288x256xbf16, #tpu.memory_space<vmem>>, vector<32x256xbf16>,
    %38 = vector.extract_strided_slice %24 {offsets = [0, 16], sizes = [32, 256], strides = [1, 1]} : vector<32x290xf32> to vector<32x256xf32>
    %cst_12 = arith.constant 0.000000e+00 : f32
    %39 = vector.broadcast %cst_12 : f32 to vector<32x256xf32>
    %40 = arith.select %18, %38, %39 : vector<32x256xi1>, vector<32x256xf32>
    %41 = arith.truncf %40 : vector<32x256xf32> to vector<32x256xbf16>
    %c96 = arith.constant 96 : index
    %c0_13 = arith.constant 0 : index
    %42 = vector.load %arg8[%c96, %c0_13] : memref<288x256xbf16, #tpu.memory_space<vmem>>, vector<32x256xbf16>
    tpu.vector_store %arg8[%c96, %c0_13], %41 {strides = array<i32>} : memref<288x256xbf16, #tpu.memory_space<vmem>>, vector<32x256xbf16>,
    %43 = vector.extract_strided_slice %24 {offsets = [0, 17], sizes = [32, 256], strides = [1, 1]} : vector<32x290xf32> to vector<32x256xf32>
    %44 = arith.truncf %43 : vector<32x256xf32> to vector<32x256xbf16>
    %c128 = arith.constant 128 : index
    %c0_14 = arith.constant 0 : index
    %45 = vector.load %arg8[%c128, %c0_14] : memref<288x256xbf16, #tpu.memory_space<vmem>>, vector<32x256xbf16>
    tpu.vector_store %arg8[%c128, %c0_14], %44 {strides = array<i32>} : memref<288x256xbf16, #tpu.memory_space<vmem>>, vector<32x256xbf16>,
    %46 = vector.extract_strided_slice %24 {offsets = [0, 18], sizes = [32, 256], strides = [1, 1]} : vector<32x290xf32> to vector<32x256xf32>
    %cst_15 = arith.constant 0.000000e+00 : f32
    %47 = vector.broadcast %cst_15 : f32 to vector<32x256xf32>
    %48 = arith.select %20, %46, %47 : vector<32x256xi1>, vector<32x256xf32>
    %49 = arith.truncf %48 : vector<32x256xf32> to vector<32x256xbf16>
    %c160 = arith.constant 160 : index
    %c0_16 = arith.constant 0 : index
    %50 = vector.load %arg8[%c160, %c0_16] : memref<288x256xbf16, #tpu.memory_space<vmem>>, vector<32x256xbf16>
    tpu.vector_store %arg8[%c160, %c0_16], %49 {strides = array<i32>} : memref<288x256xbf16, #tpu.memory_space<vmem>>, vector<32x256xbf16>,
    %51 = vector.extract_strided_slice %24 {offsets = [0, 32], sizes = [32, 256], strides = [1, 1]} : vector<32x290xf32> to vector<32x256xf32>
    %cst_17 = arith.constant 0.000000e+00 : f32
    %52 = vector.broadcast %cst_17 : f32 to vector<32x256xf32>
    %53 = arith.select %18, %51, %52 : vector<32x256xi1>, vector<32x256xf32>
    %54 = arith.truncf %53 : vector<32x256xf32> to vector<32x256xbf16>
    %c192 = arith.constant 192 : index
    %c0_18 = arith.constant 0 : index
    %55 = vector.load %arg8[%c192, %c0_18] : memref<288x256xbf16, #tpu.memory_space<vmem>>, vector<32x256xbf16>
    tpu.vector_store %arg8[%c192, %c0_18], %54 {strides = array<i32>} : memref<288x256xbf16, #tpu.memory_space<vmem>>, vector<32x256xbf16>,
    %56 = vector.extract_strided_slice %24 {offsets = [0, 33], sizes = [32, 256], strides = [1, 1]} : vector<32x290xf32> to vector<32x256xf32>
    %57 = arith.truncf %56 : vector<32x256xf32> to vector<32x256xbf16>
    %c224 = arith.constant 224 : index
    %c0_19 = arith.constant 0 : index
    %58 = vector.load %arg8[%c224, %c0_19] : memref<288x256xbf16, #tpu.memory_space<vmem>>, vector<32x256xbf16>
    tpu.vector_store %arg8[%c224, %c0_19], %57 {strides = array<i32>} : memref<288x256xbf16, #tpu.memory_space<vmem>>, vector<32x256xbf16>,
    %59 = vector.extract_strided_slice %24 {offsets = [0, 34], sizes = [32, 256], strides = [1, 1]} : vector<32x290xf32> to vector<32x256xf32>
    %cst_20 = arith.constant 0.000000e+00 : f32
    %60 = vector.broadcast %cst_20 : f32 to vector<32x256xf32>
    %61 = arith.select %20, %59, %60 : vector<32x256xi1>, vector<32x256xf32>
    %62 = arith.truncf %61 : vector<32x256xf32> to vector<32x256xbf16>
    %c256 = arith.constant 256 : index
    %c0_21 = arith.constant 0 : index
    %63 = vector.load %arg8[%c256, %c0_21] : memref<288x256xbf16, #tpu.memory_space<vmem>>, vector<32x256xbf16>
    tpu.vector_store %arg8[%c256, %c0_21], %62 {strides = array<i32>} : memref<288x256xbf16, #tpu.memory_space<vmem>>, vector<32x256xbf16>,
    %c0_22 = arith.constant 0 : index
    %c0_23 = arith.constant 0 : index
    %c0_24 = arith.constant 0 : index
    %c0_25 = arith.constant 0 : index
    %64 = vector.load %arg3[%c0_22, %c0_23, %c0_24, %c0_25] : memref<1x4x32x288xbf16, #tpu.memory_space<vmem>>, vector<1x1x32x288xbf16>
    %65 = vector.shape_cast %64 : vector<1x1x32x288xbf16> to vector<32x288xbf16>
    %c0_26 = arith.constant 0 : index
    %c0_27 = arith.constant 0 : index
    %66 = vector.load %arg8[%c0_26, %c0_27] : memref<288x256xbf16, #tpu.memory_space<vmem>>, vector<288x256xbf16>
    %cst_28 = arith.constant dense<0.000000e+00> : vector<32x256xf32>
    %67 = tpu.matmul %65, %66, %cst_28 {dimension_numbers = #tpu.dot_dimension_numbers<[1], [0], [0], [1], [0, 0, 1, 1], [], []>} : vector<32x288xbf16>, vector<288x256xbf16>, vector<32x256xf32> -> vector<32x256xf32>
    %c0_29 = arith.constant 0 : index
    %c0_30 = arith.constant 0 : index
    %c0_31 = arith.constant 0 : index
    %c0_32 = arith.constant 0 : index
    %68 = vector.load %arg4[%c0_29, %c0_30, %c0_31, %c0_32] : memref<1x4x32x1xf32, #tpu.memory_space<vmem>>, vector<1x1x32x1xf32>
    %69 = vector.shape_cast %68 : vector<1x1x32x1xf32> to vector<32x1xf32>
    %70 = vector.broadcast %69 : vector<32x1xf32> to vector<32x256xf32>
    %71 = arith.addf %67, %70 : vector<32x256xf32>
    %cst_33 = arith.constant 0.000000e+00 : f32
    %72 = vector.broadcast %cst_33 : f32 to vector<32x256xf32>
    %73 = arith.maximumf %71, %72 : vector<32x256xf32>
    %74 = tpu.concatenate %21, %73, %21 in 1 : vector<32x17xf32>, vector<32x256xf32>, vector<32x17xf32> -> vector<32x290xf32>
    %75 = vector.extract_strided_slice %74 {offsets = [0, 0], sizes = [32, 256], strides = [1, 1]} : vector<32x290xf32> to vector<32x256xf32>
    %cst_34 = arith.constant 0.000000e+00 : f32
    %76 = vector.broadcast %cst_34 : f32 to vector<32x256xf32>
    %77 = arith.select %18, %75, %76 : vector<32x256xi1>, vector<32x256xf32>
    %78 = arith.truncf %77 : vector<32x256xf32> to vector<32x256xbf16>
    %c0_35 = arith.constant 0 : index
    %c0_36 = arith.constant 0 : index
    %79 = vector.load %arg8[%c0_35, %c0_36] : memref<288x256xbf16, #tpu.memory_space<vmem>>, vector<32x256xbf16>
    tpu.vector_store %arg8[%c0_35, %c0_36], %78 {strides = array<i32>} : memref<288x256xbf16, #tpu.memory_space<vmem>>, vector<32x256xbf16>,
    %80 = vector.extract_strided_slice %74 {offsets = [0, 1], sizes = [32, 256], strides = [1, 1]} : vector<32x290xf32> to vector<32x256xf32>
    %81 = arith.truncf %80 : vector<32x256xf32> to vector<32x256xbf16>
    %c32_37 = arith.constant 32 : index
    %c0_38 = arith.constant 0 : index
    %82 = vector.load %arg8[%c32_37, %c0_38] : memref<288x256xbf16, #tpu.memory_space<vmem>>, vector<32x256xbf16>
    tpu.vector_store %arg8[%c32_37, %c0_38], %81 {strides = array<i32>} : memref<288x256xbf16, #tpu.memory_space<vmem>>, vector<32x256xbf16>,
    %83 = vector.extract_strided_slice %74 {offsets = [0, 2], sizes = [32, 256], strides = [1, 1]} : vector<32x290xf32> to vector<32x256xf32>
    %cst_39 = arith.constant 0.000000e+00 : f32
    %84 = vector.broadcast %cst_39 : f32 to vector<32x256xf32>
    %85 = arith.select %20, %83, %84 : vector<32x256xi1>, vector<32x256xf32>
    %86 = arith.truncf %85 : vector<32x256xf32> to vector<32x256xbf16>
    %c64_40 = arith.constant 64 : index
    %c0_41 = arith.constant 0 : index
    %87 = vector.load %arg8[%c64_40, %c0_41] : memref<288x256xbf16, #tpu.memory_space<vmem>>, vector<32x256xbf16>
    tpu.vector_store %arg8[%c64_40, %c0_41], %86 {strides = array<i32>} : memref<288x256xbf16, #tpu.memory_space<vmem>>, vector<32x256xbf16>,
    %88 = vector.extract_strided_slice %74 {offsets = [0, 16], sizes = [32, 256], strides = [1, 1]} : vector<32x290xf32> to vector<32x256xf32>
    %cst_42 = arith.constant 0.000000e+00 : f32
    %89 = vector.broadcast %cst_42 : f32 to vector<32x256xf32>
    %90 = arith.select %18, %88, %89 : vector<32x256xi1>, vector<32x256xf32>
    %91 = arith.truncf %90 : vector<32x256xf32> to vector<32x256xbf16>
    %c96_43 = arith.constant 96 : index
    %c0_44 = arith.constant 0 : index
    %92 = vector.load %arg8[%c96_43, %c0_44] : memref<288x256xbf16, #tpu.memory_space<vmem>>, vector<32x256xbf16>
    tpu.vector_store %arg8[%c96_43, %c0_44], %91 {strides = array<i32>} : memref<288x256xbf16, #tpu.memory_space<vmem>>, vector<32x256xbf16>,
    %93 = vector.extract_strided_slice %74 {offsets = [0, 17], sizes = [32, 256], strides = [1, 1]} : vector<32x290xf32> to vector<32x256xf32>
    %94 = arith.truncf %93 : vector<32x256xf32> to vector<32x256xbf16>
    %c128_45 = arith.constant 128 : index
    %c0_46 = arith.constant 0 : index
    %95 = vector.load %arg8[%c128_45, %c0_46] : memref<288x256xbf16, #tpu.memory_space<vmem>>, vector<32x256xbf16>
    tpu.vector_store %arg8[%c128_45, %c0_46], %94 {strides = array<i32>} : memref<288x256xbf16, #tpu.memory_space<vmem>>, vector<32x256xbf16>,
    %96 = vector.extract_strided_slice %74 {offsets = [0, 18], sizes = [32, 256], strides = [1, 1]} : vector<32x290xf32> to vector<32x256xf32>
    %cst_47 = arith.constant 0.000000e+00 : f32
    %97 = vector.broadcast %cst_47 : f32 to vector<32x256xf32>
    %98 = arith.select %20, %96, %97 : vector<32x256xi1>, vector<32x256xf32>
    %99 = arith.truncf %98 : vector<32x256xf32> to vector<32x256xbf16>
    %c160_48 = arith.constant 160 : index
    %c0_49 = arith.constant 0 : index
    %100 = vector.load %arg8[%c160_48, %c0_49] : memref<288x256xbf16, #tpu.memory_space<vmem>>, vector<32x256xbf16>
    tpu.vector_store %arg8[%c160_48, %c0_49], %99 {strides = array<i32>} : memref<288x256xbf16, #tpu.memory_space<vmem>>, vector<32x256xbf16>,
    %101 = vector.extract_strided_slice %74 {offsets = [0, 32], sizes = [32, 256], strides = [1, 1]} : vector<32x290xf32> to vector<32x256xf32>
    %cst_50 = arith.constant 0.000000e+00 : f32
    %102 = vector.broadcast %cst_50 : f32 to vector<32x256xf32>
    %103 = arith.select %18, %101, %102 : vector<32x256xi1>, vector<32x256xf32>
    %104 = arith.truncf %103 : vector<32x256xf32> to vector<32x256xbf16>
    %c192_51 = arith.constant 192 : index
    %c0_52 = arith.constant 0 : index
    %105 = vector.load %arg8[%c192_51, %c0_52] : memref<288x256xbf16, #tpu.memory_space<vmem>>, vector<32x256xbf16>
    tpu.vector_store %arg8[%c192_51, %c0_52], %104 {strides = array<i32>} : memref<288x256xbf16, #tpu.memory_space<vmem>>, vector<32x256xbf16>,
    %106 = vector.extract_strided_slice %74 {offsets = [0, 33], sizes = [32, 256], strides = [1, 1]} : vector<32x290xf32> to vector<32x256xf32>
    %107 = arith.truncf %106 : vector<32x256xf32> to vector<32x256xbf16>
    %c224_53 = arith.constant 224 : index
    %c0_54 = arith.constant 0 : index
    %108 = vector.load %arg8[%c224_53, %c0_54] : memref<288x256xbf16, #tpu.memory_space<vmem>>, vector<32x256xbf16>
    tpu.vector_store %arg8[%c224_53, %c0_54], %107 {strides = array<i32>} : memref<288x256xbf16, #tpu.memory_space<vmem>>, vector<32x256xbf16>,
    %109 = vector.extract_strided_slice %74 {offsets = [0, 34], sizes = [32, 256], strides = [1, 1]} : vector<32x290xf32> to vector<32x256xf32>
    %cst_55 = arith.constant 0.000000e+00 : f32
    %110 = vector.broadcast %cst_55 : f32 to vector<32x256xf32>
    %111 = arith.select %20, %109, %110 : vector<32x256xi1>, vector<32x256xf32>
    %112 = arith.truncf %111 : vector<32x256xf32> to vector<32x256xbf16>
    %c256_56 = arith.constant 256 : index
    %c0_57 = arith.constant 0 : index
    %113 = vector.load %arg8[%c256_56, %c0_57] : memref<288x256xbf16, #tpu.memory_space<vmem>>, vector<32x256xbf16>
    tpu.vector_store %arg8[%c256_56, %c0_57], %112 {strides = array<i32>} : memref<288x256xbf16, #tpu.memory_space<vmem>>, vector<32x256xbf16>,
    %c0_58 = arith.constant 0 : index
    %c1 = arith.constant 1 : index
    %c0_59 = arith.constant 0 : index
    %c0_60 = arith.constant 0 : index
    %114 = vector.load %arg3[%c0_58, %c1, %c0_59, %c0_60] : memref<1x4x32x288xbf16, #tpu.memory_space<vmem>>, vector<1x1x32x288xbf16>
    %115 = vector.shape_cast %114 : vector<1x1x32x288xbf16> to vector<32x288xbf16>
    %c0_61 = arith.constant 0 : index
    %c0_62 = arith.constant 0 : index
    %116 = vector.load %arg8[%c0_61, %c0_62] : memref<288x256xbf16, #tpu.memory_space<vmem>>, vector<288x256xbf16>
    %cst_63 = arith.constant dense<0.000000e+00> : vector<32x256xf32>
    %117 = tpu.matmul %115, %116, %cst_63 {dimension_numbers = #tpu.dot_dimension_numbers<[1], [0], [0], [1], [0, 0, 1, 1], [], []>} : vector<32x288xbf16>, vector<288x256xbf16>, vector<32x256xf32> -> vector<32x256xf32>
    %c0_64 = arith.constant 0 : index
    %c1_65 = arith.constant 1 : index
    %c0_66 = arith.constant 0 : index
    %c0_67 = arith.constant 0 : index
    %118 = vector.load %arg4[%c0_64, %c1_65, %c0_66, %c0_67] : memref<1x4x32x1xf32, #tpu.memory_space<vmem>>, vector<1x1x32x1xf32>
    %119 = vector.shape_cast %118 : vector<1x1x32x1xf32> to vector<32x1xf32>
    %120 = vector.broadcast %119 : vector<32x1xf32> to vector<32x256xf32>
    %121 = arith.addf %117, %120 : vector<32x256xf32>
    %cst_68 = arith.constant 0.000000e+00 : f32
    %122 = vector.broadcast %cst_68 : f32 to vector<32x256xf32>
    %123 = arith.maximumf %121, %122 : vector<32x256xf32>
    %124 = tpu.concatenate %21, %123, %21 in 1 : vector<32x17xf32>, vector<32x256xf32>, vector<32x17xf32> -> vector<32x290xf32>
    %125 = vector.extract_strided_slice %124 {offsets = [0, 0], sizes = [32, 256], strides = [1, 1]} : vector<32x290xf32> to vector<32x256xf32>
    %cst_69 = arith.constant 0.000000e+00 : f32
    %126 = vector.broadcast %cst_69 : f32 to vector<32x256xf32>
    %127 = arith.select %18, %125, %126 : vector<32x256xi1>, vector<32x256xf32>
    %128 = arith.truncf %127 : vector<32x256xf32> to vector<32x256xbf16>
    %c0_70 = arith.constant 0 : index
    %c0_71 = arith.constant 0 : index
    %129 = vector.load %arg8[%c0_70, %c0_71] : memref<288x256xbf16, #tpu.memory_space<vmem>>, vector<32x256xbf16>
    tpu.vector_store %arg8[%c0_70, %c0_71], %128 {strides = array<i32>} : memref<288x256xbf16, #tpu.memory_space<vmem>>, vector<32x256xbf16>,
    %130 = vector.extract_strided_slice %124 {offsets = [0, 1], sizes = [32, 256], strides = [1, 1]} : vector<32x290xf32> to vector<32x256xf32>
    %131 = arith.truncf %130 : vector<32x256xf32> to vector<32x256xbf16>
    %c32_72 = arith.constant 32 : index
    %c0_73 = arith.constant 0 : index
    %132 = vector.load %arg8[%c32_72, %c0_73] : memref<288x256xbf16, #tpu.memory_space<vmem>>, vector<32x256xbf16>
    tpu.vector_store %arg8[%c32_72, %c0_73], %131 {strides = array<i32>} : memref<288x256xbf16, #tpu.memory_space<vmem>>, vector<32x256xbf16>,
    %133 = vector.extract_strided_slice %124 {offsets = [0, 2], sizes = [32, 256], strides = [1, 1]} : vector<32x290xf32> to vector<32x256xf32>
    %cst_74 = arith.constant 0.000000e+00 : f32
    %134 = vector.broadcast %cst_74 : f32 to vector<32x256xf32>
    %135 = arith.select %20, %133, %134 : vector<32x256xi1>, vector<32x256xf32>
    %136 = arith.truncf %135 : vector<32x256xf32> to vector<32x256xbf16>
    %c64_75 = arith.constant 64 : index
    %c0_76 = arith.constant 0 : index
    %137 = vector.load %arg8[%c64_75, %c0_76] : memref<288x256xbf16, #tpu.memory_space<vmem>>, vector<32x256xbf16>
    tpu.vector_store %arg8[%c64_75, %c0_76], %136 {strides = array<i32>} : memref<288x256xbf16, #tpu.memory_space<vmem>>, vector<32x256xbf16>,
    %138 = vector.extract_strided_slice %124 {offsets = [0, 16], sizes = [32, 256], strides = [1, 1]} : vector<32x290xf32> to vector<32x256xf32>
    %cst_77 = arith.constant 0.000000e+00 : f32
    %139 = vector.broadcast %cst_77 : f32 to vector<32x256xf32>
    %140 = arith.select %18, %138, %139 : vector<32x256xi1>, vector<32x256xf32>
    %141 = arith.truncf %140 : vector<32x256xf32> to vector<32x256xbf16>
    %c96_78 = arith.constant 96 : index
    %c0_79 = arith.constant 0 : index
    %142 = vector.load %arg8[%c96_78, %c0_79] : memref<288x256xbf16, #tpu.memory_space<vmem>>, vector<32x256xbf16>
    tpu.vector_store %arg8[%c96_78, %c0_79], %141 {strides = array<i32>} : memref<288x256xbf16, #tpu.memory_space<vmem>>, vector<32x256xbf16>,
    %143 = vector.extract_strided_slice %124 {offsets = [0, 17], sizes = [32, 256], strides = [1, 1]} : vector<32x290xf32> to vector<32x256xf32>
    %144 = arith.truncf %143 : vector<32x256xf32> to vector<32x256xbf16>
    %c128_80 = arith.constant 128 : index
    %c0_81 = arith.constant 0 : index
    %145 = vector.load %arg8[%c128_80, %c0_81] : memref<288x256xbf16, #tpu.memory_space<vmem>>, vector<32x256xbf16>
    tpu.vector_store %arg8[%c128_80, %c0_81], %144 {strides = array<i32>} : memref<288x256xbf16, #tpu.memory_space<vmem>>, vector<32x256xbf16>,
    %146 = vector.extract_strided_slice %124 {offsets = [0, 18], sizes = [32, 256], strides = [1, 1]} : vector<32x290xf32> to vector<32x256xf32>
    %cst_82 = arith.constant 0.000000e+00 : f32
    %147 = vector.broadcast %cst_82 : f32 to vector<32x256xf32>
    %148 = arith.select %20, %146, %147 : vector<32x256xi1>, vector<32x256xf32>
    %149 = arith.truncf %148 : vector<32x256xf32> to vector<32x256xbf16>
    %c160_83 = arith.constant 160 : index
    %c0_84 = arith.constant 0 : index
    %150 = vector.load %arg8[%c160_83, %c0_84] : memref<288x256xbf16, #tpu.memory_space<vmem>>, vector<32x256xbf16>
    tpu.vector_store %arg8[%c160_83, %c0_84], %149 {strides = array<i32>} : memref<288x256xbf16, #tpu.memory_space<vmem>>, vector<32x256xbf16>,
    %151 = vector.extract_strided_slice %124 {offsets = [0, 32], sizes = [32, 256], strides = [1, 1]} : vector<32x290xf32> to vector<32x256xf32>
    %cst_85 = arith.constant 0.000000e+00 : f32
    %152 = vector.broadcast %cst_85 : f32 to vector<32x256xf32>
    %153 = arith.select %18, %151, %152 : vector<32x256xi1>, vector<32x256xf32>
    %154 = arith.truncf %153 : vector<32x256xf32> to vector<32x256xbf16>
    %c192_86 = arith.constant 192 : index
    %c0_87 = arith.constant 0 : index
    %155 = vector.load %arg8[%c192_86, %c0_87] : memref<288x256xbf16, #tpu.memory_space<vmem>>, vector<32x256xbf16>
    tpu.vector_store %arg8[%c192_86, %c0_87], %154 {strides = array<i32>} : memref<288x256xbf16, #tpu.memory_space<vmem>>, vector<32x256xbf16>,
    %156 = vector.extract_strided_slice %124 {offsets = [0, 33], sizes = [32, 256], strides = [1, 1]} : vector<32x290xf32> to vector<32x256xf32>
    %157 = arith.truncf %156 : vector<32x256xf32> to vector<32x256xbf16>
    %c224_88 = arith.constant 224 : index
    %c0_89 = arith.constant 0 : index
    %158 = vector.load %arg8[%c224_88, %c0_89] : memref<288x256xbf16, #tpu.memory_space<vmem>>, vector<32x256xbf16>
    tpu.vector_store %arg8[%c224_88, %c0_89], %157 {strides = array<i32>} : memref<288x256xbf16, #tpu.memory_space<vmem>>, vector<32x256xbf16>,
    %159 = vector.extract_strided_slice %124 {offsets = [0, 34], sizes = [32, 256], strides = [1, 1]} : vector<32x290xf32> to vector<32x256xf32>
    %cst_90 = arith.constant 0.000000e+00 : f32
    %160 = vector.broadcast %cst_90 : f32 to vector<32x256xf32>
    %161 = arith.select %20, %159, %160 : vector<32x256xi1>, vector<32x256xf32>
    %162 = arith.truncf %161 : vector<32x256xf32> to vector<32x256xbf16>
    %c256_91 = arith.constant 256 : index
    %c0_92 = arith.constant 0 : index
    %163 = vector.load %arg8[%c256_91, %c0_92] : memref<288x256xbf16, #tpu.memory_space<vmem>>, vector<32x256xbf16>
    tpu.vector_store %arg8[%c256_91, %c0_92], %162 {strides = array<i32>} : memref<288x256xbf16, #tpu.memory_space<vmem>>, vector<32x256xbf16>,
    %c0_93 = arith.constant 0 : index
    %c2 = arith.constant 2 : index
    %c0_94 = arith.constant 0 : index
    %c0_95 = arith.constant 0 : index
    %164 = vector.load %arg3[%c0_93, %c2, %c0_94, %c0_95] : memref<1x4x32x288xbf16, #tpu.memory_space<vmem>>, vector<1x1x32x288xbf16>
    %165 = vector.shape_cast %164 : vector<1x1x32x288xbf16> to vector<32x288xbf16>
    %c0_96 = arith.constant 0 : index
    %c0_97 = arith.constant 0 : index
    %166 = vector.load %arg8[%c0_96, %c0_97] : memref<288x256xbf16, #tpu.memory_space<vmem>>, vector<288x256xbf16>
    %cst_98 = arith.constant dense<0.000000e+00> : vector<32x256xf32>
    %167 = tpu.matmul %165, %166, %cst_98 {dimension_numbers = #tpu.dot_dimension_numbers<[1], [0], [0], [1], [0, 0, 1, 1], [], []>} : vector<32x288xbf16>, vector<288x256xbf16>, vector<32x256xf32> -> vector<32x256xf32>
    %c0_99 = arith.constant 0 : index
    %c2_100 = arith.constant 2 : index
    %c0_101 = arith.constant 0 : index
    %c0_102 = arith.constant 0 : index
    %168 = vector.load %arg4[%c0_99, %c2_100, %c0_101, %c0_102] : memref<1x4x32x1xf32, #tpu.memory_space<vmem>>, vector<1x1x32x1xf32>
    %169 = vector.shape_cast %168 : vector<1x1x32x1xf32> to vector<32x1xf32>
    %170 = vector.broadcast %169 : vector<32x1xf32> to vector<32x256xf32>
    %171 = arith.addf %167, %170 : vector<32x256xf32>
    %cst_103 = arith.constant 0.000000e+00 : f32
    %172 = vector.broadcast %cst_103 : f32 to vector<32x256xf32>
    %173 = arith.maximumf %171, %172 : vector<32x256xf32>
    %174 = tpu.concatenate %21, %173, %21 in 1 : vector<32x17xf32>, vector<32x256xf32>, vector<32x17xf32> -> vector<32x290xf32>
    %175 = vector.extract_strided_slice %174 {offsets = [0, 0], sizes = [32, 256], strides = [1, 1]} : vector<32x290xf32> to vector<32x256xf32>
    %cst_104 = arith.constant 0.000000e+00 : f32
    %176 = vector.broadcast %cst_104 : f32 to vector<32x256xf32>
    %177 = arith.select %18, %175, %176 : vector<32x256xi1>, vector<32x256xf32>
    %178 = arith.truncf %177 : vector<32x256xf32> to vector<32x256xbf16>
    %c0_105 = arith.constant 0 : index
    %c0_106 = arith.constant 0 : index
    %179 = vector.load %arg8[%c0_105, %c0_106] : memref<288x256xbf16, #tpu.memory_space<vmem>>, vector<32x256xbf16>
    tpu.vector_store %arg8[%c0_105, %c0_106], %178 {strides = array<i32>} : memref<288x256xbf16, #tpu.memory_space<vmem>>, vector<32x256xbf16>,
    %180 = vector.extract_strided_slice %174 {offsets = [0, 1], sizes = [32, 256], strides = [1, 1]} : vector<32x290xf32> to vector<32x256xf32>
    %181 = arith.truncf %180 : vector<32x256xf32> to vector<32x256xbf16>
    %c32_107 = arith.constant 32 : index
    %c0_108 = arith.constant 0 : index
    %182 = vector.load %arg8[%c32_107, %c0_108] : memref<288x256xbf16, #tpu.memory_space<vmem>>, vector<32x256xbf16>
    tpu.vector_store %arg8[%c32_107, %c0_108], %181 {strides = array<i32>} : memref<288x256xbf16, #tpu.memory_space<vmem>>, vector<32x256xbf16>,
    %183 = vector.extract_strided_slice %174 {offsets = [0, 2], sizes = [32, 256], strides = [1, 1]} : vector<32x290xf32> to vector<32x256xf32>
    %cst_109 = arith.constant 0.000000e+00 : f32
    %184 = vector.broadcast %cst_109 : f32 to vector<32x256xf32>
    %185 = arith.select %20, %183, %184 : vector<32x256xi1>, vector<32x256xf32>
    %186 = arith.truncf %185 : vector<32x256xf32> to vector<32x256xbf16>
    %c64_110 = arith.constant 64 : index
    %c0_111 = arith.constant 0 : index
    %187 = vector.load %arg8[%c64_110, %c0_111] : memref<288x256xbf16, #tpu.memory_space<vmem>>, vector<32x256xbf16>
    tpu.vector_store %arg8[%c64_110, %c0_111], %186 {strides = array<i32>} : memref<288x256xbf16, #tpu.memory_space<vmem>>, vector<32x256xbf16>,
    %188 = vector.extract_strided_slice %174 {offsets = [0, 16], sizes = [32, 256], strides = [1, 1]} : vector<32x290xf32> to vector<32x256xf32>
    %cst_112 = arith.constant 0.000000e+00 : f32
    %189 = vector.broadcast %cst_112 : f32 to vector<32x256xf32>
    %190 = arith.select %18, %188, %189 : vector<32x256xi1>, vector<32x256xf32>
    %191 = arith.truncf %190 : vector<32x256xf32> to vector<32x256xbf16>
    %c96_113 = arith.constant 96 : index
    %c0_114 = arith.constant 0 : index
    %192 = vector.load %arg8[%c96_113, %c0_114] : memref<288x256xbf16, #tpu.memory_space<vmem>>, vector<32x256xbf16>
    tpu.vector_store %arg8[%c96_113, %c0_114], %191 {strides = array<i32>} : memref<288x256xbf16, #tpu.memory_space<vmem>>, vector<32x256xbf16>,
    %193 = vector.extract_strided_slice %174 {offsets = [0, 17], sizes = [32, 256], strides = [1, 1]} : vector<32x290xf32> to vector<32x256xf32>
    %194 = arith.truncf %193 : vector<32x256xf32> to vector<32x256xbf16>
    %c128_115 = arith.constant 128 : index
    %c0_116 = arith.constant 0 : index
    %195 = vector.load %arg8[%c128_115, %c0_116] : memref<288x256xbf16, #tpu.memory_space<vmem>>, vector<32x256xbf16>
    tpu.vector_store %arg8[%c128_115, %c0_116], %194 {strides = array<i32>} : memref<288x256xbf16, #tpu.memory_space<vmem>>, vector<32x256xbf16>,
    %196 = vector.extract_strided_slice %174 {offsets = [0, 18], sizes = [32, 256], strides = [1, 1]} : vector<32x290xf32> to vector<32x256xf32>
    %cst_117 = arith.constant 0.000000e+00 : f32
    %197 = vector.broadcast %cst_117 : f32 to vector<32x256xf32>
    %198 = arith.select %20, %196, %197 : vector<32x256xi1>, vector<32x256xf32>
    %199 = arith.truncf %198 : vector<32x256xf32> to vector<32x256xbf16>
    %c160_118 = arith.constant 160 : index
    %c0_119 = arith.constant 0 : index
    %200 = vector.load %arg8[%c160_118, %c0_119] : memref<288x256xbf16, #tpu.memory_space<vmem>>, vector<32x256xbf16>
    tpu.vector_store %arg8[%c160_118, %c0_119], %199 {strides = array<i32>} : memref<288x256xbf16, #tpu.memory_space<vmem>>, vector<32x256xbf16>,
    %201 = vector.extract_strided_slice %174 {offsets = [0, 32], sizes = [32, 256], strides = [1, 1]} : vector<32x290xf32> to vector<32x256xf32>
    %cst_120 = arith.constant 0.000000e+00 : f32
    %202 = vector.broadcast %cst_120 : f32 to vector<32x256xf32>
    %203 = arith.select %18, %201, %202 : vector<32x256xi1>, vector<32x256xf32>
    %204 = arith.truncf %203 : vector<32x256xf32> to vector<32x256xbf16>
    %c192_121 = arith.constant 192 : index
    %c0_122 = arith.constant 0 : index
    %205 = vector.load %arg8[%c192_121, %c0_122] : memref<288x256xbf16, #tpu.memory_space<vmem>>, vector<32x256xbf16>
    tpu.vector_store %arg8[%c192_121, %c0_122], %204 {strides = array<i32>} : memref<288x256xbf16, #tpu.memory_space<vmem>>, vector<32x256xbf16>,
    %206 = vector.extract_strided_slice %174 {offsets = [0, 33], sizes = [32, 256], strides = [1, 1]} : vector<32x290xf32> to vector<32x256xf32>
    %207 = arith.truncf %206 : vector<32x256xf32> to vector<32x256xbf16>
    %c224_123 = arith.constant 224 : index
    %c0_124 = arith.constant 0 : index
    %208 = vector.load %arg8[%c224_123, %c0_124] : memref<288x256xbf16, #tpu.memory_space<vmem>>, vector<32x256xbf16>
    tpu.vector_store %arg8[%c224_123, %c0_124], %207 {strides = array<i32>} : memref<288x256xbf16, #tpu.memory_space<vmem>>, vector<32x256xbf16>,
    %209 = vector.extract_strided_slice %174 {offsets = [0, 34], sizes = [32, 256], strides = [1, 1]} : vector<32x290xf32> to vector<32x256xf32>
    %cst_125 = arith.constant 0.000000e+00 : f32
    %210 = vector.broadcast %cst_125 : f32 to vector<32x256xf32>
    %211 = arith.select %20, %209, %210 : vector<32x256xi1>, vector<32x256xf32>
    %212 = arith.truncf %211 : vector<32x256xf32> to vector<32x256xbf16>
    %c256_126 = arith.constant 256 : index
    %c0_127 = arith.constant 0 : index
    %213 = vector.load %arg8[%c256_126, %c0_127] : memref<288x256xbf16, #tpu.memory_space<vmem>>, vector<32x256xbf16>
    tpu.vector_store %arg8[%c256_126, %c0_127], %212 {strides = array<i32>} : memref<288x256xbf16, #tpu.memory_space<vmem>>, vector<32x256xbf16>,
    %c0_128 = arith.constant 0 : index
    %c3 = arith.constant 3 : index
    %c0_129 = arith.constant 0 : index
    %c0_130 = arith.constant 0 : index
    %214 = vector.load %arg3[%c0_128, %c3, %c0_129, %c0_130] : memref<1x4x32x288xbf16, #tpu.memory_space<vmem>>, vector<1x1x32x288xbf16>
    %215 = vector.shape_cast %214 : vector<1x1x32x288xbf16> to vector<32x288xbf16>
    %c0_131 = arith.constant 0 : index
    %c0_132 = arith.constant 0 : index
    %216 = vector.load %arg8[%c0_131, %c0_132] : memref<288x256xbf16, #tpu.memory_space<vmem>>, vector<288x256xbf16>
    %cst_133 = arith.constant dense<0.000000e+00> : vector<32x256xf32>
    %217 = tpu.matmul %215, %216, %cst_133 {dimension_numbers = #tpu.dot_dimension_numbers<[1], [0], [0], [1], [0, 0, 1, 1], [], []>} : vector<32x288xbf16>, vector<288x256xbf16>, vector<32x256xf32> -> vector<32x256xf32>
    %c0_134 = arith.constant 0 : index
    %c3_135 = arith.constant 3 : index
    %c0_136 = arith.constant 0 : index
    %c0_137 = arith.constant 0 : index
    %218 = vector.load %arg4[%c0_134, %c3_135, %c0_136, %c0_137] : memref<1x4x32x1xf32, #tpu.memory_space<vmem>>, vector<1x1x32x1xf32>
    %219 = vector.shape_cast %218 : vector<1x1x32x1xf32> to vector<32x1xf32>
    %220 = vector.broadcast %219 : vector<32x1xf32> to vector<32x256xf32>
    %221 = arith.addf %217, %220 : vector<32x256xf32>
    %cst_138 = arith.constant 0.000000e+00 : f32
    %222 = vector.broadcast %cst_138 : f32 to vector<32x256xf32>
    %223 = arith.maximumf %221, %222 : vector<32x256xf32>
    %224 = tpu.concatenate %21, %223, %21 in 1 : vector<32x17xf32>, vector<32x256xf32>, vector<32x17xf32> -> vector<32x290xf32>
    %225 = vector.extract_strided_slice %224 {offsets = [0, 0], sizes = [32, 256], strides = [1, 1]} : vector<32x290xf32> to vector<32x256xf32>
    %cst_139 = arith.constant 0.000000e+00 : f32
    %226 = vector.broadcast %cst_139 : f32 to vector<32x256xf32>
    %227 = arith.select %18, %225, %226 : vector<32x256xi1>, vector<32x256xf32>
    %228 = arith.truncf %227 : vector<32x256xf32> to vector<32x256xbf16>
    %c0_140 = arith.constant 0 : index
    %c0_141 = arith.constant 0 : index
    %229 = vector.load %arg8[%c0_140, %c0_141] : memref<288x256xbf16, #tpu.memory_space<vmem>>, vector<32x256xbf16>
    tpu.vector_store %arg8[%c0_140, %c0_141], %228 {strides = array<i32>} : memref<288x256xbf16, #tpu.memory_space<vmem>>, vector<32x256xbf16>,
    %230 = vector.extract_strided_slice %224 {offsets = [0, 1], sizes = [32, 256], strides = [1, 1]} : vector<32x290xf32> to vector<32x256xf32>
    %231 = arith.truncf %230 : vector<32x256xf32> to vector<32x256xbf16>
    %c32_142 = arith.constant 32 : index
    %c0_143 = arith.constant 0 : index
    %232 = vector.load %arg8[%c32_142, %c0_143] : memref<288x256xbf16, #tpu.memory_space<vmem>>, vector<32x256xbf16>
    tpu.vector_store %arg8[%c32_142, %c0_143], %231 {strides = array<i32>} : memref<288x256xbf16, #tpu.memory_space<vmem>>, vector<32x256xbf16>,
    %233 = vector.extract_strided_slice %224 {offsets = [0, 2], sizes = [32, 256], strides = [1, 1]} : vector<32x290xf32> to vector<32x256xf32>
    %cst_144 = arith.constant 0.000000e+00 : f32
    %234 = vector.broadcast %cst_144 : f32 to vector<32x256xf32>
    %235 = arith.select %20, %233, %234 : vector<32x256xi1>, vector<32x256xf32>
    %236 = arith.truncf %235 : vector<32x256xf32> to vector<32x256xbf16>
    %c64_145 = arith.constant 64 : index
    %c0_146 = arith.constant 0 : index
    %237 = vector.load %arg8[%c64_145, %c0_146] : memref<288x256xbf16, #tpu.memory_space<vmem>>, vector<32x256xbf16>
    tpu.vector_store %arg8[%c64_145, %c0_146], %236 {strides = array<i32>} : memref<288x256xbf16, #tpu.memory_space<vmem>>, vector<32x256xbf16>,
    %238 = vector.extract_strided_slice %224 {offsets = [0, 16], sizes = [32, 256], strides = [1, 1]} : vector<32x290xf32> to vector<32x256xf32>
    %cst_147 = arith.constant 0.000000e+00 : f32
    %239 = vector.broadcast %cst_147 : f32 to vector<32x256xf32>
    %240 = arith.select %18, %238, %239 : vector<32x256xi1>, vector<32x256xf32>
    %241 = arith.truncf %240 : vector<32x256xf32> to vector<32x256xbf16>
    %c96_148 = arith.constant 96 : index
    %c0_149 = arith.constant 0 : index
    %242 = vector.load %arg8[%c96_148, %c0_149] : memref<288x256xbf16, #tpu.memory_space<vmem>>, vector<32x256xbf16>
    tpu.vector_store %arg8[%c96_148, %c0_149], %241 {strides = array<i32>} : memref<288x256xbf16, #tpu.memory_space<vmem>>, vector<32x256xbf16>,
    %243 = vector.extract_strided_slice %224 {offsets = [0, 17], sizes = [32, 256], strides = [1, 1]} : vector<32x290xf32> to vector<32x256xf32>
    %244 = arith.truncf %243 : vector<32x256xf32> to vector<32x256xbf16>
    %c128_150 = arith.constant 128 : index
    %c0_151 = arith.constant 0 : index
    %245 = vector.load %arg8[%c128_150, %c0_151] : memref<288x256xbf16, #tpu.memory_space<vmem>>, vector<32x256xbf16>
    tpu.vector_store %arg8[%c128_150, %c0_151], %244 {strides = array<i32>} : memref<288x256xbf16, #tpu.memory_space<vmem>>, vector<32x256xbf16>,
    %246 = vector.extract_strided_slice %224 {offsets = [0, 18], sizes = [32, 256], strides = [1, 1]} : vector<32x290xf32> to vector<32x256xf32>
    %cst_152 = arith.constant 0.000000e+00 : f32
    %247 = vector.broadcast %cst_152 : f32 to vector<32x256xf32>
    %248 = arith.select %20, %246, %247 : vector<32x256xi1>, vector<32x256xf32>
    %249 = arith.truncf %248 : vector<32x256xf32> to vector<32x256xbf16>
    %c160_153 = arith.constant 160 : index
    %c0_154 = arith.constant 0 : index
    %250 = vector.load %arg8[%c160_153, %c0_154] : memref<288x256xbf16, #tpu.memory_space<vmem>>, vector<32x256xbf16>
    tpu.vector_store %arg8[%c160_153, %c0_154], %249 {strides = array<i32>} : memref<288x256xbf16, #tpu.memory_space<vmem>>, vector<32x256xbf16>,
    %251 = vector.extract_strided_slice %224 {offsets = [0, 32], sizes = [32, 256], strides = [1, 1]} : vector<32x290xf32> to vector<32x256xf32>
    %cst_155 = arith.constant 0.000000e+00 : f32
    %252 = vector.broadcast %cst_155 : f32 to vector<32x256xf32>
    %253 = arith.select %18, %251, %252 : vector<32x256xi1>, vector<32x256xf32>
    %254 = arith.truncf %253 : vector<32x256xf32> to vector<32x256xbf16>
    %c192_156 = arith.constant 192 : index
    %c0_157 = arith.constant 0 : index
    %255 = vector.load %arg8[%c192_156, %c0_157] : memref<288x256xbf16, #tpu.memory_space<vmem>>, vector<32x256xbf16>
    tpu.vector_store %arg8[%c192_156, %c0_157], %254 {strides = array<i32>} : memref<288x256xbf16, #tpu.memory_space<vmem>>, vector<32x256xbf16>,
    %256 = vector.extract_strided_slice %224 {offsets = [0, 33], sizes = [32, 256], strides = [1, 1]} : vector<32x290xf32> to vector<32x256xf32>
    %257 = arith.truncf %256 : vector<32x256xf32> to vector<32x256xbf16>
    %c224_158 = arith.constant 224 : index
    %c0_159 = arith.constant 0 : index
    %258 = vector.load %arg8[%c224_158, %c0_159] : memref<288x256xbf16, #tpu.memory_space<vmem>>, vector<32x256xbf16>
    tpu.vector_store %arg8[%c224_158, %c0_159], %257 {strides = array<i32>} : memref<288x256xbf16, #tpu.memory_space<vmem>>, vector<32x256xbf16>,
    %259 = vector.extract_strided_slice %224 {offsets = [0, 34], sizes = [32, 256], strides = [1, 1]} : vector<32x290xf32> to vector<32x256xf32>
    %cst_160 = arith.constant 0.000000e+00 : f32
    %260 = vector.broadcast %cst_160 : f32 to vector<32x256xf32>
    %261 = arith.select %20, %259, %260 : vector<32x256xi1>, vector<32x256xf32>
    %262 = arith.truncf %261 : vector<32x256xf32> to vector<32x256xbf16>
    %c256_161 = arith.constant 256 : index
    %c0_162 = arith.constant 0 : index
    %263 = vector.load %arg8[%c256_161, %c0_162] : memref<288x256xbf16, #tpu.memory_space<vmem>>, vector<32x256xbf16>
    tpu.vector_store %arg8[%c256_161, %c0_162], %262 {strides = array<i32>} : memref<288x256xbf16, #tpu.memory_space<vmem>>, vector<32x256xbf16>,
    %c0_163 = arith.constant 0 : index
    %c0_164 = arith.constant 0 : index
    %c0_165 = arith.constant 0 : index
    %264 = vector.load %arg5[%c0_163, %c0_164, %c0_165] : memref<1x40x288xbf16, #tpu.memory_space<vmem>>, vector<1x40x288xbf16>
    %265 = vector.shape_cast %264 : vector<1x40x288xbf16> to vector<40x288xbf16>
    %c0_166 = arith.constant 0 : index
    %c0_167 = arith.constant 0 : index
    %266 = vector.load %arg8[%c0_166, %c0_167] : memref<288x256xbf16, #tpu.memory_space<vmem>>, vector<288x256xbf16>
    %cst_168 = arith.constant dense<0.000000e+00> : vector<40x256xf32>
    %267 = tpu.matmul %265, %266, %cst_168 {dimension_numbers = #tpu.dot_dimension_numbers<[1], [0], [0], [1], [0, 0, 1, 1], [], []>} : vector<40x288xbf16>, vector<288x256xbf16>, vector<40x256xf32> -> vector<40x256xf32>
    %c0_169 = arith.constant 0 : index
    %c0_170 = arith.constant 0 : index
    %c0_171 = arith.constant 0 : index
    %268 = vector.load %arg6[%c0_169, %c0_170, %c0_171] : memref<1x40x1xf32, #tpu.memory_space<vmem>>, vector<1x40x1xf32>
    %269 = vector.shape_cast %268 : vector<1x40x1xf32> to vector<40x1xf32>
    %270 = vector.broadcast %269 : vector<40x1xf32> to vector<40x256xf32>
    %271 = arith.addf %267, %270 : vector<40x256xf32>
    %c0_172 = arith.constant 0 : index
    %c0_173 = arith.constant 0 : index
    %c0_174 = arith.constant 0 : index
    %c0_175 = arith.constant 0 : index
    %272 = vector.load %arg7[%c0_172, %c0_173, %c0_174, %c0_175] : memref<1x1x40x256xf32, #tpu.memory_space<vmem>>, vector<1x1x40x256xf32>
    %273 = vector.shape_cast %272 : vector<1x1x40x256xf32> to vector<40x256xf32>
    %274 = vector.shape_cast %271 : vector<40x256xf32> to vector<1x1x40x256xf32>
    tpu.vector_store %arg7[%c0_172, %c0_173, %c0_174, %c0_175], %274 {strides = array<i32>} : memref<1x1x40x256xf32, #tpu.memory_space<vmem>>, vector<1x1x40x256xf32>,
    return
  }
  func.func @transform_0(%arg0: i32, %arg1: i32) -> (i32, i32, i32) {
    %c0_i32 = arith.constant 0 : i32
    %c0_i32_0 = arith.constant 0 : i32
    %c0_i32_1 = arith.constant 0 : i32
    return %arg0, %c0_i32, %c0_i32_0 : i32, i32, i32
  }
  func.func @transform_1(%arg0: i32, %arg1: i32) -> (i32, i32, i32, i32) {
    %c0_i32 = arith.constant 0 : i32
    %c0_i32_0 = arith.constant 0 : i32
    %c0_i32_1 = arith.constant 0 : i32
    %c0_i32_2 = arith.constant 0 : i32
    return %arg1, %c0_i32, %c0_i32_0, %c0_i32_1 : i32, i32, i32, i32
  }
  func.func @transform_2(%arg0: i32, %arg1: i32) -> (i32, i32, i32, i32) {
    %c0_i32 = arith.constant 0 : i32
    %c0_i32_0 = arith.constant 0 : i32
    %c0_i32_1 = arith.constant 0 : i32
    %c0_i32_2 = arith.constant 0 : i32
    return %arg1, %c0_i32, %c0_i32_0, %c0_i32_1 : i32, i32, i32, i32
  }
  func.func @transform_3(%arg0: i32, %arg1: i32) -> (i32, i32, i32) {
    %c0_i32 = arith.constant 0 : i32
    %c0_i32_0 = arith.constant 0 : i32
    %c0_i32_1 = arith.constant 0 : i32
    return %arg1, %c0_i32, %c0_i32_0 : i32, i32, i32
  }
  func.func @transform_4(%arg0: i32, %arg1: i32) -> (i32, i32, i32) {
    %c0_i32 = arith.constant 0 : i32
    %c0_i32_0 = arith.constant 0 : i32
    %c0_i32_1 = arith.constant 0 : i32
    return %arg1, %c0_i32, %c0_i32_0 : i32, i32, i32
  }
  func.func @transform_5(%arg0: i32, %arg1: i32) -> (i32, i32, i32, i32) {
    %c0_i32 = arith.constant 0 : i32
    %c0_i32_0 = arith.constant 0 : i32
    %c0_i32_1 = arith.constant 0 : i32
    return %arg0, %arg1, %c0_i32, %c0_i32_0 : i32, i32, i32, i32
  }
}

</mosaic_0001>

<llo_original>
// kernel: _level_forward.1
$region0: #{_level_forward.1}
  #allocation0 [shape = 'u32[]', space=smem, size = 0x4, offset = 0x4, fixed_abs, tag = 'smem constant byte address 0x4 - core index']
  #allocation1 [shape = 'u32[144,128]{1,0:T(1,128)}', space=vmem, size = 0x12000, scoped, tag = 'internal scratch']
  #allocation2 [shape = 'bf16[288,256]{1,0:T(16,128)(2,1)}', space=vmem, size = 0x24000, scoped, tag = 'scratch operand']
  %s0 = inlined_call_operand.vmem [shape: f32[2,32,256], index: 0, kind: input, shape index: {}]
  %s1 = inlined_call_operand.vmem [shape: bf16[2,4,32,288], index: 1, kind: input, shape index: {}]
  %s2 = inlined_call_operand.vmem [shape: f32[2,4,32,1], index: 2, kind: input, shape index: {}]
  %s3 = inlined_call_operand.vmem [shape: bf16[2,40,288], index: 3, kind: input, shape index: {}]
  %s4 = inlined_call_operand.vmem [shape: f32[2,40,1], index: 4, kind: input, shape index: {}]
  %s5 = inlined_call_operand.vmem [shape: f32[2,2,40,256], index: 5, kind: output, shape index: {}]
  %s6 = sld [smem:[#allocation0]]
  $region53: #{_level_forward.1} parent=0
    _
  %s8 = ssub.s32 1, %s6
  %s9 = scalar_select 0, %s8, %s6
  loop: start=0, step=1, limit=6
  $region2: #{_level_forward.1} parent=0 // loop_pre_header
    _
  $region3: #{_level_forward.1} parent=0 // loop_header
    %s11 = sphi 0, %s15
    %p12 = scmp.ge.s32.totalorder %s11, 6
    %s18 = sphi 0, %s30
    %s19 = sphi 0, %s26
    %s20 = sphi 0, %s18
    %s21 = sphi 0, %s19
    %s22 = sphi 0, %s20
    %s23 = sphi 0, %s21
    %s33 = sphi 0, %s35
    %s36 = sphi 0, %s33
    %s37 = sphi 0, %s36
    %s53 = sphi 0, %s37
    %s59 = sphi 0, %s61
    %s62 = sphi 0, %s59
    %s63 = sphi 0, %s62
    %s79 = sphi 0, %s63
    %s85 = sphi 0, %s87
    %s88 = sphi 0, %s85
    %s89 = sphi 0, %s88
    %s105 = sphi 0, %s89
    %s111 = sphi 0, %s113
    %s114 = sphi 0, %s111
    %s115 = sphi 0, %s114
    %s131 = sphi 0, %s115
    %s137 = sphi 0, %s139
    %s140 = sphi 0, %s137
    %s141 = sphi 0, %s140
    %s157 = sphi 0, %s141
    %s165 = sphi 0, %s167
    %s168 = sphi 0, %s165
    %s169 = sphi 0, %s168
    %s185 = sphi 0, %s169
  $region4: #{_level_forward.1} parent=0 // loop_header_branch
    %14 = sbr.rel (%p12) target = $region8
  $region5: #{_level_forward.1} parent=0 // loop_body
    %s16 = ssub.s32 %s11, 1
    %s17 = ssub.s32 %s11, 2
    %s24 = sadd.s32 1, %s19
    %p25 = scmp.ge.s32.totalorder %s24, 2
    %s26 = scalar_select %p25, 0, %s24
    %s27 = sadd.s32 1, %s18
    %s28 = scalar_select %p25, %s27, %s18
    %p29 = scmp.ge.s32.totalorder %s28, 2
    %s30 = scalar_select %p29, 0, %s28
    %s31 = ssub.s32 %s18, %s30
    %p32 = scmp.eq.s32.totalorder %s31, 0
    %s34 = sadd.s32 %s33, 1
    %s35 = scalar_select %p32, %s33, %s34
    %p38 = pneg %p32
    %p39 = scmp.eq.s32.totalorder %s11, 3
    %p40 = por %p38, %p39
    %p41 = scmp.ne.s32.totalorder %s33, %s36
    %p42 = scmp.eq.s32.totalorder %s11, 0
    %p43 = por %p41, %p42
    %p44 = scmp.ne.s32.totalorder %s33, %s36
    %p45 = scmp.eq.s32.totalorder %s16, 3
    %p46 = por %p44, %p45
    %p47 = scmp.ne.s32.totalorder %s36, %s37
    %p48 = scmp.eq.s32.totalorder %s16, 0
    %p49 = por %p47, %p48
    %p50 = scmp.ne.s32.totalorder %s36, %s37
    %p51 = scmp.eq.s32.totalorder %s17, 3
    %p52 = por %p50, %p51
    %p54 = scmp.ne.s32.totalorder %s37, %s53
    %p55 = scmp.eq.s32.totalorder %s17, 0
    %p56 = por %p54, %p55
    %s57 = ssub.s32 %s19, %s26
    %p58 = scmp.eq.s32.totalorder %s57, 0
    %s60 = sadd.s32 %s59, 1
    %s61 = scalar_select %p58, %s59, %s60
    %p64 = pneg %p58
    %p65 = scmp.eq.s32.totalorder %s11, 3
    %p66 = por %p64, %p65
    %p67 = scmp.ne.s32.totalorder %s59, %s62
    %p68 = scmp.eq.s32.totalorder %s11, 0
    %p69 = por %p67, %p68
    %p70 = scmp.ne.s32.totalorder %s59, %s62
    %p71 = scmp.eq.s32.totalorder %s16, 3
    %p72 = por %p70, %p71
    %p73 = scmp.ne.s32.totalorder %s62, %s63
    %p74 = scmp.eq.s32.totalorder %s16, 0
    %p75 = por %p73, %p74
    %p76 = scmp.ne.s32.totalorder %s62, %s63
    %p77 = scmp.eq.s32.totalorder %s17, 3
    %p78 = por %p76, %p77
    %p80 = scmp.ne.s32.totalorder %s63, %s79
    %p81 = scmp.eq.s32.totalorder %s17, 0
    %p82 = por %p80, %p81
    %s83 = ssub.s32 %s19, %s26
    %p84 = scmp.eq.s32.totalorder %s83, 0
    %s86 = sadd.s32 %s85, 1
    %s87 = scalar_select %p84, %s85, %s86
    %p90 = pneg %p84
    %p91 = scmp.eq.s32.totalorder %s11, 3
    %p92 = por %p90, %p91
    %p93 = scmp.ne.s32.totalorder %s85, %s88
    %p94 = scmp.eq.s32.totalorder %s11, 0
    %p95 = por %p93, %p94
    %p96 = scmp.ne.s32.totalorder %s85, %s88
    %p97 = scmp.eq.s32.totalorder %s16, 3
    %p98 = por %p96, %p97
    %p99 = scmp.ne.s32.totalorder %s88, %s89
    %p100 = scmp.eq.s32.totalorder %s16, 0
    %p101 = por %p99, %p100
    %p102 = scmp.ne.s32.totalorder %s88, %s89
    %p103 = scmp.eq.s32.totalorder %s17, 3
    %p104 = por %p102, %p103
    %p106 = scmp.ne.s32.totalorder %s89, %s105
    %p107 = scmp.eq.s32.totalorder %s17, 0
    %p108 = por %p106, %p107
    %s109 = ssub.s32 %s19, %s26
    %p110 = scmp.eq.s32.totalorder %s109, 0
    %s112 = sadd.s32 %s111, 1
    %s113 = scalar_select %p110, %s111, %s112
    %p116 = pneg %p110
    %p117 = scmp.eq.s32.totalorder %s11, 3
    %p118 = por %p116, %p117
    %p119 = scmp.ne.s32.totalorder %s111, %s114
    %p120 = scmp.eq.s32.totalorder %s11, 0
    %p121 = por %p119, %p120
    %p122 = scmp.ne.s32.totalorder %s111, %s114
    %p123 = scmp.eq.s32.totalorder %s16, 3
    %p124 = por %p122, %p123
    %p125 = scmp.ne.s32.totalorder %s114, %s115
    %p126 = scmp.eq.s32.totalorder %s16, 0
    %p127 = por %p125, %p126
    %p128 = scmp.ne.s32.totalorder %s114, %s115
    %p129 = scmp.eq.s32.totalorder %s17, 3
    %p130 = por %p128, %p129
    %p132 = scmp.ne.s32.totalorder %s115, %s131
    %p133 = scmp.eq.s32.totalorder %s17, 0
    %p134 = por %p132, %p133
    %s135 = ssub.s32 %s19, %s26
    %p136 = scmp.eq.s32.totalorder %s135, 0
    %s138 = sadd.s32 %s137, 1
    %s139 = scalar_select %p136, %s137, %s138
    %p142 = pneg %p136
    %p143 = scmp.eq.s32.totalorder %s11, 3
    %p144 = por %p142, %p143
    %p145 = scmp.ne.s32.totalorder %s137, %s140
    %p146 = scmp.eq.s32.totalorder %s11, 0
    %p147 = por %p145, %p146
    %p148 = scmp.ne.s32.totalorder %s137, %s140
    %p149 = scmp.eq.s32.totalorder %s16, 3
    %p150 = por %p148, %p149
    %p151 = scmp.ne.s32.totalorder %s140, %s141
    %p152 = scmp.eq.s32.totalorder %s16, 0
    %p153 = por %p151, %p152
    %p154 = scmp.ne.s32.totalorder %s140, %s141
    %p155 = scmp.eq.s32.totalorder %s17, 3
    %p156 = por %p154, %p155
    %p158 = scmp.ne.s32.totalorder %s141, %s157
    %p159 = scmp.eq.s32.totalorder %s17, 0
    %p160 = por %p158, %p159
    %s161 = ssub.s32 %s18, %s30
    %s162 = ssub.s32 %s19, %s26
    %s163 = sor.u32 %s161, %s162
    %p164 = scmp.eq.s32.totalorder %s163, 0
    %s166 = sadd.s32 %s165, 1
    %s167 = scalar_select %p164, %s165, %s166
    %p170 = pneg %p164
    %p171 = scmp.eq.s32.totalorder %s11, 3
    %p172 = por %p170, %p171
    %p173 = scmp.ne.s32.totalorder %s165, %s168
    %p174 = scmp.eq.s32.totalorder %s11, 0
    %p175 = por %p173, %p174
    %p176 = scmp.ne.s32.totalorder %s165, %s168
    %p177 = scmp.eq.s32.totalorder %s16, 3
    %p178 = por %p176, %p177
    %p179 = scmp.ne.s32.totalorder %s168, %s169
    %p180 = scmp.eq.s32.totalorder %s16, 0
    %p181 = por %p179, %p180
    %p182 = scmp.ne.s32.totalorder %s168, %s169
    %p183 = scmp.eq.s32.totalorder %s17, 3
    %p184 = por %p182, %p183
    %p186 = scmp.ne.s32.totalorder %s169, %s185
    %p187 = scmp.eq.s32.totalorder %s17, 0
    %p188 = por %p186, %p187
    %p189 = scmp.le.s32.totalorder 1, %s11
    %p190 = scmp.lt.s32.totalorder %s11, 5
    %p191 = pnand %p189, %p190
    %p192 = pneg %p191
    // Predicated region
    $region9: #{_level_forward.1} parent=5 // pred_check
      _
    $region10: #{_level_forward.1} parent=5 // pred_check_branch
      %194 = sbr.rel (%p191) target = $region12
    $region11: #{_level_forward.1} parent=5 // pred_region
      %s195 = ssub.s32 %s11, 1
    $region12: #{_level_forward.1} parent=5 // pred_fallthru
      _
    %p196 = scmp.lt.s32.totalorder %s11, 4
    // Predicated region
    $region13: #{_level_forward.1} parent=5 // pred_check
      %p197 = pneg %p196
    $region14: #{_level_forward.1} parent=5 // pred_check_branch
      %199 = sbr.rel (%p197) target = $region16
    $region15: #{_level_forward.1} parent=5 // pred_region
      // Predicated region
      $region17: #{_level_forward.1} parent=15 // pred_check
        %p200 = pneg %p43
      $region18: #{_level_forward.1} parent=15 // pred_check_branch
        %202 = sbr.rel (%p200) target = $region20
      $region19: #{_level_forward.1} parent=15 // pred_region
        %p203 = scmp.lt.s32.totalorder %s18, 1
        %s204 = scalar_select %p203, %s18, 1
        %s205 = smul.addr %s204, 8
        %s206 = smul.addr %s205, 8
        %s207 = scalar_lea.vmem %s0, %s206
      $region20: #{_level_forward.1} parent=15 // pred_fallthru
        _
      // Predicated region
      $region21: #{_level_forward.1} parent=15 // pred_check
        %p208 = pneg %p69
      $region22: #{_level_forward.1} parent=15 // pred_check_branch
        %210 = sbr.rel (%p208) target = $region24
      $region23: #{_level_forward.1} parent=15 // pred_region
        %p211 = scmp.lt.s32.totalorder %s19, 1
        %s212 = scalar_select %p211, %s19, 1
        %s213 = smul.addr %s212, 48
        %s214 = smul.addr %s213, 4
        %s215 = scalar_lea.vmem %s1, %s214
      $region24: #{_level_forward.1} parent=15 // pred_fallthru
        _
      // Predicated region
      $region25: #{_level_forward.1} parent=15 // pred_check
        %p216 = pneg %p95
      $region26: #{_level_forward.1} parent=15 // pred_check_branch
        %218 = sbr.rel (%p216) target = $region28
      $region27: #{_level_forward.1} parent=15 // pred_region
        %p219 = scmp.lt.s32.totalorder %s19, 1
        %s220 = scalar_select %p219, %s19, 1
        %s221 = smul.addr %s220, 16
        %s222 = smul.addr %s221, 8
        %s223 = scalar_lea.vmem %s2, %s222
      $region28: #{_level_forward.1} parent=15 // pred_fallthru
        _
      // Predicated region
      $region29: #{_level_forward.1} parent=15 // pred_check
        %p224 = pneg %p121
      $region30: #{_level_forward.1} parent=15 // pred_check_branch
        %226 = sbr.rel (%p224) target = $region32
      $region31: #{_level_forward.1} parent=15 // pred_region
        %p227 = scmp.lt.s32.totalorder %s19, 1
        %s228 = scalar_select %p227, %s19, 1
        %s229 = smul.addr %s228, 15
        %s230 = smul.addr %s229, 4
        %s231 = scalar_lea.vmem %s3, %s230
      $region32: #{_level_forward.1} parent=15 // pred_fallthru
        _
      // Predicated region
      $region33: #{_level_forward.1} parent=15 // pred_check
        %p232 = pneg %p147
      $region34: #{_level_forward.1} parent=15 // pred_check_branch
        %234 = sbr.rel (%p232) target = $region36
      $region35: #{_level_forward.1} parent=15 // pred_region
        %p235 = scmp.lt.s32.totalorder %s19, 1
        %s236 = scalar_select %p235, %s19, 1
        %s237 = smul.addr %s236, 5
        %s238 = smul.addr %s237, 8
        %s239 = scalar_lea.vmem %s4, %s238
      $region36: #{_level_forward.1} parent=15 // pred_fallthru
        _
    $region16: #{_level_forward.1} parent=5 // pred_fallthru
      _
    %p240 = scmp.le.s32.totalorder 1, %s11
    %p241 = scmp.lt.s32.totalorder %s11, 5
    %p242 = pnand %p240, %p241
    %p243 = pneg %p242
    // Predicated region
    $region37: #{_level_forward.1} parent=5 // pred_check
      _
    $region38: #{_level_forward.1} parent=5 // pred_check_branch
      %245 = sbr.rel (%p242) target = $region40
    $region39: #{_level_forward.1} parent=5 // pred_region
      %s246 = ssub.s32 %s11, 1
      %p247 = scmp.lt.s32.totalorder %s20, 1
      %s248 = scalar_select %p247, %s20, 1
      %s249 = smul.addr %s248, 8
      %s250 = smul.addr %s249, 8
      %s251 = scalar_lea.vmem %s0, %s250
      %p252 = pneg %p49
      %p253 = pneg %p46
      %p254 = scmp.lt.s32.totalorder %s21, 1
      %s255 = scalar_select %p254, %s21, 1
      %s256 = smul.addr %s255, 48
      %s257 = smul.addr %s256, 4
      %s258 = scalar_lea.vmem %s1, %s257
      %p259 = pneg %p75
      %p260 = pneg %p72
      %p261 = scmp.lt.s32.totalorder %s21, 1
      %s262 = scalar_select %p261, %s21, 1
      %s263 = smul.addr %s262, 16
      %s264 = smul.addr %s263, 8
      %s265 = scalar_lea.vmem %s2, %s264
      %p266 = pneg %p101
      %p267 = pneg %p98
      %p268 = scmp.lt.s32.totalorder %s21, 1
      %s269 = scalar_select %p268, %s21, 1
      %s270 = smul.addr %s269, 15
      %s271 = smul.addr %s270, 4
      %s272 = scalar_lea.vmem %s3, %s271
      %p273 = pneg %p127
      %p274 = pneg %p124
      %p275 = scmp.lt.s32.totalorder %s21, 1
      %s276 = scalar_select %p275, %s21, 1
      %s277 = smul.addr %s276, 5
      %s278 = smul.addr %s277, 8
      %s279 = scalar_lea.vmem %s4, %s278
      %p280 = pneg %p153
      %p281 = pneg %p150
      %p282 = pneg %p181
      %p283 = pneg %p178
      %p284 = scmp.lt.s32.totalorder %s20, 1
      %s285 = scalar_select %p284, %s20, 1
      %p286 = scmp.lt.s32.totalorder %s21, 1
      %s287 = scalar_select %p286, %s21, 1
      %s288 = smul.addr %s287, 10
      %s289 = smul.addr %s285, 20
      %s290 = sadd.s32 %s288, %s289
      %s291 = smul.addr %s290, 8
      %s292 = scalar_lea.vmem %s5, %s291
      %p293 = scmp.lt.s32.totalorder %s20, 1
      %s294 = scalar_select %p293, %s20, 1
      %s295 = smul.addr %s294, 8
      %s296 = smul.addr %s295, 8
      %s297 = scalar_lea.vmem %s0, %s296
      %p298 = scmp.lt.s32.totalorder %s21, 1
      %s299 = scalar_select %p298, %s21, 1
      %s300 = smul.addr %s299, 48
      %s301 = smul.addr %s300, 4
      %s302 = scalar_lea.vmem %s1, %s301
      %p303 = scmp.lt.s32.totalorder %s21, 1
      %s304 = scalar_select %p303, %s21, 1
      %s305 = smul.addr %s304, 16
      %s306 = smul.addr %s305, 8
      %s307 = scalar_lea.vmem %s2, %s306
      %p308 = scmp.lt.s32.totalorder %s21, 1
      %s309 = scalar_select %p308, %s21, 1
      %s310 = smul.addr %s309, 15
      %s311 = smul.addr %s310, 4
      %s312 = scalar_lea.vmem %s3, %s311
      %p313 = scmp.lt.s32.totalorder %s21, 1
      %s314 = scalar_select %p313, %s21, 1
      %s315 = smul.addr %s314, 5
      %s316 = smul.addr %s315, 8
      %s317 = scalar_lea.vmem %s4, %s316
      %p318 = scmp.lt.s32.totalorder %s20, 1
      %s319 = scalar_select %p318, %s20, 1
      %p320 = scmp.lt.s32.totalorder %s21, 1
      %s321 = scalar_select %p320, %s21, 1
      %s322 = smul.addr %s321, 10
      %s323 = smul.addr %s319, 20
      %s324 = sadd.s32 %s322, %s323
      %s325 = smul.addr %s324, 8
      %s326 = scalar_lea.vmem %s5, %s325
      %v328 = vlaneseq
      %v329 = vand.u32 %v328, 127
      %v330 = vadd.s32 %v329, 128
      %vm331 = vcmp.lt.s32.totalorder %v329, 0
      %v332 = vsub.s32 0, %v329
      %v333 = vsel %vm331, %v332, %v329
      %v334 = vshrl.u32 %v333, 4
      %v335 = vand.u32 %v333, 15
      %v336 = vsub.s32 0, %v335
      %v337 = vsel %vm331, %v336, %v335
      %vm338 = vcmp.lt.s32.totalorder %v330, 0
      %v339 = vsub.s32 0, %v330
      %v340 = vsel %vm338, %v339, %v330
      %v341 = vshrl.u32 %v340, 4
      %v342 = vand.u32 %v340, 15
      %v343 = vsub.s32 0, %v342
      %v344 = vsel %vm338, %v343, %v342
      %vm345 = vcmp.ne.s32.totalorder %v337, 0
      %vm346 = vcmp.ne.s32.totalorder %v344, 0
      %vm347 = vcmp.lt.s32.totalorder %v337, 0
      %vm348 = vcmp.lt.s32.totalorder %v344, 0
      %vm349 = vmand %vm347, %vm345
      %vm350 = vmand %vm348, %vm346
      %v351 = vadd.s32 %v337, 16
      %v352 = vadd.s32 %v344, 16
      %v353 = vsel %vm349, %v351, %v337
      %v354 = vsel %vm350, %v352, %v344
      %vm355 = vcmp.ge.s32.totalorder %v353, 1
      %vm356 = vcmp.ge.s32.totalorder %v354, 1
      %vm357 = vcmp.lt.s32.totalorder %v353, 15
      %vm358 = vcmp.lt.s32.totalorder %v354, 15
      %v359 = vld [vmem:[%s297] sm:$0xff]
      %v360 = vld [vmem:[%s297 + $0x8] sm:$0xff]
      %v361 = vld [vmem:[%s297 + $0x10] sm:$0xff]
      %v362 = vld [vmem:[%s297 + $0x18] sm:$0xff]
      %v363 = vld [vmem:[%s297 + $0x20] sm:$0xff]
      %v364 = vld [vmem:[%s297 + $0x28] sm:$0xff]
      %v365 = vld [vmem:[%s297 + $0x30] sm:$0xff]
      %v366 = vld [vmem:[%s297 + $0x38] sm:$0xff]
      %375 = vrot.lane.b32.xlu0 %v359, 17
      %v376 = vpop.permute.xlu0 %375
      %377 = vrot.lane.b32.xlu0 %v360, 17
      %v378 = vpop.permute.xlu0 %377
      %379 = vrot.lane.b32.xlu0 %v361, 17
      %v380 = vpop.permute.xlu0 %379
      %381 = vrot.lane.b32.xlu0 %v362, 17
      %v382 = vpop.permute.xlu0 %381
      %383 = vrot.lane.b32.xlu0 %v363, 17
      %v384 = vpop.permute.xlu0 %383
      %385 = vrot.lane.b32.xlu0 %v364, 17
      %v386 = vpop.permute.xlu0 %385
      %387 = vrot.lane.b32.xlu0 %v365, 17
      %v388 = vpop.permute.xlu0 %387
      %389 = vrot.lane.b32.xlu0 %v366, 17
      %v390 = vpop.permute.xlu0 %389
      %vm391 = vcmask 138240
      %v392 = vsel %vm391, %v376, %v378
      %v393 = vsel %vm391, %v380, %v382
      %v394 = vsel %vm391, %v384, %v386
      %v395 = vsel %vm391, %v388, %v390
      %v408 = vsel %vm391, 0.0, %v376
      %v409 = vsel %vm391, 0.0, %v380
      %v410 = vsel %vm391, 0.0, %v384
      %v411 = vsel %vm391, 0.0, %v388
      %v412 = vsel %vm391, %v378, 0.0
      %v413 = vsel %vm391, %v382, 0.0
      %v414 = vsel %vm391, %v386, 0.0
      %v415 = vsel %vm391, %v390, 0.0
      %v416 = vsel %vm355, %v408, 0.0
      %v417 = vsel %vm356, %v392, 0.0
      %v418 = vsel %vm355, %v409, 0.0
      %v419 = vsel %vm356, %v393, 0.0
      %v420 = vsel %vm355, %v410, 0.0
      %v421 = vsel %vm356, %v394, 0.0
      %v422 = vsel %vm355, %v411, 0.0
      %v423 = vsel %vm356, %v395, 0.0
      %v424 = vpack.c.bf16 %v418, %v416
      %v425 = vpack.c.bf16 %v419, %v417
      %v426 = vpack.c.bf16 %v422, %v420
      %v427 = vpack.c.bf16 %v423, %v421
      %428 = vst [vmem:[#allocation2] sm:$0xff] %v424
      %429 = vst [vmem:[#allocation2 + $0x8] sm:$0xff] %v425
      %430 = vst [vmem:[#allocation2 + $0x10] sm:$0xff] %v426
      %431 = vst [vmem:[#allocation2 + $0x18] sm:$0xff] %v427
      %v432 = vpack.c.bf16 %v409, %v408
      %v433 = vpack.c.bf16 %v393, %v392
      %v434 = vpack.c.bf16 %v413, %v412
      %v435 = vpack.c.bf16 %v411, %v410
      %v436 = vpack.c.bf16 %v395, %v394
      %v437 = vpack.c.bf16 %v415, %v414
      %444 = vrot.lane.b32.xlu0 %v432, 127
      %v445 = vpop.permute.xlu0 %444
      %446 = vrot.lane.b32.xlu0 %v433, 127
      %v447 = vpop.permute.xlu0 %446
      %448 = vrot.lane.b32.xlu0 %v434, 127
      %v449 = vpop.permute.xlu0 %448
      %450 = vrot.lane.b32.xlu0 %v435, 127
      %v451 = vpop.permute.xlu0 %450
      %452 = vrot.lane.b32.xlu0 %v436, 127
      %v453 = vpop.permute.xlu0 %452
      %454 = vrot.lane.b32.xlu0 %v437, 127
      %v455 = vpop.permute.xlu0 %454
      %vm456 = vcmask 1039360
      %v457 = vsel %vm456, %v445, %v447
      %v458 = vsel %vm456, %v447, %v449
      %v459 = vsel %vm456, %v451, %v453
      %v460 = vsel %vm456, %v453, %v455
      %465 = vst [vmem:[#allocation2 + $0x20] sm:$0xff] %v457
      %466 = vst [vmem:[#allocation2 + $0x28] sm:$0xff] %v458
      %467 = vst [vmem:[#allocation2 + $0x30] sm:$0xff] %v459
      %468 = vst [vmem:[#allocation2 + $0x38] sm:$0xff] %v460
      %477 = vrot.lane.b32.xlu0 %v408, 126
      %v478 = vpop.permute.xlu0 %477
      %479 = vrot.lane.b32.xlu0 %v392, 126
      %v480 = vpop.permute.xlu0 %479
      %481 = vrot.lane.b32.xlu0 %v412, 126
      %v482 = vpop.permute.xlu0 %481
      %483 = vrot.lane.b32.xlu0 %v409, 126
      %v484 = vpop.permute.xlu0 %483
      %485 = vrot.lane.b32.xlu0 %v393, 126
      %v486 = vpop.permute.xlu0 %485
      %487 = vrot.lane.b32.xlu0 %v413, 126
      %v488 = vpop.permute.xlu0 %487
      %489 = vrot.lane.b32.xlu0 %v410, 126
      %v490 = vpop.permute.xlu0 %489
      %491 = vrot.lane.b32.xlu0 %v394, 126
      %v492 = vpop.permute.xlu0 %491
      %493 = vrot.lane.b32.xlu0 %v414, 126
      %v494 = vpop.permute.xlu0 %493
      %495 = vrot.lane.b32.xlu0 %v411, 126
      %v496 = vpop.permute.xlu0 %495
      %497 = vrot.lane.b32.xlu0 %v395, 126
      %v498 = vpop.permute.xlu0 %497
      %499 = vrot.lane.b32.xlu0 %v415, 126
      %v500 = vpop.permute.xlu0 %499
      %vm501 = vcmask 1031168
      %v502 = vsel %vm501, %v478, %v480
      %v503 = vsel %vm501, %v480, %v482
      %v504 = vsel %vm501, %v484, %v486
      %v505 = vsel %vm501, %v486, %v488
      %v506 = vsel %vm501, %v490, %v492
      %v507 = vsel %vm501, %v492, %v494
      %v508 = vsel %vm501, %v496, %v498
      %v509 = vsel %vm501, %v498, %v500
      %v518 = vsel %vm357, %v502, 0.0
      %v519 = vsel %vm358, %v503, 0.0
      %v520 = vsel %vm357, %v504, 0.0
      %v521 = vsel %vm358, %v505, 0.0
      %v522 = vsel %vm357, %v506, 0.0
      %v523 = vsel %vm358, %v507, 0.0
      %v524 = vsel %vm357, %v508, 0.0
      %v525 = vsel %vm358, %v509, 0.0
      %v526 = vpack.c.bf16 %v520, %v518
      %v527 = vpack.c.bf16 %v521, %v519
      %v528 = vpack.c.bf16 %v524, %v522
      %v529 = vpack.c.bf16 %v525, %v523
      %530 = vst [vmem:[#allocation2 + $0x40] sm:$0xff] %v526
      %531 = vst [vmem:[#allocation2 + $0x48] sm:$0xff] %v527
      %532 = vst [vmem:[#allocation2 + $0x50] sm:$0xff] %v528
      %533 = vst [vmem:[#allocation2 + $0x58] sm:$0xff] %v529
      %534 = vrot.lane.b32.xlu0 %v408, 112
      %v535 = vpop.permute.xlu0 %534
      %536 = vrot.lane.b32.xlu0 %v392, 112
      %v537 = vpop.permute.xlu0 %536
      %538 = vrot.lane.b32.xlu0 %v412, 112
      %v539 = vpop.permute.xlu0 %538
      %540 = vrot.lane.b32.xlu0 %v409, 112
      %v541 = vpop.permute.xlu0 %540
      %542 = vrot.lane.b32.xlu0 %v393, 112
      %v543 = vpop.permute.xlu0 %542
      %544 = vrot.lane.b32.xlu0 %v413, 112
      %v545 = vpop.permute.xlu0 %544
      %546 = vrot.lane.b32.xlu0 %v410, 112
      %v547 = vpop.permute.xlu0 %546
      %548 = vrot.lane.b32.xlu0 %v394, 112
      %v549 = vpop.permute.xlu0 %548
      %550 = vrot.lane.b32.xlu0 %v414, 112
      %v551 = vpop.permute.xlu0 %550
      %552 = vrot.lane.b32.xlu0 %v411, 112
      %v553 = vpop.permute.xlu0 %552
      %554 = vrot.lane.b32.xlu0 %v395, 112
      %v555 = vpop.permute.xlu0 %554
      %556 = vrot.lane.b32.xlu0 %v415, 112
      %v557 = vpop.permute.xlu0 %556
      %vm558 = vcmask 916480
      %v559 = vsel %vm558, %v535, %v537
      %v560 = vsel %vm558, %v537, %v539
      %v561 = vsel %vm558, %v541, %v543
      %v562 = vsel %vm558, %v543, %v545
      %v563 = vsel %vm558, %v547, %v549
      %v564 = vsel %vm558, %v549, %v551
      %v565 = vsel %vm558, %v553, %v555
      %v566 = vsel %vm558, %v555, %v557
      %v575 = vsel %vm355, %v559, 0.0
      %v576 = vsel %vm356, %v560, 0.0
      %v577 = vsel %vm355, %v561, 0.0
      %v578 = vsel %vm356, %v562, 0.0
      %v579 = vsel %vm355, %v563, 0.0
      %v580 = vsel %vm356, %v564, 0.0
      %v581 = vsel %vm355, %v565, 0.0
      %v582 = vsel %vm356, %v566, 0.0
      %v583 = vpack.c.bf16 %v577, %v575
      %v584 = vpack.c.bf16 %v578, %v576
      %v585 = vpack.c.bf16 %v581, %v579
      %v586 = vpack.c.bf16 %v582, %v580
      %587 = vst [vmem:[#allocation2 + $0x60] sm:$0xff] %v583
      %588 = vst [vmem:[#allocation2 + $0x68] sm:$0xff] %v584
      %589 = vst [vmem:[#allocation2 + $0x70] sm:$0xff] %v585
      %590 = vst [vmem:[#allocation2 + $0x78] sm:$0xff] %v586
      %591 = vrot.lane.b32.xlu0 %v432, 111
      %v592 = vpop.permute.xlu0 %591
      %593 = vrot.lane.b32.xlu0 %v433, 111
      %v594 = vpop.permute.xlu0 %593
      %595 = vrot.lane.b32.xlu0 %v434, 111
      %v596 = vpop.permute.xlu0 %595
      %597 = vrot.lane.b32.xlu0 %v435, 111
      %v598 = vpop.permute.xlu0 %597
      %599 = vrot.lane.b32.xlu0 %v436, 111
      %v600 = vpop.permute.xlu0 %599
      %601 = vrot.lane.b32.xlu0 %v437, 111
      %v602 = vpop.permute.xlu0 %601
      %vm603 = vcmask 908288
      %v604 = vsel %vm603, %v592, %v594
      %v605 = vsel %vm603, %v594, %v596
      %v606 = vsel %vm603, %v598, %v600
      %v607 = vsel %vm603, %v600, %v602
      %612 = vst [vmem:[#allocation2 + $0x80] sm:$0xff] %v604
      %613 = vst [vmem:[#allocation2 + $0x88] sm:$0xff] %v605
      %614 = vst [vmem:[#allocation2 + $0x90] sm:$0xff] %v606
      %615 = vst [vmem:[#allocation2 + $0x98] sm:$0xff] %v607
      %616 = vrot.lane.b32.xlu0 %v408, 110
      %v617 = vpop.permute.xlu0 %616
      %618 = vrot.lane.b32.xlu0 %v392, 110
      %v619 = vpop.permute.xlu0 %618
      %620 = vrot.lane.b32.xlu0 %v412, 110
      %v621 = vpop.permute.xlu0 %620
      %622 = vrot.lane.b32.xlu0 %v409, 110
      %v623 = vpop.permute.xlu0 %622
      %624 = vrot.lane.b32.xlu0 %v393, 110
      %v625 = vpop.permute.xlu0 %624
      %626 = vrot.lane.b32.xlu0 %v413, 110
      %v627 = vpop.permute.xlu0 %626
      %628 = vrot.lane.b32.xlu0 %v410, 110
      %v629 = vpop.permute.xlu0 %628
      %630 = vrot.lane.b32.xlu0 %v394, 110
      %v631 = vpop.permute.xlu0 %630
      %632 = vrot.lane.b32.xlu0 %v414, 110
      %v633 = vpop.permute.xlu0 %632
      %634 = vrot.lane.b32.xlu0 %v411, 110
      %v635 = vpop.permute.xlu0 %634
      %636 = vrot.lane.b32.xlu0 %v395, 110
      %v637 = vpop.permute.xlu0 %636
      %638 = vrot.lane.b32.xlu0 %v415, 110
      %v639 = vpop.permute.xlu0 %638
      %vm640 = vcmask 900096
      %v641 = vsel %vm640, %v617, %v619
      %v642 = vsel %vm640, %v619, %v621
      %v643 = vsel %vm640, %v623, %v625
      %v644 = vsel %vm640, %v625, %v627
      %v645 = vsel %vm640, %v629, %v631
      %v646 = vsel %vm640, %v631, %v633
      %v647 = vsel %vm640, %v635, %v637
      %v648 = vsel %vm640, %v637, %v639
      %v657 = vsel %vm357, %v641, 0.0
      %v658 = vsel %vm358, %v642, 0.0
      %v659 = vsel %vm357, %v643, 0.0
      %v660 = vsel %vm358, %v644, 0.0
      %v661 = vsel %vm357, %v645, 0.0
      %v662 = vsel %vm358, %v646, 0.0
      %v663 = vsel %vm357, %v647, 0.0
      %v664 = vsel %vm358, %v648, 0.0
      %v665 = vpack.c.bf16 %v659, %v657
      %v666 = vpack.c.bf16 %v660, %v658
      %v667 = vpack.c.bf16 %v663, %v661
      %v668 = vpack.c.bf16 %v664, %v662
      %669 = vst [vmem:[#allocation2 + $0xa0] sm:$0xff] %v665
      %670 = vst [vmem:[#allocation2 + $0xa8] sm:$0xff] %v666
      %671 = vst [vmem:[#allocation2 + $0xb0] sm:$0xff] %v667
      %672 = vst [vmem:[#allocation2 + $0xb8] sm:$0xff] %v668
      %673 = vrot.lane.b32.xlu0 %v408, 96
      %v674 = vpop.permute.xlu0 %673
      %675 = vrot.lane.b32.xlu0 %v392, 96
      %v676 = vpop.permute.xlu0 %675
      %677 = vrot.lane.b32.xlu0 %v412, 96
      %v678 = vpop.permute.xlu0 %677
      %679 = vrot.lane.b32.xlu0 %v409, 96
      %v680 = vpop.permute.xlu0 %679
      %681 = vrot.lane.b32.xlu0 %v393, 96
      %v682 = vpop.permute.xlu0 %681
      %683 = vrot.lane.b32.xlu0 %v413, 96
      %v684 = vpop.permute.xlu0 %683
      %685 = vrot.lane.b32.xlu0 %v410, 96
      %v686 = vpop.permute.xlu0 %685
      %687 = vrot.lane.b32.xlu0 %v394, 96
      %v688 = vpop.permute.xlu0 %687
      %689 = vrot.lane.b32.xlu0 %v414, 96
      %v690 = vpop.permute.xlu0 %689
      %691 = vrot.lane.b32.xlu0 %v411, 96
      %v692 = vpop.permute.xlu0 %691
      %693 = vrot.lane.b32.xlu0 %v395, 96
      %v694 = vpop.permute.xlu0 %693
      %695 = vrot.lane.b32.xlu0 %v415, 96
      %v696 = vpop.permute.xlu0 %695
      %vm697 = vcmask 785408
      %v698 = vsel %vm697, %v674, %v676
      %v699 = vsel %vm697, %v676, %v678
      %v700 = vsel %vm697, %v680, %v682
      %v701 = vsel %vm697, %v682, %v684
      %v702 = vsel %vm697, %v686, %v688
      %v703 = vsel %vm697, %v688, %v690
      %v704 = vsel %vm697, %v692, %v694
      %v705 = vsel %vm697, %v694, %v696
      %v714 = vsel %vm355, %v698, 0.0
      %v715 = vsel %vm356, %v699, 0.0
      %v716 = vsel %vm355, %v700, 0.0
      %v717 = vsel %vm356, %v701, 0.0
      %v718 = vsel %vm355, %v702, 0.0
      %v719 = vsel %vm356, %v703, 0.0
      %v720 = vsel %vm355, %v704, 0.0
      %v721 = vsel %vm356, %v705, 0.0
      %v722 = vpack.c.bf16 %v716, %v714
      %v723 = vpack.c.bf16 %v717, %v715
      %v724 = vpack.c.bf16 %v720, %v718
      %v725 = vpack.c.bf16 %v721, %v719
      %726 = vst [vmem:[#allocation2 + $0xc0] sm:$0xff] %v722
      %727 = vst [vmem:[#allocation2 + $0xc8] sm:$0xff] %v723
      %728 = vst [vmem:[#allocation2 + $0xd0] sm:$0xff] %v724
      %729 = vst [vmem:[#allocation2 + $0xd8] sm:$0xff] %v725
      %730 = vrot.lane.b32.xlu0 %v432, 95
      %v731 = vpop.permute.xlu0 %730
      %732 = vrot.lane.b32.xlu0 %v433, 95
      %v733 = vpop.permute.xlu0 %732
      %734 = vrot.lane.b32.xlu0 %v434, 95
      %v735 = vpop.permute.xlu0 %734
      %736 = vrot.lane.b32.xlu0 %v435, 95
      %v737 = vpop.permute.xlu0 %736
      %738 = vrot.lane.b32.xlu0 %v436, 95
      %v739 = vpop.permute.xlu0 %738
      %740 = vrot.lane.b32.xlu0 %v437, 95
      %v741 = vpop.permute.xlu0 %740
      %vm742 = vcmask 777216
      %v743 = vsel %vm742, %v731, %v733
      %v744 = vsel %vm742, %v733, %v735
      %v745 = vsel %vm742, %v737, %v739
      %v746 = vsel %vm742, %v739, %v741
      %751 = vst [vmem:[#allocation2 + $0xe0] sm:$0xff] %v743
      %752 = vst [vmem:[#allocation2 + $0xe8] sm:$0xff] %v744
      %753 = vst [vmem:[#allocation2 + $0xf0] sm:$0xff] %v745
      %754 = vst [vmem:[#allocation2 + $0xf8] sm:$0xff] %v746
      %755 = vrot.lane.b32.xlu0 %v408, 94
      %v756 = vpop.permute.xlu0 %755
      %757 = vrot.lane.b32.xlu0 %v392, 94
      %v758 = vpop.permute.xlu0 %757
      %759 = vrot.lane.b32.xlu0 %v412, 94
      %v760 = vpop.permute.xlu0 %759
      %761 = vrot.lane.b32.xlu0 %v409, 94
      %v762 = vpop.permute.xlu0 %761
      %763 = vrot.lane.b32.xlu0 %v393, 94
      %v764 = vpop.permute.xlu0 %763
      %765 = vrot.lane.b32.xlu0 %v413, 94
      %v766 = vpop.permute.xlu0 %765
      %767 = vrot.lane.b32.xlu0 %v410, 94
      %v768 = vpop.permute.xlu0 %767
      %769 = vrot.lane.b32.xlu0 %v394, 94
      %v770 = vpop.permute.xlu0 %769
      %771 = vrot.lane.b32.xlu0 %v414, 94
      %v772 = vpop.permute.xlu0 %771
      %773 = vrot.lane.b32.xlu0 %v411, 94
      %v774 = vpop.permute.xlu0 %773
      %775 = vrot.lane.b32.xlu0 %v395, 94
      %v776 = vpop.permute.xlu0 %775
      %777 = vrot.lane.b32.xlu0 %v415, 94
      %v778 = vpop.permute.xlu0 %777
      %vm779 = vcmask 769024
      %v780 = vsel %vm779, %v756, %v758
      %v781 = vsel %vm779, %v758, %v760
      %v782 = vsel %vm779, %v762, %v764
      %v783 = vsel %vm779, %v764, %v766
      %v784 = vsel %vm779, %v768, %v770
      %v785 = vsel %vm779, %v770, %v772
      %v786 = vsel %vm779, %v774, %v776
      %v787 = vsel %vm779, %v776, %v778
      %v796 = vsel %vm357, %v780, 0.0
      %v797 = vsel %vm358, %v781, 0.0
      %v798 = vsel %vm357, %v782, 0.0
      %v799 = vsel %vm358, %v783, 0.0
      %v800 = vsel %vm357, %v784, 0.0
      %v801 = vsel %vm358, %v785, 0.0
      %v802 = vsel %vm357, %v786, 0.0
      %v803 = vsel %vm358, %v787, 0.0
      %v804 = vpack.c.bf16 %v798, %v796
      %v805 = vpack.c.bf16 %v799, %v797
      %v806 = vpack.c.bf16 %v802, %v800
      %v807 = vpack.c.bf16 %v803, %v801
      %808 = vst [vmem:[#allocation2 + $0x100] sm:$0xff] %v804
      %809 = vst [vmem:[#allocation2 + $0x108] sm:$0xff] %v805
      %810 = vst [vmem:[#allocation2 + $0x110] sm:$0xff] %v806
      %811 = vst [vmem:[#allocation2 + $0x118] sm:$0xff] %v807
      %v812 = vld [vmem:[%s302] sm:$0xff]
      %v813 = vld [vmem:[%s302 + $0x8] sm:$0xf]
      %v814 = vld [vmem:[%s302 + $0xc] sm:$0xff]
      %v815 = vld [vmem:[%s302 + $0x14] sm:$0xf]
      %v816 = vld [vmem:[%s302 + $0x18] sm:$0xff]
      %v817 = vld [vmem:[%s302 + $0x20] sm:$0xf]
      %v818 = vld [vmem:[%s302 + $0x24] sm:$0xff]
      %v819 = vld [vmem:[%s302 + $0x2c] sm:$0xf]
      %v820 = vld [vmem:[#allocation2] sm:$0xff]
      %v821 = vld [vmem:[#allocation2 + $0x8] sm:$0xff]
      %v822 = vld [vmem:[#allocation2 + $0x10] sm:$0xff]
      %v823 = vld [vmem:[#allocation2 + $0x18] sm:$0xff]
      %v824 = vld [vmem:[#allocation2 + $0x20] sm:$0xff]
      %v825 = vld [vmem:[#allocation2 + $0x28] sm:$0xff]
      %v826 = vld [vmem:[#allocation2 + $0x30] sm:$0xff]
      %v827 = vld [vmem:[#allocation2 + $0x38] sm:$0xff]
      %v828 = vld [vmem:[#allocation2 + $0x40] sm:$0xff]
      %v829 = vld [vmem:[#allocation2 + $0x48] sm:$0xff]
      %v830 = vld [vmem:[#allocation2 + $0x50] sm:$0xff]
      %v831 = vld [vmem:[#allocation2 + $0x58] sm:$0xff]
      %v832 = vld [vmem:[#allocation2 + $0x60] sm:$0xff]
      %v833 = vld [vmem:[#allocation2 + $0x68] sm:$0xff]
      %v834 = vld [vmem:[#allocation2 + $0x70] sm:$0xff]
      %v835 = vld [vmem:[#allocation2 + $0x78] sm:$0xff]
      %v836 = vld [vmem:[#allocation2 + $0x80] sm:$0xff]
      %v837 = vld [vmem:[#allocation2 + $0x88] sm:$0xff]
      %v838 = vld [vmem:[#allocation2 + $0x90] sm:$0xff]
      %v839 = vld [vmem:[#allocation2 + $0x98] sm:$0xff]
      %v840 = vld [vmem:[#allocation2 + $0xa0] sm:$0xff]
      %v841 = vld [vmem:[#allocation2 + $0xa8] sm:$0xff]
      %v842 = vld [vmem:[#allocation2 + $0xb0] sm:$0xff]
      %v843 = vld [vmem:[#allocation2 + $0xb8] sm:$0xff]
      %v844 = vld [vmem:[#allocation2 + $0xc0] sm:$0xff]
      %v845 = vld [vmem:[#allocation2 + $0xc8] sm:$0xff]
      %v846 = vld [vmem:[#allocation2 + $0xd0] sm:$0xff]
      %v847 = vld [vmem:[#allocation2 + $0xd8] sm:$0xff]
      %v848 = vld [vmem:[#allocation2 + $0xe0] sm:$0xff]
      %v849 = vld [vmem:[#allocation2 + $0xe8] sm:$0xff]
      %v850 = vld [vmem:[#allocation2 + $0xf0] sm:$0xff]
      %v851 = vld [vmem:[#allocation2 + $0xf8] sm:$0xff]
      %v852 = vld [vmem:[#allocation2 + $0x100] sm:$0xff]
      %v853 = vld [vmem:[#allocation2 + $0x108] sm:$0xff]
      %v854 = vld [vmem:[#allocation2 + $0x110] sm:$0xff]
      %v855 = vld [vmem:[#allocation2 + $0x118] sm:$0xff]
      %v856 = vld [vmem:[%s307] sm:$0xff]
      %v857 = vld [vmem:[%s307 + $0x8] sm:$0xff]
      %v858 = vld [vmem:[%s307 + $0x10] sm:$0xff]
      %v859 = vld [vmem:[%s307 + $0x18] sm:$0xff]
      %861 = vset.pattern.permute.xlu0 0
      %862 = vperm.xlu0 %861, %v856
      %v863 = vpop.permute.xlu0 %862
      %866 = vset.pattern.permute.xlu0 0
      %867 = vperm.xlu0 %866, %v857
      %v868 = vpop.permute.xlu0 %867
      %871 = vset.pattern.permute.xlu0 0
      %872 = vperm.xlu0 %871, %v858
      %v873 = vpop.permute.xlu0 %872
      %876 = vset.pattern.permute.xlu0 0
      %877 = vperm.xlu0 %876, %v859
      %v878 = vpop.permute.xlu0 %877
      %v888 = vunpack.c.l.b16 %v812
      %v889 = vunpack.c.h.b16 %v812
      %v890 = vunpack.c.l.b16 %v813
      %v891 = vunpack.c.l.b16 %v814
      %v892 = vunpack.c.h.b16 %v814
      %v893 = vunpack.c.l.b16 %v815
      %v894 = vunpack.c.l.b16 %v816
      %v895 = vunpack.c.h.b16 %v816
      %v896 = vunpack.c.l.b16 %v817
      %v897 = vunpack.c.l.b16 %v818
      %v898 = vunpack.c.h.b16 %v818
      %v899 = vunpack.c.l.b16 %v819
      %v900 = vpack.c.b16 %v891, %v888
      %v901 = vpack.c.b16 %v892, %v889
      %v902 = vpack.c.b16 %v893, %v890
      %v903 = vpack.c.b16 %v897, %v894
      %v904 = vpack.c.b16 %v898, %v895
      %v905 = vpack.c.b16 %v899, %v896
      %vm910 = vcmask 261120
      %v912 = vsel %vm910, %v902, 0
      %v915 = vsel %vm910, %v905, 0
      %917 = vmatprep.subr.bf16.mxu0 %v821
      %918 = vmatpush1.bf16.msra.mxu0 %v820
      %919 = vmatprep.subr.bf16.mxu0 %v823
      %920 = vmatpush1.bf16.msra.mxu0 %v822
      %921 = vmatprep.subr.bf16.mxu0 %v825
      %922 = vmatpush1.bf16.msra.mxu0 %v824
      %923 = vmatprep.subr.bf16.mxu0 %v827
      %924 = vmatpush1.bf16.msra.mxu0 %v826
      %925 = vmatprep.subr.bf16.mxu0 %v829
      %926 = vmatpush1.bf16.msra.mxu0 %v828
      %927 = vmatprep.subr.bf16.mxu0 %v831
      %928 = vmatpush1.bf16.msra.mxu0 %v830
      %929 = vmatprep.subr.bf16.mxu0 %v833
      %930 = vmatpush1.bf16.msra.mxu0 %v832
      %931 = vmatprep.subr.bf16.mxu0 %v835
      %932 = vmatpush1.bf16.msra.mxu0 %v834
      %933 = vmatprep.subr.bf16.mxu0 %v837
      %934 = vmatpush1.bf16.msra.mxu0 %v836
      %935 = vmatprep.subr.bf16.mxu0 %v839
      %936 = vmatpush1.bf16.msra.mxu0 %v838
      %937 = vmatprep.subr.bf16.mxu0 %v841
      %938 = vmatpush1.bf16.msra.mxu0 %v840
      %939 = vmatprep.subr.bf16.mxu0 %v843
      %940 = vmatpush1.bf16.msra.mxu0 %v842
      %941 = vmatprep.subr.bf16.mxu0 %v845
      %942 = vmatpush1.bf16.msra.mxu0 %v844
      %943 = vmatprep.subr.bf16.mxu0 %v847
      %944 = vmatpush1.bf16.msra.mxu0 %v846
      %945 = vmatprep.subr.bf16.mxu0 %v849
      %946 = vmatpush1.bf16.msra.mxu0 %v848
      %947 = vmatprep.subr.bf16.mxu0 %v851
      %948 = vmatpush1.bf16.msra.mxu0 %v850
      %949 = vmatprep.mubr.bf16.mxu0 %v901
      %950 = vmatmul.mubr.bf16.gmra.mrb[0].mxu0 %v900
      %v951 = vpop.f32.mrb[0].mxu0
      %v952 = vadd.f32 %v863, %v951
      %v953 = vpop.f32.mrb[0].mxu0
      %v954 = vadd.f32 %v863, %v953
      %v955 = vpop.f32.mrb[0].mxu0
      %v956 = vadd.f32 %v868, %v955
      %v957 = vpop.f32.mrb[0].mxu0
      %v958 = vadd.f32 %v868, %v957
      %959 = vmatprep.mubr.bf16.mxu0 %v904
      %960 = vmatmul.mubr.bf16.gmra.mrb[0].mxu0 %v903
      %v961 = vpop.f32.mrb[0].mxu0
      %v962 = vadd.f32 %v873, %v961
      %v963 = vpop.f32.mrb[0].mxu0
      %v964 = vadd.f32 %v873, %v963
      %v965 = vpop.f32.mrb[0].mxu0
      %v966 = vadd.f32 %v878, %v965
      %v967 = vpop.f32.mrb[0].mxu0
      %v968 = vadd.f32 %v878, %v967
      %969 = vdwg.mxu0
      %970 = vmatprep.subr.bf16.mxu0 %v853
      %971 = vmatpush1.bf16.msra.mxu0 %v852
      %972 = vmatprep.subr.bf16.mxu0 %v855
      %973 = vmatpush1.bf16.msra.mxu0 %v854
      %974 = vmatprep.subr.bf16.mxu0 0
      %975 = vmatpush1.bf16.msra.mxu0 0
      %976 = vmatprep.subr.bf16.mxu0 0
      %977 = vmatpush1.bf16.msra.mxu0 0
      %978 = vmatprep.subr.bf16.mxu0 0
      %979 = vmatpush1.bf16.msra.mxu0 0
      %980 = vmatprep.subr.bf16.mxu0 0
      %981 = vmatpush1.bf16.msra.mxu0 0
      %982 = vmatprep.subr.bf16.mxu0 0
      %983 = vmatpush1.bf16.msra.mxu0 0
      %984 = vmatprep.subr.bf16.mxu0 0
      %985 = vmatpush1.bf16.msra.mxu0 0
      %986 = vmatprep.subr.bf16.mxu0 0
      %987 = vmatpush1.bf16.msra.mxu0 0
      %988 = vmatprep.subr.bf16.mxu0 0
      %989 = vmatpush1.bf16.msra.mxu0 0
      %990 = vmatprep.subr.bf16.mxu0 0
      %991 = vmatpush1.bf16.msra.mxu0 0
      %992 = vmatprep.subr.bf16.mxu0 0
      %993 = vmatpush1.bf16.msra.mxu0 0
      %994 = vmatprep.subr.bf16.mxu0 0
      %995 = vmatpush1.bf16.msra.mxu0 0
      %996 = vmatprep.subr.bf16.mxu0 0
      %997 = vmatpush1.bf16.msra.mxu0 0
      %998 = vmatprep.subr.bf16.mxu0 0
      %999 = vmatpush1.bf16.msra.mxu0 0
      %1000 = vmatprep.subr.bf16.mxu0 0
      %1001 = vmatpush1.bf16.msra.mxu0 0
      %1002 = vmatprep.mubr.bf16.mxu0 0
      %1003 = vmatmul.mubr.bf16.gmra.mrb[0].mxu0 %v912
      %v1004 = vpop.f32.mrb[0].mxu0
      %v1005 = vadd.f32 %v952, %v1004
      %v1006 = vpop.f32.mrb[0].mxu0
      %v1007 = vadd.f32 %v954, %v1006
      %v1008 = vpop.f32.mrb[0].mxu0
      %v1009 = vadd.f32 %v956, %v1008
      %v1010 = vpop.f32.mrb[0].mxu0
      %v1011 = vadd.f32 %v958, %v1010
      %1012 = vmatprep.mubr.bf16.mxu0 0
      %1013 = vmatmul.mubr.bf16.gmra.mrb[0].mxu0 %v915
      %v1014 = vpop.f32.mrb[0].mxu0
      %v1015 = vadd.f32 %v962, %v1014
      %v1016 = vpop.f32.mrb[0].mxu0
      %v1017 = vadd.f32 %v964, %v1016
      %v1018 = vpop.f32.mrb[0].mxu0
      %v1019 = vadd.f32 %v966, %v1018
      %v1020 = vpop.f32.mrb[0].mxu0
      %v1021 = vadd.f32 %v968, %v1020
      %1022 = vdwg.mxu0
      %v1023 = vmax.f32 %v1005, 0.0
      %v1024 = vmax.f32 %v1007, 0.0
      %v1025 = vmax.f32 %v1009, 0.0
      %v1026 = vmax.f32 %v1011, 0.0
      %v1027 = vmax.f32 %v1015, 0.0
      %v1028 = vmax.f32 %v1017, 0.0
      %v1029 = vmax.f32 %v1019, 0.0
      %v1030 = vmax.f32 %v1021, 0.0
      %1039 = vrot.lane.b32.xlu0 %v1023, 17
      %v1040 = vpop.permute.xlu0 %1039
      %1041 = vrot.lane.b32.xlu0 %v1024, 17
      %v1042 = vpop.permute.xlu0 %1041
      %1043 = vrot.lane.b32.xlu0 %v1025, 17
      %v1044 = vpop.permute.xlu0 %1043
      %1045 = vrot.lane.b32.xlu0 %v1026, 17
      %v1046 = vpop.permute.xlu0 %1045
      %1047 = vrot.lane.b32.xlu0 %v1027, 17
      %v1048 = vpop.permute.xlu0 %1047
      %1049 = vrot.lane.b32.xlu0 %v1028, 17
      %v1050 = vpop.permute.xlu0 %1049
      %1051 = vrot.lane.b32.xlu0 %v1029, 17
      %v1052 = vpop.permute.xlu0 %1051
      %1053 = vrot.lane.b32.xlu0 %v1030, 17
      %v1054 = vpop.permute.xlu0 %1053
      %v1055 = vsel %vm391, %v1040, %v1042
      %v1056 = vsel %vm391, %v1044, %v1046
      %v1057 = vsel %vm391, %v1048, %v1050
      %v1058 = vsel %vm391, %v1052, %v1054
      %v1071 = vsel %vm391, 0.0, %v1040
      %v1072 = vsel %vm391, 0.0, %v1044
      %v1073 = vsel %vm391, 0.0, %v1048
      %v1074 = vsel %vm391, 0.0, %v1052
      %v1075 = vsel %vm391, %v1042, 0.0
      %v1076 = vsel %vm391, %v1046, 0.0
      %v1077 = vsel %vm391, %v1050, 0.0
      %v1078 = vsel %vm391, %v1054, 0.0
      %v1079 = vsel %vm355, %v1071, 0.0
      %v1080 = vsel %vm356, %v1055, 0.0
      %v1081 = vsel %vm355, %v1072, 0.0
      %v1082 = vsel %vm356, %v1056, 0.0
      %v1083 = vsel %vm355, %v1073, 0.0
      %v1084 = vsel %vm356, %v1057, 0.0
      %v1085 = vsel %vm355, %v1074, 0.0
      %v1086 = vsel %vm356, %v1058, 0.0
      %v1087 = vpack.c.bf16 %v1081, %v1079
      %v1088 = vpack.c.bf16 %v1082, %v1080
      %v1089 = vpack.c.bf16 %v1085, %v1083
      %v1090 = vpack.c.bf16 %v1086, %v1084
      %1091 = vst [vmem:[#allocation2] sm:$0xff] %v1087
      %1092 = vst [vmem:[#allocation2 + $0x8] sm:$0xff] %v1088
      %1093 = vst [vmem:[#allocation2 + $0x10] sm:$0xff] %v1089
      %1094 = vst [vmem:[#allocation2 + $0x18] sm:$0xff] %v1090
      %v1095 = vpack.c.bf16 %v1072, %v1071
      %v1096 = vpack.c.bf16 %v1056, %v1055
      %v1097 = vpack.c.bf16 %v1076, %v1075
      %v1098 = vpack.c.bf16 %v1074, %v1073
      %v1099 = vpack.c.bf16 %v1058, %v1057
      %v1100 = vpack.c.bf16 %v1078, %v1077
      %1107 = vrot.lane.b32.xlu0 %v1095, 127
      %v1108 = vpop.permute.xlu0 %1107
      %1109 = vrot.lane.b32.xlu0 %v1096, 127
      %v1110 = vpop.permute.xlu0 %1109
      %1111 = vrot.lane.b32.xlu0 %v1097, 127
      %v1112 = vpop.permute.xlu0 %1111
      %1113 = vrot.lane.b32.xlu0 %v1098, 127
      %v1114 = vpop.permute.xlu0 %1113
      %1115 = vrot.lane.b32.xlu0 %v1099, 127
      %v1116 = vpop.permute.xlu0 %1115
      %1117 = vrot.lane.b32.xlu0 %v1100, 127
      %v1118 = vpop.permute.xlu0 %1117
      %v1119 = vsel %vm456, %v1108, %v1110
      %v1120 = vsel %vm456, %v1110, %v1112
      %v1121 = vsel %vm456, %v1114, %v1116
      %v1122 = vsel %vm456, %v1116, %v1118
      %1127 = vst [vmem:[#allocation2 + $0x20] sm:$0xff] %v1119
      %1128 = vst [vmem:[#allocation2 + $0x28] sm:$0xff] %v1120
      %1129 = vst [vmem:[#allocation2 + $0x30] sm:$0xff] %v1121
      %1130 = vst [vmem:[#allocation2 + $0x38] sm:$0xff] %v1122
      %1139 = vrot.lane.b32.xlu0 %v1071, 126
      %v1140 = vpop.permute.xlu0 %1139
      %1141 = vrot.lane.b32.xlu0 %v1055, 126
      %v1142 = vpop.permute.xlu0 %1141
      %1143 = vrot.lane.b32.xlu0 %v1075, 126
      %v1144 = vpop.permute.xlu0 %1143
      %1145 = vrot.lane.b32.xlu0 %v1072, 126
      %v1146 = vpop.permute.xlu0 %1145
      %1147 = vrot.lane.b32.xlu0 %v1056, 126
      %v1148 = vpop.permute.xlu0 %1147
      %1149 = vrot.lane.b32.xlu0 %v1076, 126
      %v1150 = vpop.permute.xlu0 %1149
      %1151 = vrot.lane.b32.xlu0 %v1073, 126
      %v1152 = vpop.permute.xlu0 %1151
      %1153 = vrot.lane.b32.xlu0 %v1057, 126
      %v1154 = vpop.permute.xlu0 %1153
      %1155 = vrot.lane.b32.xlu0 %v1077, 126
      %v1156 = vpop.permute.xlu0 %1155
      %1157 = vrot.lane.b32.xlu0 %v1074, 126
      %v1158 = vpop.permute.xlu0 %1157
      %1159 = vrot.lane.b32.xlu0 %v1058, 126
      %v1160 = vpop.permute.xlu0 %1159
      %1161 = vrot.lane.b32.xlu0 %v1078, 126
      %v1162 = vpop.permute.xlu0 %1161
      %v1163 = vsel %vm501, %v1140, %v1142
      %v1164 = vsel %vm501, %v1142, %v1144
      %v1165 = vsel %vm501, %v1146, %v1148
      %v1166 = vsel %vm501, %v1148, %v1150
      %v1167 = vsel %vm501, %v1152, %v1154
      %v1168 = vsel %vm501, %v1154, %v1156
      %v1169 = vsel %vm501, %v1158, %v1160
      %v1170 = vsel %vm501, %v1160, %v1162
      %v1179 = vsel %vm357, %v1163, 0.0
      %v1180 = vsel %vm358, %v1164, 0.0
      %v1181 = vsel %vm357, %v1165, 0.0
      %v1182 = vsel %vm358, %v1166, 0.0
      %v1183 = vsel %vm357, %v1167, 0.0
      %v1184 = vsel %vm358, %v1168, 0.0
      %v1185 = vsel %vm357, %v1169, 0.0
      %v1186 = vsel %vm358, %v1170, 0.0
      %v1187 = vpack.c.bf16 %v1181, %v1179
      %v1188 = vpack.c.bf16 %v1182, %v1180
      %v1189 = vpack.c.bf16 %v1185, %v1183
      %v1190 = vpack.c.bf16 %v1186, %v1184
      %1191 = vst [vmem:[#allocation2 + $0x40] sm:$0xff] %v1187
      %1192 = vst [vmem:[#allocation2 + $0x48] sm:$0xff] %v1188
      %1193 = vst [vmem:[#allocation2 + $0x50] sm:$0xff] %v1189
      %1194 = vst [vmem:[#allocation2 + $0x58] sm:$0xff] %v1190
      %1195 = vrot.lane.b32.xlu0 %v1071, 112
      %v1196 = vpop.permute.xlu0 %1195
      %1197 = vrot.lane.b32.xlu0 %v1055, 112
      %v1198 = vpop.permute.xlu0 %1197
      %1199 = vrot.lane.b32.xlu0 %v1075, 112
      %v1200 = vpop.permute.xlu0 %1199
      %1201 = vrot.lane.b32.xlu0 %v1072, 112
      %v1202 = vpop.permute.xlu0 %1201
      %1203 = vrot.lane.b32.xlu0 %v1056, 112
      %v1204 = vpop.permute.xlu0 %1203
      %1205 = vrot.lane.b32.xlu0 %v1076, 112
      %v1206 = vpop.permute.xlu0 %1205
      %1207 = vrot.lane.b32.xlu0 %v1073, 112
      %v1208 = vpop.permute.xlu0 %1207
      %1209 = vrot.lane.b32.xlu0 %v1057, 112
      %v1210 = vpop.permute.xlu0 %1209
      %1211 = vrot.lane.b32.xlu0 %v1077, 112
      %v1212 = vpop.permute.xlu0 %1211
      %1213 = vrot.lane.b32.xlu0 %v1074, 112
      %v1214 = vpop.permute.xlu0 %1213
      %1215 = vrot.lane.b32.xlu0 %v1058, 112
      %v1216 = vpop.permute.xlu0 %1215
      %1217 = vrot.lane.b32.xlu0 %v1078, 112
      %v1218 = vpop.permute.xlu0 %1217
      %v1219 = vsel %vm558, %v1196, %v1198
      %v1220 = vsel %vm558, %v1198, %v1200
      %v1221 = vsel %vm558, %v1202, %v1204
      %v1222 = vsel %vm558, %v1204, %v1206
      %v1223 = vsel %vm558, %v1208, %v1210
      %v1224 = vsel %vm558, %v1210, %v1212
      %v1225 = vsel %vm558, %v1214, %v1216
      %v1226 = vsel %vm558, %v1216, %v1218
      %v1235 = vsel %vm355, %v1219, 0.0
      %v1236 = vsel %vm356, %v1220, 0.0
      %v1237 = vsel %vm355, %v1221, 0.0
      %v1238 = vsel %vm356, %v1222, 0.0
      %v1239 = vsel %vm355, %v1223, 0.0
      %v1240 = vsel %vm356, %v1224, 0.0
      %v1241 = vsel %vm355, %v1225, 0.0
      %v1242 = vsel %vm356, %v1226, 0.0
      %v1243 = vpack.c.bf16 %v1237, %v1235
      %v1244 = vpack.c.bf16 %v1238, %v1236
      %v1245 = vpack.c.bf16 %v1241, %v1239
      %v1246 = vpack.c.bf16 %v1242, %v1240
      %1247 = vst [vmem:[#allocation2 + $0x60] sm:$0xff] %v1243
      %1248 = vst [vmem:[#allocation2 + $0x68] sm:$0xff] %v1244
      %1249 = vst [vmem:[#allocation2 + $0x70] sm:$0xff] %v1245
      %1250 = vst [vmem:[#allocation2 + $0x78] sm:$0xff] %v1246
      %1251 = vrot.lane.b32.xlu0 %v1095, 111
      %v1252 = vpop.permute.xlu0 %1251
      %1253 = vrot.lane.b32.xlu0 %v1096, 111
      %v1254 = vpop.permute.xlu0 %1253
      %1255 = vrot.lane.b32.xlu0 %v1097, 111
      %v1256 = vpop.permute.xlu0 %1255
      %1257 = vrot.lane.b32.xlu0 %v1098, 111
      %v1258 = vpop.permute.xlu0 %1257
      %1259 = vrot.lane.b32.xlu0 %v1099, 111
      %v1260 = vpop.permute.xlu0 %1259
      %1261 = vrot.lane.b32.xlu0 %v1100, 111
      %v1262 = vpop.permute.xlu0 %1261
      %v1263 = vsel %vm603, %v1252, %v1254
      %v1264 = vsel %vm603, %v1254, %v1256
      %v1265 = vsel %vm603, %v1258, %v1260
      %v1266 = vsel %vm603, %v1260, %v1262
      %1271 = vst [vmem:[#allocation2 + $0x80] sm:$0xff] %v1263
      %1272 = vst [vmem:[#allocation2 + $0x88] sm:$0xff] %v1264
      %1273 = vst [vmem:[#allocation2 + $0x90] sm:$0xff] %v1265
      %1274 = vst [vmem:[#allocation2 + $0x98] sm:$0xff] %v1266
      %1275 = vrot.lane.b32.xlu0 %v1071, 110
      %v1276 = vpop.permute.xlu0 %1275
      %1277 = vrot.lane.b32.xlu0 %v1055, 110
      %v1278 = vpop.permute.xlu0 %1277
      %1279 = vrot.lane.b32.xlu0 %v1075, 110
      %v1280 = vpop.permute.xlu0 %1279
      %1281 = vrot.lane.b32.xlu0 %v1072, 110
      %v1282 = vpop.permute.xlu0 %1281
      %1283 = vrot.lane.b32.xlu0 %v1056, 110
      %v1284 = vpop.permute.xlu0 %1283
      %1285 = vrot.lane.b32.xlu0 %v1076, 110
      %v1286 = vpop.permute.xlu0 %1285
      %1287 = vrot.lane.b32.xlu0 %v1073, 110
      %v1288 = vpop.permute.xlu0 %1287
      %1289 = vrot.lane.b32.xlu0 %v1057, 110
      %v1290 = vpop.permute.xlu0 %1289
      %1291 = vrot.lane.b32.xlu0 %v1077, 110
      %v1292 = vpop.permute.xlu0 %1291
      %1293 = vrot.lane.b32.xlu0 %v1074, 110
      %v1294 = vpop.permute.xlu0 %1293
      %1295 = vrot.lane.b32.xlu0 %v1058, 110
      %v1296 = vpop.permute.xlu0 %1295
      %1297 = vrot.lane.b32.xlu0 %v1078, 110
      %v1298 = vpop.permute.xlu0 %1297
      %v1299 = vsel %vm640, %v1276, %v1278
      %v1300 = vsel %vm640, %v1278, %v1280
      %v1301 = vsel %vm640, %v1282, %v1284
      %v1302 = vsel %vm640, %v1284, %v1286
      %v1303 = vsel %vm640, %v1288, %v1290
      %v1304 = vsel %vm640, %v1290, %v1292
      %v1305 = vsel %vm640, %v1294, %v1296
      %v1306 = vsel %vm640, %v1296, %v1298
      %v1315 = vsel %vm357, %v1299, 0.0
      %v1316 = vsel %vm358, %v1300, 0.0
      %v1317 = vsel %vm357, %v1301, 0.0
      %v1318 = vsel %vm358, %v1302, 0.0
      %v1319 = vsel %vm357, %v1303, 0.0
      %v1320 = vsel %vm358, %v1304, 0.0
      %v1321 = vsel %vm357, %v1305, 0.0
      %v1322 = vsel %vm358, %v1306, 0.0
      %v1323 = vpack.c.bf16 %v1317, %v1315
      %v1324 = vpack.c.bf16 %v1318, %v1316
      %v1325 = vpack.c.bf16 %v1321, %v1319
      %v1326 = vpack.c.bf16 %v1322, %v1320
      %1327 = vst [vmem:[#allocation2 + $0xa0] sm:$0xff] %v1323
      %1328 = vst [vmem:[#allocation2 + $0xa8] sm:$0xff] %v1324
      %1329 = vst [vmem:[#allocation2 + $0xb0] sm:$0xff] %v1325
      %1330 = vst [vmem:[#allocation2 + $0xb8] sm:$0xff] %v1326
      %1331 = vrot.lane.b32.xlu0 %v1071, 96
      %v1332 = vpop.permute.xlu0 %1331
      %1333 = vrot.lane.b32.xlu0 %v1055, 96
      %v1334 = vpop.permute.xlu0 %1333
      %1335 = vrot.lane.b32.xlu0 %v1075, 96
      %v1336 = vpop.permute.xlu0 %1335
      %1337 = vrot.lane.b32.xlu0 %v1072, 96
      %v1338 = vpop.permute.xlu0 %1337
      %1339 = vrot.lane.b32.xlu0 %v1056, 96
      %v1340 = vpop.permute.xlu0 %1339
      %1341 = vrot.lane.b32.xlu0 %v1076, 96
      %v1342 = vpop.permute.xlu0 %1341
      %1343 = vrot.lane.b32.xlu0 %v1073, 96
      %v1344 = vpop.permute.xlu0 %1343
      %1345 = vrot.lane.b32.xlu0 %v1057, 96
      %v1346 = vpop.permute.xlu0 %1345
      %1347 = vrot.lane.b32.xlu0 %v1077, 96
      %v1348 = vpop.permute.xlu0 %1347
      %1349 = vrot.lane.b32.xlu0 %v1074, 96
      %v1350 = vpop.permute.xlu0 %1349
      %1351 = vrot.lane.b32.xlu0 %v1058, 96
      %v1352 = vpop.permute.xlu0 %1351
      %1353 = vrot.lane.b32.xlu0 %v1078, 96
      %v1354 = vpop.permute.xlu0 %1353
      %v1355 = vsel %vm697, %v1332, %v1334
      %v1356 = vsel %vm697, %v1334, %v1336
      %v1357 = vsel %vm697, %v1338, %v1340
      %v1358 = vsel %vm697, %v1340, %v1342
      %v1359 = vsel %vm697, %v1344, %v1346
      %v1360 = vsel %vm697, %v1346, %v1348
      %v1361 = vsel %vm697, %v1350, %v1352
      %v1362 = vsel %vm697, %v1352, %v1354
      %v1371 = vsel %vm355, %v1355, 0.0
      %v1372 = vsel %vm356, %v1356, 0.0
      %v1373 = vsel %vm355, %v1357, 0.0
      %v1374 = vsel %vm356, %v1358, 0.0
      %v1375 = vsel %vm355, %v1359, 0.0
      %v1376 = vsel %vm356, %v1360, 0.0
      %v1377 = vsel %vm355, %v1361, 0.0
      %v1378 = vsel %vm356, %v1362, 0.0
      %v1379 = vpack.c.bf16 %v1373, %v1371
      %v1380 = vpack.c.bf16 %v1374, %v1372
      %v1381 = vpack.c.bf16 %v1377, %v1375
      %v1382 = vpack.c.bf16 %v1378, %v1376
      %1383 = vst [vmem:[#allocation2 + $0xc0] sm:$0xff] %v1379
      %1384 = vst [vmem:[#allocation2 + $0xc8] sm:$0xff] %v1380
      %1385 = vst [vmem:[#allocation2 + $0xd0] sm:$0xff] %v1381
      %1386 = vst [vmem:[#allocation2 + $0xd8] sm:$0xff] %v1382
      %1387 = vrot.lane.b32.xlu0 %v1095, 95
      %v1388 = vpop.permute.xlu0 %1387
      %1389 = vrot.lane.b32.xlu0 %v1096, 95
      %v1390 = vpop.permute.xlu0 %1389
      %1391 = vrot.lane.b32.xlu0 %v1097, 95
      %v1392 = vpop.permute.xlu0 %1391
      %1393 = vrot.lane.b32.xlu0 %v1098, 95
      %v1394 = vpop.permute.xlu0 %1393
      %1395 = vrot.lane.b32.xlu0 %v1099, 95
      %v1396 = vpop.permute.xlu0 %1395
      %1397 = vrot.lane.b32.xlu0 %v1100, 95
      %v1398 = vpop.permute.xlu0 %1397
      %v1399 = vsel %vm742, %v1388, %v1390
      %v1400 = vsel %vm742, %v1390, %v1392
      %v1401 = vsel %vm742, %v1394, %v1396
      %v1402 = vsel %vm742, %v1396, %v1398
      %1407 = vst [vmem:[#allocation2 + $0xe0] sm:$0xff] %v1399
      %1408 = vst [vmem:[#allocation2 + $0xe8] sm:$0xff] %v1400
      %1409 = vst [vmem:[#allocation2 + $0xf0] sm:$0xff] %v1401
      %1410 = vst [vmem:[#allocation2 + $0xf8] sm:$0xff] %v1402
      %1411 = vrot.lane.b32.xlu0 %v1071, 94
      %v1412 = vpop.permute.xlu0 %1411
      %1413 = vrot.lane.b32.xlu0 %v1055, 94
      %v1414 = vpop.permute.xlu0 %1413
      %1415 = vrot.lane.b32.xlu0 %v1075, 94
      %v1416 = vpop.permute.xlu0 %1415
      %1417 = vrot.lane.b32.xlu0 %v1072, 94
      %v1418 = vpop.permute.xlu0 %1417
      %1419 = vrot.lane.b32.xlu0 %v1056, 94
      %v1420 = vpop.permute.xlu0 %1419
      %1421 = vrot.lane.b32.xlu0 %v1076, 94
      %v1422 = vpop.permute.xlu0 %1421
      %1423 = vrot.lane.b32.xlu0 %v1073, 94
      %v1424 = vpop.permute.xlu0 %1423
      %1425 = vrot.lane.b32.xlu0 %v1057, 94
      %v1426 = vpop.permute.xlu0 %1425
      %1427 = vrot.lane.b32.xlu0 %v1077, 94
      %v1428 = vpop.permute.xlu0 %1427
      %1429 = vrot.lane.b32.xlu0 %v1074, 94
      %v1430 = vpop.permute.xlu0 %1429
      %1431 = vrot.lane.b32.xlu0 %v1058, 94
      %v1432 = vpop.permute.xlu0 %1431
      %1433 = vrot.lane.b32.xlu0 %v1078, 94
      %v1434 = vpop.permute.xlu0 %1433
      %v1435 = vsel %vm779, %v1412, %v1414
      %v1436 = vsel %vm779, %v1414, %v1416
      %v1437 = vsel %vm779, %v1418, %v1420
      %v1438 = vsel %vm779, %v1420, %v1422
      %v1439 = vsel %vm779, %v1424, %v1426
      %v1440 = vsel %vm779, %v1426, %v1428
      %v1441 = vsel %vm779, %v1430, %v1432
      %v1442 = vsel %vm779, %v1432, %v1434
      %v1451 = vsel %vm357, %v1435, 0.0
      %v1452 = vsel %vm358, %v1436, 0.0
      %v1453 = vsel %vm357, %v1437, 0.0
      %v1454 = vsel %vm358, %v1438, 0.0
      %v1455 = vsel %vm357, %v1439, 0.0
      %v1456 = vsel %vm358, %v1440, 0.0
      %v1457 = vsel %vm357, %v1441, 0.0
      %v1458 = vsel %vm358, %v1442, 0.0
      %v1459 = vpack.c.bf16 %v1453, %v1451
      %v1460 = vpack.c.bf16 %v1454, %v1452
      %v1461 = vpack.c.bf16 %v1457, %v1455
      %v1462 = vpack.c.bf16 %v1458, %v1456
      %1463 = vst [vmem:[#allocation2 + $0x100] sm:$0xff] %v1459
      %1464 = vst [vmem:[#allocation2 + $0x108] sm:$0xff] %v1460
      %1465 = vst [vmem:[#allocation2 + $0x110] sm:$0xff] %v1461
      %1466 = vst [vmem:[#allocation2 + $0x118] sm:$0xff] %v1462
      %s1467 = scalar_lea.vmem %s302, 48
      %v1468 = vld [vmem:[%s1467] sm:$0xff]
      %v1469 = vld [vmem:[%s1467 + $0x8] sm:$0xf]
      %v1470 = vld [vmem:[%s1467 + $0xc] sm:$0xff]
      %v1471 = vld [vmem:[%s1467 + $0x14] sm:$0xf]
      %v1472 = vld [vmem:[%s1467 + $0x18] sm:$0xff]
      %v1473 = vld [vmem:[%s1467 + $0x20] sm:$0xf]
      %v1474 = vld [vmem:[%s1467 + $0x24] sm:$0xff]
      %v1475 = vld [vmem:[%s1467 + $0x2c] sm:$0xf]
      %v1476 = vld [vmem:[#allocation2] sm:$0xff]
      %v1477 = vld [vmem:[#allocation2 + $0x8] sm:$0xff]
      %v1478 = vld [vmem:[#allocation2 + $0x10] sm:$0xff]
      %v1479 = vld [vmem:[#allocation2 + $0x18] sm:$0xff]
      %v1480 = vld [vmem:[#allocation2 + $0x20] sm:$0xff]
      %v1481 = vld [vmem:[#allocation2 + $0x28] sm:$0xff]
      %v1482 = vld [vmem:[#allocation2 + $0x30] sm:$0xff]
      %v1483 = vld [vmem:[#allocation2 + $0x38] sm:$0xff]
      %v1484 = vld [vmem:[#allocation2 + $0x40] sm:$0xff]
      %v1485 = vld [vmem:[#allocation2 + $0x48] sm:$0xff]
      %v1486 = vld [vmem:[#allocation2 + $0x50] sm:$0xff]
      %v1487 = vld [vmem:[#allocation2 + $0x58] sm:$0xff]
      %v1488 = vld [vmem:[#allocation2 + $0x60] sm:$0xff]
      %v1489 = vld [vmem:[#allocation2 + $0x68] sm:$0xff]
      %v1490 = vld [vmem:[#allocation2 + $0x70] sm:$0xff]
      %v1491 = vld [vmem:[#allocation2 + $0x78] sm:$0xff]
      %v1492 = vld [vmem:[#allocation2 + $0x80] sm:$0xff]
      %v1493 = vld [vmem:[#allocation2 + $0x88] sm:$0xff]
      %v1494 = vld [vmem:[#allocation2 + $0x90] sm:$0xff]
      %v1495 = vld [vmem:[#allocation2 + $0x98] sm:$0xff]
      %v1496 = vld [vmem:[#allocation2 + $0xa0] sm:$0xff]
      %v1497 = vld [vmem:[#allocation2 + $0xa8] sm:$0xff]
      %v1498 = vld [vmem:[#allocation2 + $0xb0] sm:$0xff]
      %v1499 = vld [vmem:[#allocation2 + $0xb8] sm:$0xff]
      %v1500 = vld [vmem:[#allocation2 + $0xc0] sm:$0xff]
      %v1501 = vld [vmem:[#allocation2 + $0xc8] sm:$0xff]
      %v1502 = vld [vmem:[#allocation2 + $0xd0] sm:$0xff]
      %v1503 = vld [vmem:[#allocation2 + $0xd8] sm:$0xff]
      %v1504 = vld [vmem:[#allocation2 + $0xe0] sm:$0xff]
      %v1505 = vld [vmem:[#allocation2 + $0xe8] sm:$0xff]
      %v1506 = vld [vmem:[#allocation2 + $0xf0] sm:$0xff]
      %v1507 = vld [vmem:[#allocation2 + $0xf8] sm:$0xff]
      %v1508 = vld [vmem:[#allocation2 + $0x100] sm:$0xff]
      %v1509 = vld [vmem:[#allocation2 + $0x108] sm:$0xff]
      %v1510 = vld [vmem:[#allocation2 + $0x110] sm:$0xff]
      %v1511 = vld [vmem:[#allocation2 + $0x118] sm:$0xff]
      %s1512 = scalar_lea.vmem %s307, 32
      %v1513 = vld [vmem:[%s1512] sm:$0xff]
      %v1514 = vld [vmem:[%s1512 + $0x8] sm:$0xff]
      %v1515 = vld [vmem:[%s1512 + $0x10] sm:$0xff]
      %v1516 = vld [vmem:[%s1512 + $0x18] sm:$0xff]
      %1518 = vset.pattern.permute.xlu0 0
      %1519 = vperm.xlu0 %1518, %v1513
      %v1520 = vpop.permute.xlu0 %1519
      %1523 = vset.pattern.permute.xlu0 0
      %1524 = vperm.xlu0 %1523, %v1514
      %v1525 = vpop.permute.xlu0 %1524
      %1528 = vset.pattern.permute.xlu0 0
      %1529 = vperm.xlu0 %1528, %v1515
      %v1530 = vpop.permute.xlu0 %1529
      %1533 = vset.pattern.permute.xlu0 0
      %1534 = vperm.xlu0 %1533, %v1516
      %v1535 = vpop.permute.xlu0 %1534
      %v1545 = vunpack.c.l.b16 %v1468
      %v1546 = vunpack.c.h.b16 %v1468
      %v1547 = vunpack.c.l.b16 %v1469
      %v1548 = vunpack.c.l.b16 %v1470
      %v1549 = vunpack.c.h.b16 %v1470
      %v1550 = vunpack.c.l.b16 %v1471
      %v1551 = vunpack.c.l.b16 %v1472
      %v1552 = vunpack.c.h.b16 %v1472
      %v1553 = vunpack.c.l.b16 %v1473
      %v1554 = vunpack.c.l.b16 %v1474
      %v1555 = vunpack.c.h.b16 %v1474
      %v1556 = vunpack.c.l.b16 %v1475
      %v1557 = vpack.c.b16 %v1548, %v1545
      %v1558 = vpack.c.b16 %v1549, %v1546
      %v1559 = vpack.c.b16 %v1550, %v1547
      %v1560 = vpack.c.b16 %v1554, %v1551
      %v1561 = vpack.c.b16 %v1555, %v1552
      %v1562 = vpack.c.b16 %v1556, %v1553
      %v1568 = vsel %vm910, %v1559, 0
      %v1571 = vsel %vm910, %v1562, 0
      %1573 = vmatprep.subr.bf16.mxu0 %v1477
      %1574 = vmatpush1.bf16.msra.mxu0 %v1476
      %1575 = vmatprep.subr.bf16.mxu0 %v1479
      %1576 = vmatpush1.bf16.msra.mxu0 %v1478
      %1577 = vmatprep.subr.bf16.mxu0 %v1481
      %1578 = vmatpush1.bf16.msra.mxu0 %v1480
      %1579 = vmatprep.subr.bf16.mxu0 %v1483
      %1580 = vmatpush1.bf16.msra.mxu0 %v1482
      %1581 = vmatprep.subr.bf16.mxu0 %v1485
      %1582 = vmatpush1.bf16.msra.mxu0 %v1484
      %1583 = vmatprep.subr.bf16.mxu0 %v1487
      %1584 = vmatpush1.bf16.msra.mxu0 %v1486
      %1585 = vmatprep.subr.bf16.mxu0 %v1489
      %1586 = vmatpush1.bf16.msra.mxu0 %v1488
      %1587 = vmatprep.subr.bf16.mxu0 %v1491
      %1588 = vmatpush1.bf16.msra.mxu0 %v1490
      %1589 = vmatprep.subr.bf16.mxu0 %v1493
      %1590 = vmatpush1.bf16.msra.mxu0 %v1492
      %1591 = vmatprep.subr.bf16.mxu0 %v1495
      %1592 = vmatpush1.bf16.msra.mxu0 %v1494
      %1593 = vmatprep.subr.bf16.mxu0 %v1497
      %1594 = vmatpush1.bf16.msra.mxu0 %v1496
      %1595 = vmatprep.subr.bf16.mxu0 %v1499
      %1596 = vmatpush1.bf16.msra.mxu0 %v1498
      %1597 = vmatprep.subr.bf16.mxu0 %v1501
      %1598 = vmatpush1.bf16.msra.mxu0 %v1500
      %1599 = vmatprep.subr.bf16.mxu0 %v1503
      %1600 = vmatpush1.bf16.msra.mxu0 %v1502
      %1601 = vmatprep.subr.bf16.mxu0 %v1505
      %1602 = vmatpush1.bf16.msra.mxu0 %v1504
      %1603 = vmatprep.subr.bf16.mxu0 %v1507
      %1604 = vmatpush1.bf16.msra.mxu0 %v1506
      %1605 = vmatprep.mubr.bf16.mxu0 %v1558
      %1606 = vmatmul.mubr.bf16.gmra.mrb[0].mxu0 %v1557
      %v1607 = vpop.f32.mrb[0].mxu0
      %v1608 = vadd.f32 %v1520, %v1607
      %v1609 = vpop.f32.mrb[0].mxu0
      %v1610 = vadd.f32 %v1520, %v1609
      %v1611 = vpop.f32.mrb[0].mxu0
      %v1612 = vadd.f32 %v1525, %v1611
      %v1613 = vpop.f32.mrb[0].mxu0
      %v1614 = vadd.f32 %v1525, %v1613
      %1615 = vmatprep.mubr.bf16.mxu0 %v1561
      %1616 = vmatmul.mubr.bf16.gmra.mrb[0].mxu0 %v1560
      %v1617 = vpop.f32.mrb[0].mxu0
      %v1618 = vadd.f32 %v1530, %v1617
      %v1619 = vpop.f32.mrb[0].mxu0
      %v1620 = vadd.f32 %v1530, %v1619
      %v1621 = vpop.f32.mrb[0].mxu0
      %v1622 = vadd.f32 %v1535, %v1621
      %v1623 = vpop.f32.mrb[0].mxu0
      %v1624 = vadd.f32 %v1535, %v1623
      %1625 = vdwg.mxu0
      %1626 = vmatprep.subr.bf16.mxu0 %v1509
      %1627 = vmatpush1.bf16.msra.mxu0 %v1508
      %1628 = vmatprep.subr.bf16.mxu0 %v1511
      %1629 = vmatpush1.bf16.msra.mxu0 %v1510
      %1630 = vmatprep.subr.bf16.mxu0 0
      %1631 = vmatpush1.bf16.msra.mxu0 0
      %1632 = vmatprep.subr.bf16.mxu0 0
      %1633 = vmatpush1.bf16.msra.mxu0 0
      %1634 = vmatprep.subr.bf16.mxu0 0
      %1635 = vmatpush1.bf16.msra.mxu0 0
      %1636 = vmatprep.subr.bf16.mxu0 0
      %1637 = vmatpush1.bf16.msra.mxu0 0
      %1638 = vmatprep.subr.bf16.mxu0 0
      %1639 = vmatpush1.bf16.msra.mxu0 0
      %1640 = vmatprep.subr.bf16.mxu0 0
      %1641 = vmatpush1.bf16.msra.mxu0 0
      %1642 = vmatprep.subr.bf16.mxu0 0
      %1643 = vmatpush1.bf16.msra.mxu0 0
      %1644 = vmatprep.subr.bf16.mxu0 0
      %1645 = vmatpush1.bf16.msra.mxu0 0
      %1646 = vmatprep.subr.bf16.mxu0 0
      %1647 = vmatpush1.bf16.msra.mxu0 0
      %1648 = vmatprep.subr.bf16.mxu0 0
      %1649 = vmatpush1.bf16.msra.mxu0 0
      %1650 = vmatprep.subr.bf16.mxu0 0
      %1651 = vmatpush1.bf16.msra.mxu0 0
      %1652 = vmatprep.subr.bf16.mxu0 0
      %1653 = vmatpush1.bf16.msra.mxu0 0
      %1654 = vmatprep.subr.bf16.mxu0 0
      %1655 = vmatpush1.bf16.msra.mxu0 0
      %1656 = vmatprep.subr.bf16.mxu0 0
      %1657 = vmatpush1.bf16.msra.mxu0 0
      %1658 = vmatprep.mubr.bf16.mxu0 0
      %1659 = vmatmul.mubr.bf16.gmra.mrb[0].mxu0 %v1568
      %v1660 = vpop.f32.mrb[0].mxu0
      %v1661 = vadd.f32 %v1608, %v1660
      %v1662 = vpop.f32.mrb[0].mxu0
      %v1663 = vadd.f32 %v1610, %v1662
      %v1664 = vpop.f32.mrb[0].mxu0
      %v1665 = vadd.f32 %v1612, %v1664
      %v1666 = vpop.f32.mrb[0].mxu0
      %v1667 = vadd.f32 %v1614, %v1666
      %1668 = vmatprep.mubr.bf16.mxu0 0
      %1669 = vmatmul.mubr.bf16.gmra.mrb[0].mxu0 %v1571
      %v1670 = vpop.f32.mrb[0].mxu0
      %v1671 = vadd.f32 %v1618, %v1670
      %v1672 = vpop.f32.mrb[0].mxu0
      %v1673 = vadd.f32 %v1620, %v1672
      %v1674 = vpop.f32.mrb[0].mxu0
      %v1675 = vadd.f32 %v1622, %v1674
      %v1676 = vpop.f32.mrb[0].mxu0
      %v1677 = vadd.f32 %v1624, %v1676
      %1678 = vdwg.mxu0
      %v1679 = vmax.f32 %v1661, 0.0
      %v1680 = vmax.f32 %v1663, 0.0
      %v1681 = vmax.f32 %v1665, 0.0
      %v1682 = vmax.f32 %v1667, 0.0
      %v1683 = vmax.f32 %v1671, 0.0
      %v1684 = vmax.f32 %v1673, 0.0
      %v1685 = vmax.f32 %v1675, 0.0
      %v1686 = vmax.f32 %v1677, 0.0
      %1695 = vrot.lane.b32.xlu0 %v1679, 17
      %v1696 = vpop.permute.xlu0 %1695
      %1697 = vrot.lane.b32.xlu0 %v1680, 17
      %v1698 = vpop.permute.xlu0 %1697
      %1699 = vrot.lane.b32.xlu0 %v1681, 17
      %v1700 = vpop.permute.xlu0 %1699
      %1701 = vrot.lane.b32.xlu0 %v1682, 17
      %v1702 = vpop.permute.xlu0 %1701
      %1703 = vrot.lane.b32.xlu0 %v1683, 17
      %v1704 = vpop.permute.xlu0 %1703
      %1705 = vrot.lane.b32.xlu0 %v1684, 17
      %v1706 = vpop.permute.xlu0 %1705
      %1707 = vrot.lane.b32.xlu0 %v1685, 17
      %v1708 = vpop.permute.xlu0 %1707
      %1709 = vrot.lane.b32.xlu0 %v1686, 17
      %v1710 = vpop.permute.xlu0 %1709
      %v1711 = vsel %vm391, %v1696, %v1698
      %v1712 = vsel %vm391, %v1700, %v1702
      %v1713 = vsel %vm391, %v1704, %v1706
      %v1714 = vsel %vm391, %v1708, %v1710
      %v1727 = vsel %vm391, 0.0, %v1696
      %v1728 = vsel %vm391, 0.0, %v1700
      %v1729 = vsel %vm391, 0.0, %v1704
      %v1730 = vsel %vm391, 0.0, %v1708
      %v1731 = vsel %vm391, %v1698, 0.0
      %v1732 = vsel %vm391, %v1702, 0.0
      %v1733 = vsel %vm391, %v1706, 0.0
      %v1734 = vsel %vm391, %v1710, 0.0
      %v1735 = vsel %vm355, %v1727, 0.0
      %v1736 = vsel %vm356, %v1711, 0.0
      %v1737 = vsel %vm355, %v1728, 0.0
      %v1738 = vsel %vm356, %v1712, 0.0
      %v1739 = vsel %vm355, %v1729, 0.0
      %v1740 = vsel %vm356, %v1713, 0.0
      %v1741 = vsel %vm355, %v1730, 0.0
      %v1742 = vsel %vm356, %v1714, 0.0
      %v1743 = vpack.c.bf16 %v1737, %v1735
      %v1744 = vpack.c.bf16 %v1738, %v1736
      %v1745 = vpack.c.bf16 %v1741, %v1739
      %v1746 = vpack.c.bf16 %v1742, %v1740
      %1747 = vst [vmem:[#allocation2] sm:$0xff] %v1743
      %1748 = vst [vmem:[#allocation2 + $0x8] sm:$0xff] %v1744
      %1749 = vst [vmem:[#allocation2 + $0x10] sm:$0xff] %v1745
      %1750 = vst [vmem:[#allocation2 + $0x18] sm:$0xff] %v1746
      %v1751 = vpack.c.bf16 %v1728, %v1727
      %v1752 = vpack.c.bf16 %v1712, %v1711
      %v1753 = vpack.c.bf16 %v1732, %v1731
      %v1754 = vpack.c.bf16 %v1730, %v1729
      %v1755 = vpack.c.bf16 %v1714, %v1713
      %v1756 = vpack.c.bf16 %v1734, %v1733
      %1763 = vrot.lane.b32.xlu0 %v1751, 127
      %v1764 = vpop.permute.xlu0 %1763
      %1765 = vrot.lane.b32.xlu0 %v1752, 127
      %v1766 = vpop.permute.xlu0 %1765
      %1767 = vrot.lane.b32.xlu0 %v1753, 127
      %v1768 = vpop.permute.xlu0 %1767
      %1769 = vrot.lane.b32.xlu0 %v1754, 127
      %v1770 = vpop.permute.xlu0 %1769
      %1771 = vrot.lane.b32.xlu0 %v1755, 127
      %v1772 = vpop.permute.xlu0 %1771
      %1773 = vrot.lane.b32.xlu0 %v1756, 127
      %v1774 = vpop.permute.xlu0 %1773
      %v1775 = vsel %vm456, %v1764, %v1766
      %v1776 = vsel %vm456, %v1766, %v1768
      %v1777 = vsel %vm456, %v1770, %v1772
      %v1778 = vsel %vm456, %v1772, %v1774
      %1783 = vst [vmem:[#allocation2 + $0x20] sm:$0xff] %v1775
      %1784 = vst [vmem:[#allocation2 + $0x28] sm:$0xff] %v1776
      %1785 = vst [vmem:[#allocation2 + $0x30] sm:$0xff] %v1777
      %1786 = vst [vmem:[#allocation2 + $0x38] sm:$0xff] %v1778
      %1795 = vrot.lane.b32.xlu0 %v1727, 126
      %v1796 = vpop.permute.xlu0 %1795
      %1797 = vrot.lane.b32.xlu0 %v1711, 126
      %v1798 = vpop.permute.xlu0 %1797
      %1799 = vrot.lane.b32.xlu0 %v1731, 126
      %v1800 = vpop.permute.xlu0 %1799
      %1801 = vrot.lane.b32.xlu0 %v1728, 126
      %v1802 = vpop.permute.xlu0 %1801
      %1803 = vrot.lane.b32.xlu0 %v1712, 126
      %v1804 = vpop.permute.xlu0 %1803
      %1805 = vrot.lane.b32.xlu0 %v1732, 126
      %v1806 = vpop.permute.xlu0 %1805
      %1807 = vrot.lane.b32.xlu0 %v1729, 126
      %v1808 = vpop.permute.xlu0 %1807
      %1809 = vrot.lane.b32.xlu0 %v1713, 126
      %v1810 = vpop.permute.xlu0 %1809
      %1811 = vrot.lane.b32.xlu0 %v1733, 126
      %v1812 = vpop.permute.xlu0 %1811
      %1813 = vrot.lane.b32.xlu0 %v1730, 126
      %v1814 = vpop.permute.xlu0 %1813
      %1815 = vrot.lane.b32.xlu0 %v1714, 126
      %v1816 = vpop.permute.xlu0 %1815
      %1817 = vrot.lane.b32.xlu0 %v1734, 126
      %v1818 = vpop.permute.xlu0 %1817
      %v1819 = vsel %vm501, %v1796, %v1798
      %v1820 = vsel %vm501, %v1798, %v1800
      %v1821 = vsel %vm501, %v1802, %v1804
      %v1822 = vsel %vm501, %v1804, %v1806
      %v1823 = vsel %vm501, %v1808, %v1810
      %v1824 = vsel %vm501, %v1810, %v1812
      %v1825 = vsel %vm501, %v1814, %v1816
      %v1826 = vsel %vm501, %v1816, %v1818
      %v1835 = vsel %vm357, %v1819, 0.0
      %v1836 = vsel %vm358, %v1820, 0.0
      %v1837 = vsel %vm357, %v1821, 0.0
      %v1838 = vsel %vm358, %v1822, 0.0
      %v1839 = vsel %vm357, %v1823, 0.0
      %v1840 = vsel %vm358, %v1824, 0.0
      %v1841 = vsel %vm357, %v1825, 0.0
      %v1842 = vsel %vm358, %v1826, 0.0
      %v1843 = vpack.c.bf16 %v1837, %v1835
      %v1844 = vpack.c.bf16 %v1838, %v1836
      %v1845 = vpack.c.bf16 %v1841, %v1839
      %v1846 = vpack.c.bf16 %v1842, %v1840
      %1847 = vst [vmem:[#allocation2 + $0x40] sm:$0xff] %v1843
      %1848 = vst [vmem:[#allocation2 + $0x48] sm:$0xff] %v1844
      %1849 = vst [vmem:[#allocation2 + $0x50] sm:$0xff] %v1845
      %1850 = vst [vmem:[#allocation2 + $0x58] sm:$0xff] %v1846
      %1851 = vrot.lane.b32.xlu0 %v1727, 112
      %v1852 = vpop.permute.xlu0 %1851
      %1853 = vrot.lane.b32.xlu0 %v1711, 112
      %v1854 = vpop.permute.xlu0 %1853
      %1855 = vrot.lane.b32.xlu0 %v1731, 112
      %v1856 = vpop.permute.xlu0 %1855
      %1857 = vrot.lane.b32.xlu0 %v1728, 112
      %v1858 = vpop.permute.xlu0 %1857
      %1859 = vrot.lane.b32.xlu0 %v1712, 112
      %v1860 = vpop.permute.xlu0 %1859
      %1861 = vrot.lane.b32.xlu0 %v1732, 112
      %v1862 = vpop.permute.xlu0 %1861
      %1863 = vrot.lane.b32.xlu0 %v1729, 112
      %v1864 = vpop.permute.xlu0 %1863
      %1865 = vrot.lane.b32.xlu0 %v1713, 112
      %v1866 = vpop.permute.xlu0 %1865
      %1867 = vrot.lane.b32.xlu0 %v1733, 112
      %v1868 = vpop.permute.xlu0 %1867
      %1869 = vrot.lane.b32.xlu0 %v1730, 112
      %v1870 = vpop.permute.xlu0 %1869
      %1871 = vrot.lane.b32.xlu0 %v1714, 112
      %v1872 = vpop.permute.xlu0 %1871
      %1873 = vrot.lane.b32.xlu0 %v1734, 112
      %v1874 = vpop.permute.xlu0 %1873
      %v1875 = vsel %vm558, %v1852, %v1854
      %v1876 = vsel %vm558, %v1854, %v1856
      %v1877 = vsel %vm558, %v1858, %v1860
      %v1878 = vsel %vm558, %v1860, %v1862
      %v1879 = vsel %vm558, %v1864, %v1866
      %v1880 = vsel %vm558, %v1866, %v1868
      %v1881 = vsel %vm558, %v1870, %v1872
      %v1882 = vsel %vm558, %v1872, %v1874
      %v1891 = vsel %vm355, %v1875, 0.0
      %v1892 = vsel %vm356, %v1876, 0.0
      %v1893 = vsel %vm355, %v1877, 0.0
      %v1894 = vsel %vm356, %v1878, 0.0
      %v1895 = vsel %vm355, %v1879, 0.0
      %v1896 = vsel %vm356, %v1880, 0.0
      %v1897 = vsel %vm355, %v1881, 0.0
      %v1898 = vsel %vm356, %v1882, 0.0
      %v1899 = vpack.c.bf16 %v1893, %v1891
      %v1900 = vpack.c.bf16 %v1894, %v1892
      %v1901 = vpack.c.bf16 %v1897, %v1895
      %v1902 = vpack.c.bf16 %v1898, %v1896
      %1903 = vst [vmem:[#allocation2 + $0x60] sm:$0xff] %v1899
      %1904 = vst [vmem:[#allocation2 + $0x68] sm:$0xff] %v1900
      %1905 = vst [vmem:[#allocation2 + $0x70] sm:$0xff] %v1901
      %1906 = vst [vmem:[#allocation2 + $0x78] sm:$0xff] %v1902
      %1907 = vrot.lane.b32.xlu0 %v1751, 111
      %v1908 = vpop.permute.xlu0 %1907
      %1909 = vrot.lane.b32.xlu0 %v1752, 111
      %v1910 = vpop.permute.xlu0 %1909
      %1911 = vrot.lane.b32.xlu0 %v1753, 111
      %v1912 = vpop.permute.xlu0 %1911
      %1913 = vrot.lane.b32.xlu0 %v1754, 111
      %v1914 = vpop.permute.xlu0 %1913
      %1915 = vrot.lane.b32.xlu0 %v1755, 111
      %v1916 = vpop.permute.xlu0 %1915
      %1917 = vrot.lane.b32.xlu0 %v1756, 111
      %v1918 = vpop.permute.xlu0 %1917
      %v1919 = vsel %vm603, %v1908, %v1910
      %v1920 = vsel %vm603, %v1910, %v1912
      %v1921 = vsel %vm603, %v1914, %v1916
      %v1922 = vsel %vm603, %v1916, %v1918
      %1927 = vst [vmem:[#allocation2 + $0x80] sm:$0xff] %v1919
      %1928 = vst [vmem:[#allocation2 + $0x88] sm:$0xff] %v1920
      %1929 = vst [vmem:[#allocation2 + $0x90] sm:$0xff] %v1921
      %1930 = vst [vmem:[#allocation2 + $0x98] sm:$0xff] %v1922
      %1931 = vrot.lane.b32.xlu0 %v1727, 110
      %v1932 = vpop.permute.xlu0 %1931
      %1933 = vrot.lane.b32.xlu0 %v1711, 110
      %v1934 = vpop.permute.xlu0 %1933
      %1935 = vrot.lane.b32.xlu0 %v1731, 110
      %v1936 = vpop.permute.xlu0 %1935
      %1937 = vrot.lane.b32.xlu0 %v1728, 110
      %v1938 = vpop.permute.xlu0 %1937
      %1939 = vrot.lane.b32.xlu0 %v1712, 110
      %v1940 = vpop.permute.xlu0 %1939
      %1941 = vrot.lane.b32.xlu0 %v1732, 110
      %v1942 = vpop.permute.xlu0 %1941
      %1943 = vrot.lane.b32.xlu0 %v1729, 110
      %v1944 = vpop.permute.xlu0 %1943
      %1945 = vrot.lane.b32.xlu0 %v1713, 110
      %v1946 = vpop.permute.xlu0 %1945
      %1947 = vrot.lane.b32.xlu0 %v1733, 110
      %v1948 = vpop.permute.xlu0 %1947
      %1949 = vrot.lane.b32.xlu0 %v1730, 110
      %v1950 = vpop.permute.xlu0 %1949
      %1951 = vrot.lane.b32.xlu0 %v1714, 110
      %v1952 = vpop.permute.xlu0 %1951
      %1953 = vrot.lane.b32.xlu0 %v1734, 110
      %v1954 = vpop.permute.xlu0 %1953
      %v1955 = vsel %vm640, %v1932, %v1934
      %v1956 = vsel %vm640, %v1934, %v1936
      %v1957 = vsel %vm640, %v1938, %v1940
      %v1958 = vsel %vm640, %v1940, %v1942
      %v1959 = vsel %vm640, %v1944, %v1946
      %v1960 = vsel %vm640, %v1946, %v1948
      %v1961 = vsel %vm640, %v1950, %v1952
      %v1962 = vsel %vm640, %v1952, %v1954
      %v1971 = vsel %vm357, %v1955, 0.0
      %v1972 = vsel %vm358, %v1956, 0.0
      %v1973 = vsel %vm357, %v1957, 0.0
      %v1974 = vsel %vm358, %v1958, 0.0
      %v1975 = vsel %vm357, %v1959, 0.0
      %v1976 = vsel %vm358, %v1960, 0.0
      %v1977 = vsel %vm357, %v1961, 0.0
      %v1978 = vsel %vm358, %v1962, 0.0
      %v1979 = vpack.c.bf16 %v1973, %v1971
      %v1980 = vpack.c.bf16 %v1974, %v1972
      %v1981 = vpack.c.bf16 %v1977, %v1975
      %v1982 = vpack.c.bf16 %v1978, %v1976
      %1983 = vst [vmem:[#allocation2 + $0xa0] sm:$0xff] %v1979
      %1984 = vst [vmem:[#allocation2 + $0xa8] sm:$0xff] %v1980
      %1985 = vst [vmem:[#allocation2 + $0xb0] sm:$0xff] %v1981
      %1986 = vst [vmem:[#allocation2 + $0xb8] sm:$0xff] %v1982
      %1987 = vrot.lane.b32.xlu0 %v1727, 96
      %v1988 = vpop.permute.xlu0 %1987
      %1989 = vrot.lane.b32.xlu0 %v1711, 96
      %v1990 = vpop.permute.xlu0 %1989
      %1991 = vrot.lane.b32.xlu0 %v1731, 96
      %v1992 = vpop.permute.xlu0 %1991
      %1993 = vrot.lane.b32.xlu0 %v1728, 96
      %v1994 = vpop.permute.xlu0 %1993
      %1995 = vrot.lane.b32.xlu0 %v1712, 96
      %v1996 = vpop.permute.xlu0 %1995
      %1997 = vrot.lane.b32.xlu0 %v1732, 96
      %v1998 = vpop.permute.xlu0 %1997
      %1999 = vrot.lane.b32.xlu0 %v1729, 96
      %v2000 = vpop.permute.xlu0 %1999
      %2001 = vrot.lane.b32.xlu0 %v1713, 96
      %v2002 = vpop.permute.xlu0 %2001
      %2003 = vrot.lane.b32.xlu0 %v1733, 96
      %v2004 = vpop.permute.xlu0 %2003
      %2005 = vrot.lane.b32.xlu0 %v1730, 96
      %v2006 = vpop.permute.xlu0 %2005
      %2007 = vrot.lane.b32.xlu0 %v1714, 96
      %v2008 = vpop.permute.xlu0 %2007
      %2009 = vrot.lane.b32.xlu0 %v1734, 96
      %v2010 = vpop.permute.xlu0 %2009
      %v2011 = vsel %vm697, %v1988, %v1990
      %v2012 = vsel %vm697, %v1990, %v1992
      %v2013 = vsel %vm697, %v1994, %v1996
      %v2014 = vsel %vm697, %v1996, %v1998
      %v2015 = vsel %vm697, %v2000, %v2002
      %v2016 = vsel %vm697, %v2002, %v2004
      %v2017 = vsel %vm697, %v2006, %v2008
      %v2018 = vsel %vm697, %v2008, %v2010
      %v2027 = vsel %vm355, %v2011, 0.0
      %v2028 = vsel %vm356, %v2012, 0.0
      %v2029 = vsel %vm355, %v2013, 0.0
      %v2030 = vsel %vm356, %v2014, 0.0
      %v2031 = vsel %vm355, %v2015, 0.0
      %v2032 = vsel %vm356, %v2016, 0.0
      %v2033 = vsel %vm355, %v2017, 0.0
      %v2034 = vsel %vm356, %v2018, 0.0
      %v2035 = vpack.c.bf16 %v2029, %v2027
      %v2036 = vpack.c.bf16 %v2030, %v2028
      %v2037 = vpack.c.bf16 %v2033, %v2031
      %v2038 = vpack.c.bf16 %v2034, %v2032
      %2039 = vst [vmem:[#allocation2 + $0xc0] sm:$0xff] %v2035
      %2040 = vst [vmem:[#allocation2 + $0xc8] sm:$0xff] %v2036
      %2041 = vst [vmem:[#allocation2 + $0xd0] sm:$0xff] %v2037
      %2042 = vst [vmem:[#allocation2 + $0xd8] sm:$0xff] %v2038
      %2043 = vrot.lane.b32.xlu0 %v1751, 95
      %v2044 = vpop.permute.xlu0 %2043
      %2045 = vrot.lane.b32.xlu0 %v1752, 95
      %v2046 = vpop.permute.xlu0 %2045
      %2047 = vrot.lane.b32.xlu0 %v1753, 95
      %v2048 = vpop.permute.xlu0 %2047
      %2049 = vrot.lane.b32.xlu0 %v1754, 95
      %v2050 = vpop.permute.xlu0 %2049
      %2051 = vrot.lane.b32.xlu0 %v1755, 95
      %v2052 = vpop.permute.xlu0 %2051
      %2053 = vrot.lane.b32.xlu0 %v1756, 95
      %v2054 = vpop.permute.xlu0 %2053
      %v2055 = vsel %vm742, %v2044, %v2046
      %v2056 = vsel %vm742, %v2046, %v2048
      %v2057 = vsel %vm742, %v2050, %v2052
      %v2058 = vsel %vm742, %v2052, %v2054
      %2063 = vst [vmem:[#allocation2 + $0xe0] sm:$0xff] %v2055
      %2064 = vst [vmem:[#allocation2 + $0xe8] sm:$0xff] %v2056
      %2065 = vst [vmem:[#allocation2 + $0xf0] sm:$0xff] %v2057
      %2066 = vst [vmem:[#allocation2 + $0xf8] sm:$0xff] %v2058
      %2067 = vrot.lane.b32.xlu0 %v1727, 94
      %v2068 = vpop.permute.xlu0 %2067
      %2069 = vrot.lane.b32.xlu0 %v1711, 94
      %v2070 = vpop.permute.xlu0 %2069
      %2071 = vrot.lane.b32.xlu0 %v1731, 94
      %v2072 = vpop.permute.xlu0 %2071
      %2073 = vrot.lane.b32.xlu0 %v1728, 94
      %v2074 = vpop.permute.xlu0 %2073
      %2075 = vrot.lane.b32.xlu0 %v1712, 94
      %v2076 = vpop.permute.xlu0 %2075
      %2077 = vrot.lane.b32.xlu0 %v1732, 94
      %v2078 = vpop.permute.xlu0 %2077
      %2079 = vrot.lane.b32.xlu0 %v1729, 94
      %v2080 = vpop.permute.xlu0 %2079
      %2081 = vrot.lane.b32.xlu0 %v1713, 94
      %v2082 = vpop.permute.xlu0 %2081
      %2083 = vrot.lane.b32.xlu0 %v1733, 94
      %v2084 = vpop.permute.xlu0 %2083
      %2085 = vrot.lane.b32.xlu0 %v1730, 94
      %v2086 = vpop.permute.xlu0 %2085
      %2087 = vrot.lane.b32.xlu0 %v1714, 94
      %v2088 = vpop.permute.xlu0 %2087
      %2089 = vrot.lane.b32.xlu0 %v1734, 94
      %v2090 = vpop.permute.xlu0 %2089
      %v2091 = vsel %vm779, %v2068, %v2070
      %v2092 = vsel %vm779, %v2070, %v2072
      %v2093 = vsel %vm779, %v2074, %v2076
      %v2094 = vsel %vm779, %v2076, %v2078
      %v2095 = vsel %vm779, %v2080, %v2082
      %v2096 = vsel %vm779, %v2082, %v2084
      %v2097 = vsel %vm779, %v2086, %v2088
      %v2098 = vsel %vm779, %v2088, %v2090
      %v2107 = vsel %vm357, %v2091, 0.0
      %v2108 = vsel %vm358, %v2092, 0.0
      %v2109 = vsel %vm357, %v2093, 0.0
      %v2110 = vsel %vm358, %v2094, 0.0
      %v2111 = vsel %vm357, %v2095, 0.0
      %v2112 = vsel %vm358, %v2096, 0.0
      %v2113 = vsel %vm357, %v2097, 0.0
      %v2114 = vsel %vm358, %v2098, 0.0
      %v2115 = vpack.c.bf16 %v2109, %v2107
      %v2116 = vpack.c.bf16 %v2110, %v2108
      %v2117 = vpack.c.bf16 %v2113, %v2111
      %v2118 = vpack.c.bf16 %v2114, %v2112
      %2119 = vst [vmem:[#allocation2 + $0x100] sm:$0xff] %v2115
      %2120 = vst [vmem:[#allocation2 + $0x108] sm:$0xff] %v2116
      %2121 = vst [vmem:[#allocation2 + $0x110] sm:$0xff] %v2117
      %2122 = vst [vmem:[#allocation2 + $0x118] sm:$0xff] %v2118
      %s2123 = scalar_lea.vmem %s302, 96
      %v2124 = vld [vmem:[%s2123] sm:$0xff]
      %v2125 = vld [vmem:[%s2123 + $0x8] sm:$0xf]
      %v2126 = vld [vmem:[%s2123 + $0xc] sm:$0xff]
      %v2127 = vld [vmem:[%s2123 + $0x14] sm:$0xf]
      %v2128 = vld [vmem:[%s2123 + $0x18] sm:$0xff]
      %v2129 = vld [vmem:[%s2123 + $0x20] sm:$0xf]
      %v2130 = vld [vmem:[%s2123 + $0x24] sm:$0xff]
      %v2131 = vld [vmem:[%s2123 + $0x2c] sm:$0xf]
      %v2132 = vld [vmem:[#allocation2] sm:$0xff]
      %v2133 = vld [vmem:[#allocation2 + $0x8] sm:$0xff]
      %v2134 = vld [vmem:[#allocation2 + $0x10] sm:$0xff]
      %v2135 = vld [vmem:[#allocation2 + $0x18] sm:$0xff]
      %v2136 = vld [vmem:[#allocation2 + $0x20] sm:$0xff]
      %v2137 = vld [vmem:[#allocation2 + $0x28] sm:$0xff]
      %v2138 = vld [vmem:[#allocation2 + $0x30] sm:$0xff]
      %v2139 = vld [vmem:[#allocation2 + $0x38] sm:$0xff]
      %v2140 = vld [vmem:[#allocation2 + $0x40] sm:$0xff]
      %v2141 = vld [vmem:[#allocation2 + $0x48] sm:$0xff]
      %v2142 = vld [vmem:[#allocation2 + $0x50] sm:$0xff]
      %v2143 = vld [vmem:[#allocation2 + $0x58] sm:$0xff]
      %v2144 = vld [vmem:[#allocation2 + $0x60] sm:$0xff]
      %v2145 = vld [vmem:[#allocation2 + $0x68] sm:$0xff]
      %v2146 = vld [vmem:[#allocation2 + $0x70] sm:$0xff]
      %v2147 = vld [vmem:[#allocation2 + $0x78] sm:$0xff]
      %v2148 = vld [vmem:[#allocation2 + $0x80] sm:$0xff]
      %v2149 = vld [vmem:[#allocation2 + $0x88] sm:$0xff]
      %v2150 = vld [vmem:[#allocation2 + $0x90] sm:$0xff]
      %v2151 = vld [vmem:[#allocation2 + $0x98] sm:$0xff]
      %v2152 = vld [vmem:[#allocation2 + $0xa0] sm:$0xff]
      %v2153 = vld [vmem:[#allocation2 + $0xa8] sm:$0xff]
      %v2154 = vld [vmem:[#allocation2 + $0xb0] sm:$0xff]
      %v2155 = vld [vmem:[#allocation2 + $0xb8] sm:$0xff]
      %v2156 = vld [vmem:[#allocation2 + $0xc0] sm:$0xff]
      %v2157 = vld [vmem:[#allocation2 + $0xc8] sm:$0xff]
      %v2158 = vld [vmem:[#allocation2 + $0xd0] sm:$0xff]
      %v2159 = vld [vmem:[#allocation2 + $0xd8] sm:$0xff]
      %v2160 = vld [vmem:[#allocation2 + $0xe0] sm:$0xff]
      %v2161 = vld [vmem:[#allocation2 + $0xe8] sm:$0xff]
      %v2162 = vld [vmem:[#allocation2 + $0xf0] sm:$0xff]
      %v2163 = vld [vmem:[#allocation2 + $0xf8] sm:$0xff]
      %v2164 = vld [vmem:[#allocation2 + $0x100] sm:$0xff]
      %v2165 = vld [vmem:[#allocation2 + $0x108] sm:$0xff]
      %v2166 = vld [vmem:[#allocation2 + $0x110] sm:$0xff]
      %v2167 = vld [vmem:[#allocation2 + $0x118] sm:$0xff]
      %s2168 = scalar_lea.vmem %s307, 64
      %v2169 = vld [vmem:[%s2168] sm:$0xff]
      %v2170 = vld [vmem:[%s2168 + $0x8] sm:$0xff]
      %v2171 = vld [vmem:[%s2168 + $0x10] sm:$0xff]
      %v2172 = vld [vmem:[%s2168 + $0x18] sm:$0xff]
      %2174 = vset.pattern.permute.xlu0 0
      %2175 = vperm.xlu0 %2174, %v2169
      %v2176 = vpop.permute.xlu0 %2175
      %2179 = vset.pattern.permute.xlu0 0
      %2180 = vperm.xlu0 %2179, %v2170
      %v2181 = vpop.permute.xlu0 %2180
      %2184 = vset.pattern.permute.xlu0 0
      %2185 = vperm.xlu0 %2184, %v2171
      %v2186 = vpop.permute.xlu0 %2185
      %2189 = vset.pattern.permute.xlu0 0
      %2190 = vperm.xlu0 %2189, %v2172
      %v2191 = vpop.permute.xlu0 %2190
      %v2201 = vunpack.c.l.b16 %v2124
      %v2202 = vunpack.c.h.b16 %v2124
      %v2203 = vunpack.c.l.b16 %v2125
      %v2204 = vunpack.c.l.b16 %v2126
      %v2205 = vunpack.c.h.b16 %v2126
      %v2206 = vunpack.c.l.b16 %v2127
      %v2207 = vunpack.c.l.b16 %v2128
      %v2208 = vunpack.c.h.b16 %v2128
      %v2209 = vunpack.c.l.b16 %v2129
      %v2210 = vunpack.c.l.b16 %v2130
      %v2211 = vunpack.c.h.b16 %v2130
      %v2212 = vunpack.c.l.b16 %v2131
      %v2213 = vpack.c.b16 %v2204, %v2201
      %v2214 = vpack.c.b16 %v2205, %v2202
      %v2215 = vpack.c.b16 %v2206, %v2203
      %v2216 = vpack.c.b16 %v2210, %v2207
      %v2217 = vpack.c.b16 %v2211, %v2208
      %v2218 = vpack.c.b16 %v2212, %v2209
      %v2224 = vsel %vm910, %v2215, 0
      %v2227 = vsel %vm910, %v2218, 0
      %2229 = vmatprep.subr.bf16.mxu0 %v2133
      %2230 = vmatpush1.bf16.msra.mxu0 %v2132
      %2231 = vmatprep.subr.bf16.mxu0 %v2135
      %2232 = vmatpush1.bf16.msra.mxu0 %v2134
      %2233 = vmatprep.subr.bf16.mxu0 %v2137
      %2234 = vmatpush1.bf16.msra.mxu0 %v2136
      %2235 = vmatprep.subr.bf16.mxu0 %v2139
      %2236 = vmatpush1.bf16.msra.mxu0 %v2138
      %2237 = vmatprep.subr.bf16.mxu0 %v2141
      %2238 = vmatpush1.bf16.msra.mxu0 %v2140
      %2239 = vmatprep.subr.bf16.mxu0 %v2143
      %2240 = vmatpush1.bf16.msra.mxu0 %v2142
      %2241 = vmatprep.subr.bf16.mxu0 %v2145
      %2242 = vmatpush1.bf16.msra.mxu0 %v2144
      %2243 = vmatprep.subr.bf16.mxu0 %v2147
      %2244 = vmatpush1.bf16.msra.mxu0 %v2146
      %2245 = vmatprep.subr.bf16.mxu0 %v2149
      %2246 = vmatpush1.bf16.msra.mxu0 %v2148
      %2247 = vmatprep.subr.bf16.mxu0 %v2151
      %2248 = vmatpush1.bf16.msra.mxu0 %v2150
      %2249 = vmatprep.subr.bf16.mxu0 %v2153
      %2250 = vmatpush1.bf16.msra.mxu0 %v2152
      %2251 = vmatprep.subr.bf16.mxu0 %v2155
      %2252 = vmatpush1.bf16.msra.mxu0 %v2154
      %2253 = vmatprep.subr.bf16.mxu0 %v2157
      %2254 = vmatpush1.bf16.msra.mxu0 %v2156
      %2255 = vmatprep.subr.bf16.mxu0 %v2159
      %2256 = vmatpush1.bf16.msra.mxu0 %v2158
      %2257 = vmatprep.subr.bf16.mxu0 %v2161
      %2258 = vmatpush1.bf16.msra.mxu0 %v2160
      %2259 = vmatprep.subr.bf16.mxu0 %v2163
      %2260 = vmatpush1.bf16.msra.mxu0 %v2162
      %2261 = vmatprep.mubr.bf16.mxu0 %v2214
      %2262 = vmatmul.mubr.bf16.gmra.mrb[0].mxu0 %v2213
      %v2263 = vpop.f32.mrb[0].mxu0
      %v2264 = vadd.f32 %v2176, %v2263
      %v2265 = vpop.f32.mrb[0].mxu0
      %v2266 = vadd.f32 %v2176, %v2265
      %v2267 = vpop.f32.mrb[0].mxu0
      %v2268 = vadd.f32 %v2181, %v2267
      %v2269 = vpop.f32.mrb[0].mxu0
      %v2270 = vadd.f32 %v2181, %v2269
      %2271 = vmatprep.mubr.bf16.mxu0 %v2217
      %2272 = vmatmul.mubr.bf16.gmra.mrb[0].mxu0 %v2216
      %v2273 = vpop.f32.mrb[0].mxu0
      %v2274 = vadd.f32 %v2186, %v2273
      %v2275 = vpop.f32.mrb[0].mxu0
      %v2276 = vadd.f32 %v2186, %v2275
      %v2277 = vpop.f32.mrb[0].mxu0
      %v2278 = vadd.f32 %v2191, %v2277
      %v2279 = vpop.f32.mrb[0].mxu0
      %v2280 = vadd.f32 %v2191, %v2279
      %2281 = vdwg.mxu0
      %2282 = vmatprep.subr.bf16.mxu0 %v2165
      %2283 = vmatpush1.bf16.msra.mxu0 %v2164
      %2284 = vmatprep.subr.bf16.mxu0 %v2167
      %2285 = vmatpush1.bf16.msra.mxu0 %v2166
      %2286 = vmatprep.subr.bf16.mxu0 0
      %2287 = vmatpush1.bf16.msra.mxu0 0
      %2288 = vmatprep.subr.bf16.mxu0 0
      %2289 = vmatpush1.bf16.msra.mxu0 0
      %2290 = vmatprep.subr.bf16.mxu0 0
      %2291 = vmatpush1.bf16.msra.mxu0 0
      %2292 = vmatprep.subr.bf16.mxu0 0
      %2293 = vmatpush1.bf16.msra.mxu0 0
      %2294 = vmatprep.subr.bf16.mxu0 0
      %2295 = vmatpush1.bf16.msra.mxu0 0
      %2296 = vmatprep.subr.bf16.mxu0 0
      %2297 = vmatpush1.bf16.msra.mxu0 0
      %2298 = vmatprep.subr.bf16.mxu0 0
      %2299 = vmatpush1.bf16.msra.mxu0 0
      %2300 = vmatprep.subr.bf16.mxu0 0
      %2301 = vmatpush1.bf16.msra.mxu0 0
      %2302 = vmatprep.subr.bf16.mxu0 0
      %2303 = vmatpush1.bf16.msra.mxu0 0
      %2304 = vmatprep.subr.bf16.mxu0 0
      %2305 = vmatpush1.bf16.msra.mxu0 0
      %2306 = vmatprep.subr.bf16.mxu0 0
      %2307 = vmatpush1.bf16.msra.mxu0 0
      %2308 = vmatprep.subr.bf16.mxu0 0
      %2309 = vmatpush1.bf16.msra.mxu0 0
      %2310 = vmatprep.subr.bf16.mxu0 0
      %2311 = vmatpush1.bf16.msra.mxu0 0
      %2312 = vmatprep.subr.bf16.mxu0 0
      %2313 = vmatpush1.bf16.msra.mxu0 0
      %2314 = vmatprep.mubr.bf16.mxu0 0
      %2315 = vmatmul.mubr.bf16.gmra.mrb[0].mxu0 %v2224
      %v2316 = vpop.f32.mrb[0].mxu0
      %v2317 = vadd.f32 %v2264, %v2316
      %v2318 = vpop.f32.mrb[0].mxu0
      %v2319 = vadd.f32 %v2266, %v2318
      %v2320 = vpop.f32.mrb[0].mxu0
      %v2321 = vadd.f32 %v2268, %v2320
      %v2322 = vpop.f32.mrb[0].mxu0
      %v2323 = vadd.f32 %v2270, %v2322
      %2324 = vmatprep.mubr.bf16.mxu0 0
      %2325 = vmatmul.mubr.bf16.gmra.mrb[0].mxu0 %v2227
      %v2326 = vpop.f32.mrb[0].mxu0
      %v2327 = vadd.f32 %v2274, %v2326
      %v2328 = vpop.f32.mrb[0].mxu0
      %v2329 = vadd.f32 %v2276, %v2328
      %v2330 = vpop.f32.mrb[0].mxu0
      %v2331 = vadd.f32 %v2278, %v2330
      %v2332 = vpop.f32.mrb[0].mxu0
      %v2333 = vadd.f32 %v2280, %v2332
      %2334 = vdwg.mxu0
      %v2335 = vmax.f32 %v2317, 0.0
      %v2336 = vmax.f32 %v2319, 0.0
      %v2337 = vmax.f32 %v2321, 0.0
      %v2338 = vmax.f32 %v2323, 0.0
      %v2339 = vmax.f32 %v2327, 0.0
      %v2340 = vmax.f32 %v2329, 0.0
      %v2341 = vmax.f32 %v2331, 0.0
      %v2342 = vmax.f32 %v2333, 0.0
      %2351 = vrot.lane.b32.xlu0 %v2335, 17
      %v2352 = vpop.permute.xlu0 %2351
      %2353 = vrot.lane.b32.xlu0 %v2336, 17
      %v2354 = vpop.permute.xlu0 %2353
      %2355 = vrot.lane.b32.xlu0 %v2337, 17
      %v2356 = vpop.permute.xlu0 %2355
      %2357 = vrot.lane.b32.xlu0 %v2338, 17
      %v2358 = vpop.permute.xlu0 %2357
      %2359 = vrot.lane.b32.xlu0 %v2339, 17
      %v2360 = vpop.permute.xlu0 %2359
      %2361 = vrot.lane.b32.xlu0 %v2340, 17
      %v2362 = vpop.permute.xlu0 %2361
      %2363 = vrot.lane.b32.xlu0 %v2341, 17
      %v2364 = vpop.permute.xlu0 %2363
      %2365 = vrot.lane.b32.xlu0 %v2342, 17
      %v2366 = vpop.permute.xlu0 %2365
      %v2367 = vsel %vm391, %v2352, %v2354
      %v2368 = vsel %vm391, %v2356, %v2358
      %v2369 = vsel %vm391, %v2360, %v2362
      %v2370 = vsel %vm391, %v2364, %v2366
      %v2383 = vsel %vm391, 0.0, %v2352
      %v2384 = vsel %vm391, 0.0, %v2356
      %v2385 = vsel %vm391, 0.0, %v2360
      %v2386 = vsel %vm391, 0.0, %v2364
      %v2387 = vsel %vm391, %v2354, 0.0
      %v2388 = vsel %vm391, %v2358, 0.0
      %v2389 = vsel %vm391, %v2362, 0.0
      %v2390 = vsel %vm391, %v2366, 0.0
      %v2391 = vsel %vm355, %v2383, 0.0
      %v2392 = vsel %vm356, %v2367, 0.0
      %v2393 = vsel %vm355, %v2384, 0.0
      %v2394 = vsel %vm356, %v2368, 0.0
      %v2395 = vsel %vm355, %v2385, 0.0
      %v2396 = vsel %vm356, %v2369, 0.0
      %v2397 = vsel %vm355, %v2386, 0.0
      %v2398 = vsel %vm356, %v2370, 0.0
      %v2399 = vpack.c.bf16 %v2393, %v2391
      %v2400 = vpack.c.bf16 %v2394, %v2392
      %v2401 = vpack.c.bf16 %v2397, %v2395
      %v2402 = vpack.c.bf16 %v2398, %v2396
      %2403 = vst [vmem:[#allocation2] sm:$0xff] %v2399
      %2404 = vst [vmem:[#allocation2 + $0x8] sm:$0xff] %v2400
      %2405 = vst [vmem:[#allocation2 + $0x10] sm:$0xff] %v2401
      %2406 = vst [vmem:[#allocation2 + $0x18] sm:$0xff] %v2402
      %v2407 = vpack.c.bf16 %v2384, %v2383
      %v2408 = vpack.c.bf16 %v2368, %v2367
      %v2409 = vpack.c.bf16 %v2388, %v2387
      %v2410 = vpack.c.bf16 %v2386, %v2385
      %v2411 = vpack.c.bf16 %v2370, %v2369
      %v2412 = vpack.c.bf16 %v2390, %v2389
      %2419 = vrot.lane.b32.xlu0 %v2407, 127
      %v2420 = vpop.permute.xlu0 %2419
      %2421 = vrot.lane.b32.xlu0 %v2408, 127
      %v2422 = vpop.permute.xlu0 %2421
      %2423 = vrot.lane.b32.xlu0 %v2409, 127
      %v2424 = vpop.permute.xlu0 %2423
      %2425 = vrot.lane.b32.xlu0 %v2410, 127
      %v2426 = vpop.permute.xlu0 %2425
      %2427 = vrot.lane.b32.xlu0 %v2411, 127
      %v2428 = vpop.permute.xlu0 %2427
      %2429 = vrot.lane.b32.xlu0 %v2412, 127
      %v2430 = vpop.permute.xlu0 %2429
      %v2431 = vsel %vm456, %v2420, %v2422
      %v2432 = vsel %vm456, %v2422, %v2424
      %v2433 = vsel %vm456, %v2426, %v2428
      %v2434 = vsel %vm456, %v2428, %v2430
      %2439 = vst [vmem:[#allocation2 + $0x20] sm:$0xff] %v2431
      %2440 = vst [vmem:[#allocation2 + $0x28] sm:$0xff] %v2432
      %2441 = vst [vmem:[#allocation2 + $0x30] sm:$0xff] %v2433
      %2442 = vst [vmem:[#allocation2 + $0x38] sm:$0xff] %v2434
      %2451 = vrot.lane.b32.xlu0 %v2383, 126
      %v2452 = vpop.permute.xlu0 %2451
      %2453 = vrot.lane.b32.xlu0 %v2367, 126
      %v2454 = vpop.permute.xlu0 %2453
      %2455 = vrot.lane.b32.xlu0 %v2387, 126
      %v2456 = vpop.permute.xlu0 %2455
      %2457 = vrot.lane.b32.xlu0 %v2384, 126
      %v2458 = vpop.permute.xlu0 %2457
      %2459 = vrot.lane.b32.xlu0 %v2368, 126
      %v2460 = vpop.permute.xlu0 %2459
      %2461 = vrot.lane.b32.xlu0 %v2388, 126
      %v2462 = vpop.permute.xlu0 %2461
      %2463 = vrot.lane.b32.xlu0 %v2385, 126
      %v2464 = vpop.permute.xlu0 %2463
      %2465 = vrot.lane.b32.xlu0 %v2369, 126
      %v2466 = vpop.permute.xlu0 %2465
      %2467 = vrot.lane.b32.xlu0 %v2389, 126
      %v2468 = vpop.permute.xlu0 %2467
      %2469 = vrot.lane.b32.xlu0 %v2386, 126
      %v2470 = vpop.permute.xlu0 %2469
      %2471 = vrot.lane.b32.xlu0 %v2370, 126
      %v2472 = vpop.permute.xlu0 %2471
      %2473 = vrot.lane.b32.xlu0 %v2390, 126
      %v2474 = vpop.permute.xlu0 %2473
      %v2475 = vsel %vm501, %v2452, %v2454
      %v2476 = vsel %vm501, %v2454, %v2456
      %v2477 = vsel %vm501, %v2458, %v2460
      %v2478 = vsel %vm501, %v2460, %v2462
      %v2479 = vsel %vm501, %v2464, %v2466
      %v2480 = vsel %vm501, %v2466, %v2468
      %v2481 = vsel %vm501, %v2470, %v2472
      %v2482 = vsel %vm501, %v2472, %v2474
      %v2491 = vsel %vm357, %v2475, 0.0
      %v2492 = vsel %vm358, %v2476, 0.0
      %v2493 = vsel %vm357, %v2477, 0.0
      %v2494 = vsel %vm358, %v2478, 0.0
      %v2495 = vsel %vm357, %v2479, 0.0
      %v2496 = vsel %vm358, %v2480, 0.0
      %v2497 = vsel %vm357, %v2481, 0.0
      %v2498 = vsel %vm358, %v2482, 0.0
      %v2499 = vpack.c.bf16 %v2493, %v2491
      %v2500 = vpack.c.bf16 %v2494, %v2492
      %v2501 = vpack.c.bf16 %v2497, %v2495
      %v2502 = vpack.c.bf16 %v2498, %v2496
      %2503 = vst [vmem:[#allocation2 + $0x40] sm:$0xff] %v2499
      %2504 = vst [vmem:[#allocation2 + $0x48] sm:$0xff] %v2500
      %2505 = vst [vmem:[#allocation2 + $0x50] sm:$0xff] %v2501
      %2506 = vst [vmem:[#allocation2 + $0x58] sm:$0xff] %v2502
      %2507 = vrot.lane.b32.xlu0 %v2383, 112
      %v2508 = vpop.permute.xlu0 %2507
      %2509 = vrot.lane.b32.xlu0 %v2367, 112
      %v2510 = vpop.permute.xlu0 %2509
      %2511 = vrot.lane.b32.xlu0 %v2387, 112
      %v2512 = vpop.permute.xlu0 %2511
      %2513 = vrot.lane.b32.xlu0 %v2384, 112
      %v2514 = vpop.permute.xlu0 %2513
      %2515 = vrot.lane.b32.xlu0 %v2368, 112
      %v2516 = vpop.permute.xlu0 %2515
      %2517 = vrot.lane.b32.xlu0 %v2388, 112
      %v2518 = vpop.permute.xlu0 %2517
      %2519 = vrot.lane.b32.xlu0 %v2385, 112
      %v2520 = vpop.permute.xlu0 %2519
      %2521 = vrot.lane.b32.xlu0 %v2369, 112
      %v2522 = vpop.permute.xlu0 %2521
      %2523 = vrot.lane.b32.xlu0 %v2389, 112
      %v2524 = vpop.permute.xlu0 %2523
      %2525 = vrot.lane.b32.xlu0 %v2386, 112
      %v2526 = vpop.permute.xlu0 %2525
      %2527 = vrot.lane.b32.xlu0 %v2370, 112
      %v2528 = vpop.permute.xlu0 %2527
      %2529 = vrot.lane.b32.xlu0 %v2390, 112
      %v2530 = vpop.permute.xlu0 %2529
      %v2531 = vsel %vm558, %v2508, %v2510
      %v2532 = vsel %vm558, %v2510, %v2512
      %v2533 = vsel %vm558, %v2514, %v2516
      %v2534 = vsel %vm558, %v2516, %v2518
      %v2535 = vsel %vm558, %v2520, %v2522
      %v2536 = vsel %vm558, %v2522, %v2524
      %v2537 = vsel %vm558, %v2526, %v2528
      %v2538 = vsel %vm558, %v2528, %v2530
      %v2547 = vsel %vm355, %v2531, 0.0
      %v2548 = vsel %vm356, %v2532, 0.0
      %v2549 = vsel %vm355, %v2533, 0.0
      %v2550 = vsel %vm356, %v2534, 0.0
      %v2551 = vsel %vm355, %v2535, 0.0
      %v2552 = vsel %vm356, %v2536, 0.0
      %v2553 = vsel %vm355, %v2537, 0.0
      %v2554 = vsel %vm356, %v2538, 0.0
      %v2555 = vpack.c.bf16 %v2549, %v2547
      %v2556 = vpack.c.bf16 %v2550, %v2548
      %v2557 = vpack.c.bf16 %v2553, %v2551
      %v2558 = vpack.c.bf16 %v2554, %v2552
      %2559 = vst [vmem:[#allocation2 + $0x60] sm:$0xff] %v2555
      %2560 = vst [vmem:[#allocation2 + $0x68] sm:$0xff] %v2556
      %2561 = vst [vmem:[#allocation2 + $0x70] sm:$0xff] %v2557
      %2562 = vst [vmem:[#allocation2 + $0x78] sm:$0xff] %v2558
      %2563 = vrot.lane.b32.xlu0 %v2407, 111
      %v2564 = vpop.permute.xlu0 %2563
      %2565 = vrot.lane.b32.xlu0 %v2408, 111
      %v2566 = vpop.permute.xlu0 %2565
      %2567 = vrot.lane.b32.xlu0 %v2409, 111
      %v2568 = vpop.permute.xlu0 %2567
      %2569 = vrot.lane.b32.xlu0 %v2410, 111
      %v2570 = vpop.permute.xlu0 %2569
      %2571 = vrot.lane.b32.xlu0 %v2411, 111
      %v2572 = vpop.permute.xlu0 %2571
      %2573 = vrot.lane.b32.xlu0 %v2412, 111
      %v2574 = vpop.permute.xlu0 %2573
      %v2575 = vsel %vm603, %v2564, %v2566
      %v2576 = vsel %vm603, %v2566, %v2568
      %v2577 = vsel %vm603, %v2570, %v2572
      %v2578 = vsel %vm603, %v2572, %v2574
      %2583 = vst [vmem:[#allocation2 + $0x80] sm:$0xff] %v2575
      %2584 = vst [vmem:[#allocation2 + $0x88] sm:$0xff] %v2576
      %2585 = vst [vmem:[#allocation2 + $0x90] sm:$0xff] %v2577
      %2586 = vst [vmem:[#allocation2 + $0x98] sm:$0xff] %v2578
      %2587 = vrot.lane.b32.xlu0 %v2383, 110
      %v2588 = vpop.permute.xlu0 %2587
      %2589 = vrot.lane.b32.xlu0 %v2367, 110
      %v2590 = vpop.permute.xlu0 %2589
      %2591 = vrot.lane.b32.xlu0 %v2387, 110
      %v2592 = vpop.permute.xlu0 %2591
      %2593 = vrot.lane.b32.xlu0 %v2384, 110
      %v2594 = vpop.permute.xlu0 %2593
      %2595 = vrot.lane.b32.xlu0 %v2368, 110
      %v2596 = vpop.permute.xlu0 %2595
      %2597 = vrot.lane.b32.xlu0 %v2388, 110
      %v2598 = vpop.permute.xlu0 %2597
      %2599 = vrot.lane.b32.xlu0 %v2385, 110
      %v2600 = vpop.permute.xlu0 %2599
      %2601 = vrot.lane.b32.xlu0 %v2369, 110
      %v2602 = vpop.permute.xlu0 %2601
      %2603 = vrot.lane.b32.xlu0 %v2389, 110
      %v2604 = vpop.permute.xlu0 %2603
      %2605 = vrot.lane.b32.xlu0 %v2386, 110
      %v2606 = vpop.permute.xlu0 %2605
      %2607 = vrot.lane.b32.xlu0 %v2370, 110
      %v2608 = vpop.permute.xlu0 %2607
      %2609 = vrot.lane.b32.xlu0 %v2390, 110
      %v2610 = vpop.permute.xlu0 %2609
      %v2611 = vsel %vm640, %v2588, %v2590
      %v2612 = vsel %vm640, %v2590, %v2592
      %v2613 = vsel %vm640, %v2594, %v2596
      %v2614 = vsel %vm640, %v2596, %v2598
      %v2615 = vsel %vm640, %v2600, %v2602
      %v2616 = vsel %vm640, %v2602, %v2604
      %v2617 = vsel %vm640, %v2606, %v2608
      %v2618 = vsel %vm640, %v2608, %v2610
      %v2627 = vsel %vm357, %v2611, 0.0
      %v2628 = vsel %vm358, %v2612, 0.0
      %v2629 = vsel %vm357, %v2613, 0.0
      %v2630 = vsel %vm358, %v2614, 0.0
      %v2631 = vsel %vm357, %v2615, 0.0
      %v2632 = vsel %vm358, %v2616, 0.0
      %v2633 = vsel %vm357, %v2617, 0.0
      %v2634 = vsel %vm358, %v2618, 0.0
      %v2635 = vpack.c.bf16 %v2629, %v2627
      %v2636 = vpack.c.bf16 %v2630, %v2628
      %v2637 = vpack.c.bf16 %v2633, %v2631
      %v2638 = vpack.c.bf16 %v2634, %v2632
      %2639 = vst [vmem:[#allocation2 + $0xa0] sm:$0xff] %v2635
      %2640 = vst [vmem:[#allocation2 + $0xa8] sm:$0xff] %v2636
      %2641 = vst [vmem:[#allocation2 + $0xb0] sm:$0xff] %v2637
      %2642 = vst [vmem:[#allocation2 + $0xb8] sm:$0xff] %v2638
      %2643 = vrot.lane.b32.xlu0 %v2383, 96
      %v2644 = vpop.permute.xlu0 %2643
      %2645 = vrot.lane.b32.xlu0 %v2367, 96
      %v2646 = vpop.permute.xlu0 %2645
      %2647 = vrot.lane.b32.xlu0 %v2387, 96
      %v2648 = vpop.permute.xlu0 %2647
      %2649 = vrot.lane.b32.xlu0 %v2384, 96
      %v2650 = vpop.permute.xlu0 %2649
      %2651 = vrot.lane.b32.xlu0 %v2368, 96
      %v2652 = vpop.permute.xlu0 %2651
      %2653 = vrot.lane.b32.xlu0 %v2388, 96
      %v2654 = vpop.permute.xlu0 %2653
      %2655 = vrot.lane.b32.xlu0 %v2385, 96
      %v2656 = vpop.permute.xlu0 %2655
      %2657 = vrot.lane.b32.xlu0 %v2369, 96
      %v2658 = vpop.permute.xlu0 %2657
      %2659 = vrot.lane.b32.xlu0 %v2389, 96
      %v2660 = vpop.permute.xlu0 %2659
      %2661 = vrot.lane.b32.xlu0 %v2386, 96
      %v2662 = vpop.permute.xlu0 %2661
      %2663 = vrot.lane.b32.xlu0 %v2370, 96
      %v2664 = vpop.permute.xlu0 %2663
      %2665 = vrot.lane.b32.xlu0 %v2390, 96
      %v2666 = vpop.permute.xlu0 %2665
      %v2667 = vsel %vm697, %v2644, %v2646
      %v2668 = vsel %vm697, %v2646, %v2648
      %v2669 = vsel %vm697, %v2650, %v2652
      %v2670 = vsel %vm697, %v2652, %v2654
      %v2671 = vsel %vm697, %v2656, %v2658
      %v2672 = vsel %vm697, %v2658, %v2660
      %v2673 = vsel %vm697, %v2662, %v2664
      %v2674 = vsel %vm697, %v2664, %v2666
      %v2683 = vsel %vm355, %v2667, 0.0
      %v2684 = vsel %vm356, %v2668, 0.0
      %v2685 = vsel %vm355, %v2669, 0.0
      %v2686 = vsel %vm356, %v2670, 0.0
      %v2687 = vsel %vm355, %v2671, 0.0
      %v2688 = vsel %vm356, %v2672, 0.0
      %v2689 = vsel %vm355, %v2673, 0.0
      %v2690 = vsel %vm356, %v2674, 0.0
      %v2691 = vpack.c.bf16 %v2685, %v2683
      %v2692 = vpack.c.bf16 %v2686, %v2684
      %v2693 = vpack.c.bf16 %v2689, %v2687
      %v2694 = vpack.c.bf16 %v2690, %v2688
      %2695 = vst [vmem:[#allocation2 + $0xc0] sm:$0xff] %v2691
      %2696 = vst [vmem:[#allocation2 + $0xc8] sm:$0xff] %v2692
      %2697 = vst [vmem:[#allocation2 + $0xd0] sm:$0xff] %v2693
      %2698 = vst [vmem:[#allocation2 + $0xd8] sm:$0xff] %v2694
      %2699 = vrot.lane.b32.xlu0 %v2407, 95
      %v2700 = vpop.permute.xlu0 %2699
      %2701 = vrot.lane.b32.xlu0 %v2408, 95
      %v2702 = vpop.permute.xlu0 %2701
      %2703 = vrot.lane.b32.xlu0 %v2409, 95
      %v2704 = vpop.permute.xlu0 %2703
      %2705 = vrot.lane.b32.xlu0 %v2410, 95
      %v2706 = vpop.permute.xlu0 %2705
      %2707 = vrot.lane.b32.xlu0 %v2411, 95
      %v2708 = vpop.permute.xlu0 %2707
      %2709 = vrot.lane.b32.xlu0 %v2412, 95
      %v2710 = vpop.permute.xlu0 %2709
      %v2711 = vsel %vm742, %v2700, %v2702
      %v2712 = vsel %vm742, %v2702, %v2704
      %v2713 = vsel %vm742, %v2706, %v2708
      %v2714 = vsel %vm742, %v2708, %v2710
      %2719 = vst [vmem:[#allocation2 + $0xe0] sm:$0xff] %v2711
      %2720 = vst [vmem:[#allocation2 + $0xe8] sm:$0xff] %v2712
      %2721 = vst [vmem:[#allocation2 + $0xf0] sm:$0xff] %v2713
      %2722 = vst [vmem:[#allocation2 + $0xf8] sm:$0xff] %v2714
      %2723 = vrot.lane.b32.xlu0 %v2383, 94
      %v2724 = vpop.permute.xlu0 %2723
      %2725 = vrot.lane.b32.xlu0 %v2367, 94
      %v2726 = vpop.permute.xlu0 %2725
      %2727 = vrot.lane.b32.xlu0 %v2387, 94
      %v2728 = vpop.permute.xlu0 %2727
      %2729 = vrot.lane.b32.xlu0 %v2384, 94
      %v2730 = vpop.permute.xlu0 %2729
      %2731 = vrot.lane.b32.xlu0 %v2368, 94
      %v2732 = vpop.permute.xlu0 %2731
      %2733 = vrot.lane.b32.xlu0 %v2388, 94
      %v2734 = vpop.permute.xlu0 %2733
      %2735 = vrot.lane.b32.xlu0 %v2385, 94
      %v2736 = vpop.permute.xlu0 %2735
      %2737 = vrot.lane.b32.xlu0 %v2369, 94
      %v2738 = vpop.permute.xlu0 %2737
      %2739 = vrot.lane.b32.xlu0 %v2389, 94
      %v2740 = vpop.permute.xlu0 %2739
      %2741 = vrot.lane.b32.xlu0 %v2386, 94
      %v2742 = vpop.permute.xlu0 %2741
      %2743 = vrot.lane.b32.xlu0 %v2370, 94
      %v2744 = vpop.permute.xlu0 %2743
      %2745 = vrot.lane.b32.xlu0 %v2390, 94
      %v2746 = vpop.permute.xlu0 %2745
      %v2747 = vsel %vm779, %v2724, %v2726
      %v2748 = vsel %vm779, %v2726, %v2728
      %v2749 = vsel %vm779, %v2730, %v2732
      %v2750 = vsel %vm779, %v2732, %v2734
      %v2751 = vsel %vm779, %v2736, %v2738
      %v2752 = vsel %vm779, %v2738, %v2740
      %v2753 = vsel %vm779, %v2742, %v2744
      %v2754 = vsel %vm779, %v2744, %v2746
      %v2763 = vsel %vm357, %v2747, 0.0
      %v2764 = vsel %vm358, %v2748, 0.0
      %v2765 = vsel %vm357, %v2749, 0.0
      %v2766 = vsel %vm358, %v2750, 0.0
      %v2767 = vsel %vm357, %v2751, 0.0
      %v2768 = vsel %vm358, %v2752, 0.0
      %v2769 = vsel %vm357, %v2753, 0.0
      %v2770 = vsel %vm358, %v2754, 0.0
      %v2771 = vpack.c.bf16 %v2765, %v2763
      %v2772 = vpack.c.bf16 %v2766, %v2764
      %v2773 = vpack.c.bf16 %v2769, %v2767
      %v2774 = vpack.c.bf16 %v2770, %v2768
      %2775 = vst [vmem:[#allocation2 + $0x100] sm:$0xff] %v2771
      %2776 = vst [vmem:[#allocation2 + $0x108] sm:$0xff] %v2772
      %2777 = vst [vmem:[#allocation2 + $0x110] sm:$0xff] %v2773
      %2778 = vst [vmem:[#allocation2 + $0x118] sm:$0xff] %v2774
      %s2779 = scalar_lea.vmem %s302, 144
      %v2780 = vld [vmem:[%s2779] sm:$0xff]
      %v2781 = vld [vmem:[%s2779 + $0x8] sm:$0xf]
      %v2782 = vld [vmem:[%s2779 + $0xc] sm:$0xff]
      %v2783 = vld [vmem:[%s2779 + $0x14] sm:$0xf]
      %v2784 = vld [vmem:[%s2779 + $0x18] sm:$0xff]
      %v2785 = vld [vmem:[%s2779 + $0x20] sm:$0xf]
      %v2786 = vld [vmem:[%s2779 + $0x24] sm:$0xff]
      %v2787 = vld [vmem:[%s2779 + $0x2c] sm:$0xf]
      %v2788 = vld [vmem:[#allocation2] sm:$0xff]
      %v2789 = vld [vmem:[#allocation2 + $0x8] sm:$0xff]
      %v2790 = vld [vmem:[#allocation2 + $0x10] sm:$0xff]
      %v2791 = vld [vmem:[#allocation2 + $0x18] sm:$0xff]
      %v2792 = vld [vmem:[#allocation2 + $0x20] sm:$0xff]
      %v2793 = vld [vmem:[#allocation2 + $0x28] sm:$0xff]
      %v2794 = vld [vmem:[#allocation2 + $0x30] sm:$0xff]
      %v2795 = vld [vmem:[#allocation2 + $0x38] sm:$0xff]
      %v2796 = vld [vmem:[#allocation2 + $0x40] sm:$0xff]
      %v2797 = vld [vmem:[#allocation2 + $0x48] sm:$0xff]
      %v2798 = vld [vmem:[#allocation2 + $0x50] sm:$0xff]
      %v2799 = vld [vmem:[#allocation2 + $0x58] sm:$0xff]
      %v2800 = vld [vmem:[#allocation2 + $0x60] sm:$0xff]
      %v2801 = vld [vmem:[#allocation2 + $0x68] sm:$0xff]
      %v2802 = vld [vmem:[#allocation2 + $0x70] sm:$0xff]
      %v2803 = vld [vmem:[#allocation2 + $0x78] sm:$0xff]
      %v2804 = vld [vmem:[#allocation2 + $0x80] sm:$0xff]
      %v2805 = vld [vmem:[#allocation2 + $0x88] sm:$0xff]
      %v2806 = vld [vmem:[#allocation2 + $0x90] sm:$0xff]
      %v2807 = vld [vmem:[#allocation2 + $0x98] sm:$0xff]
      %v2808 = vld [vmem:[#allocation2 + $0xa0] sm:$0xff]
      %v2809 = vld [vmem:[#allocation2 + $0xa8] sm:$0xff]
      %v2810 = vld [vmem:[#allocation2 + $0xb0] sm:$0xff]
      %v2811 = vld [vmem:[#allocation2 + $0xb8] sm:$0xff]
      %v2812 = vld [vmem:[#allocation2 + $0xc0] sm:$0xff]
      %v2813 = vld [vmem:[#allocation2 + $0xc8] sm:$0xff]
      %v2814 = vld [vmem:[#allocation2 + $0xd0] sm:$0xff]
      %v2815 = vld [vmem:[#allocation2 + $0xd8] sm:$0xff]
      %v2816 = vld [vmem:[#allocation2 + $0xe0] sm:$0xff]
      %v2817 = vld [vmem:[#allocation2 + $0xe8] sm:$0xff]
      %v2818 = vld [vmem:[#allocation2 + $0xf0] sm:$0xff]
      %v2819 = vld [vmem:[#allocation2 + $0xf8] sm:$0xff]
      %v2820 = vld [vmem:[#allocation2 + $0x100] sm:$0xff]
      %v2821 = vld [vmem:[#allocation2 + $0x108] sm:$0xff]
      %v2822 = vld [vmem:[#allocation2 + $0x110] sm:$0xff]
      %v2823 = vld [vmem:[#allocation2 + $0x118] sm:$0xff]
      %s2824 = scalar_lea.vmem %s307, 96
      %v2825 = vld [vmem:[%s2824] sm:$0xff]
      %v2826 = vld [vmem:[%s2824 + $0x8] sm:$0xff]
      %v2827 = vld [vmem:[%s2824 + $0x10] sm:$0xff]
      %v2828 = vld [vmem:[%s2824 + $0x18] sm:$0xff]
      %2830 = vset.pattern.permute.xlu0 0
      %2831 = vperm.xlu0 %2830, %v2825
      %v2832 = vpop.permute.xlu0 %2831
      %2835 = vset.pattern.permute.xlu0 0
      %2836 = vperm.xlu0 %2835, %v2826
      %v2837 = vpop.permute.xlu0 %2836
      %2840 = vset.pattern.permute.xlu0 0
      %2841 = vperm.xlu0 %2840, %v2827
      %v2842 = vpop.permute.xlu0 %2841
      %2845 = vset.pattern.permute.xlu0 0
      %2846 = vperm.xlu0 %2845, %v2828
      %v2847 = vpop.permute.xlu0 %2846
      %v2857 = vunpack.c.l.b16 %v2780
      %v2858 = vunpack.c.h.b16 %v2780
      %v2859 = vunpack.c.l.b16 %v2781
      %v2860 = vunpack.c.l.b16 %v2782
      %v2861 = vunpack.c.h.b16 %v2782
      %v2862 = vunpack.c.l.b16 %v2783
      %v2863 = vunpack.c.l.b16 %v2784
      %v2864 = vunpack.c.h.b16 %v2784
      %v2865 = vunpack.c.l.b16 %v2785
      %v2866 = vunpack.c.l.b16 %v2786
      %v2867 = vunpack.c.h.b16 %v2786
      %v2868 = vunpack.c.l.b16 %v2787
      %v2869 = vpack.c.b16 %v2860, %v2857
      %v2870 = vpack.c.b16 %v2861, %v2858
      %v2871 = vpack.c.b16 %v2862, %v2859
      %v2872 = vpack.c.b16 %v2866, %v2863
      %v2873 = vpack.c.b16 %v2867, %v2864
      %v2874 = vpack.c.b16 %v2868, %v2865
      %v2880 = vsel %vm910, %v2871, 0
      %v2883 = vsel %vm910, %v2874, 0
      %2885 = vmatprep.subr.bf16.mxu0 %v2789
      %2886 = vmatpush1.bf16.msra.mxu0 %v2788
      %2887 = vmatprep.subr.bf16.mxu0 %v2791
      %2888 = vmatpush1.bf16.msra.mxu0 %v2790
      %2889 = vmatprep.subr.bf16.mxu0 %v2793
      %2890 = vmatpush1.bf16.msra.mxu0 %v2792
      %2891 = vmatprep.subr.bf16.mxu0 %v2795
      %2892 = vmatpush1.bf16.msra.mxu0 %v2794
      %2893 = vmatprep.subr.bf16.mxu0 %v2797
      %2894 = vmatpush1.bf16.msra.mxu0 %v2796
      %2895 = vmatprep.subr.bf16.mxu0 %v2799
      %2896 = vmatpush1.bf16.msra.mxu0 %v2798
      %2897 = vmatprep.subr.bf16.mxu0 %v2801
      %2898 = vmatpush1.bf16.msra.mxu0 %v2800
      %2899 = vmatprep.subr.bf16.mxu0 %v2803
      %2900 = vmatpush1.bf16.msra.mxu0 %v2802
      %2901 = vmatprep.subr.bf16.mxu0 %v2805
      %2902 = vmatpush1.bf16.msra.mxu0 %v2804
      %2903 = vmatprep.subr.bf16.mxu0 %v2807
      %2904 = vmatpush1.bf16.msra.mxu0 %v2806
      %2905 = vmatprep.subr.bf16.mxu0 %v2809
      %2906 = vmatpush1.bf16.msra.mxu0 %v2808
      %2907 = vmatprep.subr.bf16.mxu0 %v2811
      %2908 = vmatpush1.bf16.msra.mxu0 %v2810
      %2909 = vmatprep.subr.bf16.mxu0 %v2813
      %2910 = vmatpush1.bf16.msra.mxu0 %v2812
      %2911 = vmatprep.subr.bf16.mxu0 %v2815
      %2912 = vmatpush1.bf16.msra.mxu0 %v2814
      %2913 = vmatprep.subr.bf16.mxu0 %v2817
      %2914 = vmatpush1.bf16.msra.mxu0 %v2816
      %2915 = vmatprep.subr.bf16.mxu0 %v2819
      %2916 = vmatpush1.bf16.msra.mxu0 %v2818
      %2917 = vmatprep.mubr.bf16.mxu0 %v2870
      %2918 = vmatmul.mubr.bf16.gmra.mrb[0].mxu0 %v2869
      %v2919 = vpop.f32.mrb[0].mxu0
      %v2920 = vadd.f32 %v2832, %v2919
      %v2921 = vpop.f32.mrb[0].mxu0
      %v2922 = vadd.f32 %v2832, %v2921
      %v2923 = vpop.f32.mrb[0].mxu0
      %v2924 = vadd.f32 %v2837, %v2923
      %v2925 = vpop.f32.mrb[0].mxu0
      %v2926 = vadd.f32 %v2837, %v2925
      %2927 = vmatprep.mubr.bf16.mxu0 %v2873
      %2928 = vmatmul.mubr.bf16.gmra.mrb[0].mxu0 %v2872
      %v2929 = vpop.f32.mrb[0].mxu0
      %v2930 = vadd.f32 %v2842, %v2929
      %v2931 = vpop.f32.mrb[0].mxu0
      %v2932 = vadd.f32 %v2842, %v2931
      %v2933 = vpop.f32.mrb[0].mxu0
      %v2934 = vadd.f32 %v2847, %v2933
      %v2935 = vpop.f32.mrb[0].mxu0
      %v2936 = vadd.f32 %v2847, %v2935
      %2937 = vdwg.mxu0
      %2938 = vmatprep.subr.bf16.mxu0 %v2821
      %2939 = vmatpush1.bf16.msra.mxu0 %v2820
      %2940 = vmatprep.subr.bf16.mxu0 %v2823
      %2941 = vmatpush1.bf16.msra.mxu0 %v2822
      %2942 = vmatprep.subr.bf16.mxu0 0
      %2943 = vmatpush1.bf16.msra.mxu0 0
      %2944 = vmatprep.subr.bf16.mxu0 0
      %2945 = vmatpush1.bf16.msra.mxu0 0
      %2946 = vmatprep.subr.bf16.mxu0 0
      %2947 = vmatpush1.bf16.msra.mxu0 0
      %2948 = vmatprep.subr.bf16.mxu0 0
      %2949 = vmatpush1.bf16.msra.mxu0 0
      %2950 = vmatprep.subr.bf16.mxu0 0
      %2951 = vmatpush1.bf16.msra.mxu0 0
      %2952 = vmatprep.subr.bf16.mxu0 0
      %2953 = vmatpush1.bf16.msra.mxu0 0
      %2954 = vmatprep.subr.bf16.mxu0 0
      %2955 = vmatpush1.bf16.msra.mxu0 0
      %2956 = vmatprep.subr.bf16.mxu0 0
      %2957 = vmatpush1.bf16.msra.mxu0 0
      %2958 = vmatprep.subr.bf16.mxu0 0
      %2959 = vmatpush1.bf16.msra.mxu0 0
      %2960 = vmatprep.subr.bf16.mxu0 0
      %2961 = vmatpush1.bf16.msra.mxu0 0
      %2962 = vmatprep.subr.bf16.mxu0 0
      %2963 = vmatpush1.bf16.msra.mxu0 0
      %2964 = vmatprep.subr.bf16.mxu0 0
      %2965 = vmatpush1.bf16.msra.mxu0 0
      %2966 = vmatprep.subr.bf16.mxu0 0
      %2967 = vmatpush1.bf16.msra.mxu0 0
      %2968 = vmatprep.subr.bf16.mxu0 0
      %2969 = vmatpush1.bf16.msra.mxu0 0
      %2970 = vmatprep.mubr.bf16.mxu0 0
      %2971 = vmatmul.mubr.bf16.gmra.mrb[0].mxu0 %v2880
      %v2972 = vpop.f32.mrb[0].mxu0
      %v2973 = vadd.f32 %v2920, %v2972
      %v2974 = vpop.f32.mrb[0].mxu0
      %v2975 = vadd.f32 %v2922, %v2974
      %v2976 = vpop.f32.mrb[0].mxu0
      %v2977 = vadd.f32 %v2924, %v2976
      %v2978 = vpop.f32.mrb[0].mxu0
      %v2979 = vadd.f32 %v2926, %v2978
      %2980 = vmatprep.mubr.bf16.mxu0 0
      %2981 = vmatmul.mubr.bf16.gmra.mrb[0].mxu0 %v2883
      %v2982 = vpop.f32.mrb[0].mxu0
      %v2983 = vadd.f32 %v2930, %v2982
      %v2984 = vpop.f32.mrb[0].mxu0
      %v2985 = vadd.f32 %v2932, %v2984
      %v2986 = vpop.f32.mrb[0].mxu0
      %v2987 = vadd.f32 %v2934, %v2986
      %v2988 = vpop.f32.mrb[0].mxu0
      %v2989 = vadd.f32 %v2936, %v2988
      %2990 = vdwg.mxu0
      %v2991 = vmax.f32 %v2973, 0.0
      %v2992 = vmax.f32 %v2975, 0.0
      %v2993 = vmax.f32 %v2977, 0.0
      %v2994 = vmax.f32 %v2979, 0.0
      %v2995 = vmax.f32 %v2983, 0.0
      %v2996 = vmax.f32 %v2985, 0.0
      %v2997 = vmax.f32 %v2987, 0.0
      %v2998 = vmax.f32 %v2989, 0.0
      %3007 = vrot.lane.b32.xlu0 %v2991, 17
      %v3008 = vpop.permute.xlu0 %3007
      %3009 = vrot.lane.b32.xlu0 %v2992, 17
      %v3010 = vpop.permute.xlu0 %3009
      %3011 = vrot.lane.b32.xlu0 %v2993, 17
      %v3012 = vpop.permute.xlu0 %3011
      %3013 = vrot.lane.b32.xlu0 %v2994, 17
      %v3014 = vpop.permute.xlu0 %3013
      %3015 = vrot.lane.b32.xlu0 %v2995, 17
      %v3016 = vpop.permute.xlu0 %3015
      %3017 = vrot.lane.b32.xlu0 %v2996, 17
      %v3018 = vpop.permute.xlu0 %3017
      %3019 = vrot.lane.b32.xlu0 %v2997, 17
      %v3020 = vpop.permute.xlu0 %3019
      %3021 = vrot.lane.b32.xlu0 %v2998, 17
      %v3022 = vpop.permute.xlu0 %3021
      %v3023 = vsel %vm391, %v3008, %v3010
      %v3024 = vsel %vm391, %v3012, %v3014
      %v3025 = vsel %vm391, %v3016, %v3018
      %v3026 = vsel %vm391, %v3020, %v3022
      %v3039 = vsel %vm391, 0.0, %v3008
      %v3040 = vsel %vm391, 0.0, %v3012
      %v3041 = vsel %vm391, 0.0, %v3016
      %v3042 = vsel %vm391, 0.0, %v3020
      %v3043 = vsel %vm391, %v3010, 0.0
      %v3044 = vsel %vm391, %v3014, 0.0
      %v3045 = vsel %vm391, %v3018, 0.0
      %v3046 = vsel %vm391, %v3022, 0.0
      %v3047 = vsel %vm355, %v3039, 0.0
      %v3048 = vsel %vm356, %v3023, 0.0
      %v3049 = vsel %vm355, %v3040, 0.0
      %v3050 = vsel %vm356, %v3024, 0.0
      %v3051 = vsel %vm355, %v3041, 0.0
      %v3052 = vsel %vm356, %v3025, 0.0
      %v3053 = vsel %vm355, %v3042, 0.0
      %v3054 = vsel %vm356, %v3026, 0.0
      %v3055 = vpack.c.bf16 %v3049, %v3047
      %v3056 = vpack.c.bf16 %v3050, %v3048
      %v3057 = vpack.c.bf16 %v3053, %v3051
      %v3058 = vpack.c.bf16 %v3054, %v3052
      %3059 = vst [vmem:[#allocation2] sm:$0xff] %v3055
      %3060 = vst [vmem:[#allocation2 + $0x8] sm:$0xff] %v3056
      %3061 = vst [vmem:[#allocation2 + $0x10] sm:$0xff] %v3057
      %3062 = vst [vmem:[#allocation2 + $0x18] sm:$0xff] %v3058
      %v3063 = vpack.c.bf16 %v3040, %v3039
      %v3064 = vpack.c.bf16 %v3024, %v3023
      %v3065 = vpack.c.bf16 %v3044, %v3043
      %v3066 = vpack.c.bf16 %v3042, %v3041
      %v3067 = vpack.c.bf16 %v3026, %v3025
      %v3068 = vpack.c.bf16 %v3046, %v3045
      %3075 = vrot.lane.b32.xlu0 %v3063, 127
      %v3076 = vpop.permute.xlu0 %3075
      %3077 = vrot.lane.b32.xlu0 %v3064, 127
      %v3078 = vpop.permute.xlu0 %3077
      %3079 = vrot.lane.b32.xlu0 %v3065, 127
      %v3080 = vpop.permute.xlu0 %3079
      %3081 = vrot.lane.b32.xlu0 %v3066, 127
      %v3082 = vpop.permute.xlu0 %3081
      %3083 = vrot.lane.b32.xlu0 %v3067, 127
      %v3084 = vpop.permute.xlu0 %3083
      %3085 = vrot.lane.b32.xlu0 %v3068, 127
      %v3086 = vpop.permute.xlu0 %3085
      %v3087 = vsel %vm456, %v3076, %v3078
      %v3088 = vsel %vm456, %v3078, %v3080
      %v3089 = vsel %vm456, %v3082, %v3084
      %v3090 = vsel %vm456, %v3084, %v3086
      %3095 = vst [vmem:[#allocation2 + $0x20] sm:$0xff] %v3087
      %3096 = vst [vmem:[#allocation2 + $0x28] sm:$0xff] %v3088
      %3097 = vst [vmem:[#allocation2 + $0x30] sm:$0xff] %v3089
      %3098 = vst [vmem:[#allocation2 + $0x38] sm:$0xff] %v3090
      %3107 = vrot.lane.b32.xlu0 %v3039, 126
      %v3108 = vpop.permute.xlu0 %3107
      %3109 = vrot.lane.b32.xlu0 %v3023, 126
      %v3110 = vpop.permute.xlu0 %3109
      %3111 = vrot.lane.b32.xlu0 %v3043, 126
      %v3112 = vpop.permute.xlu0 %3111
      %3113 = vrot.lane.b32.xlu0 %v3040, 126
      %v3114 = vpop.permute.xlu0 %3113
      %3115 = vrot.lane.b32.xlu0 %v3024, 126
      %v3116 = vpop.permute.xlu0 %3115
      %3117 = vrot.lane.b32.xlu0 %v3044, 126
      %v3118 = vpop.permute.xlu0 %3117
      %3119 = vrot.lane.b32.xlu0 %v3041, 126
      %v3120 = vpop.permute.xlu0 %3119
      %3121 = vrot.lane.b32.xlu0 %v3025, 126
      %v3122 = vpop.permute.xlu0 %3121
      %3123 = vrot.lane.b32.xlu0 %v3045, 126
      %v3124 = vpop.permute.xlu0 %3123
      %3125 = vrot.lane.b32.xlu0 %v3042, 126
      %v3126 = vpop.permute.xlu0 %3125
      %3127 = vrot.lane.b32.xlu0 %v3026, 126
      %v3128 = vpop.permute.xlu0 %3127
      %3129 = vrot.lane.b32.xlu0 %v3046, 126
      %v3130 = vpop.permute.xlu0 %3129
      %v3131 = vsel %vm501, %v3108, %v3110
      %v3132 = vsel %vm501, %v3110, %v3112
      %v3133 = vsel %vm501, %v3114, %v3116
      %v3134 = vsel %vm501, %v3116, %v3118
      %v3135 = vsel %vm501, %v3120, %v3122
      %v3136 = vsel %vm501, %v3122, %v3124
      %v3137 = vsel %vm501, %v3126, %v3128
      %v3138 = vsel %vm501, %v3128, %v3130
      %v3147 = vsel %vm357, %v3131, 0.0
      %v3148 = vsel %vm358, %v3132, 0.0
      %v3149 = vsel %vm357, %v3133, 0.0
      %v3150 = vsel %vm358, %v3134, 0.0
      %v3151 = vsel %vm357, %v3135, 0.0
      %v3152 = vsel %vm358, %v3136, 0.0
      %v3153 = vsel %vm357, %v3137, 0.0
      %v3154 = vsel %vm358, %v3138, 0.0
      %v3155 = vpack.c.bf16 %v3149, %v3147
      %v3156 = vpack.c.bf16 %v3150, %v3148
      %v3157 = vpack.c.bf16 %v3153, %v3151
      %v3158 = vpack.c.bf16 %v3154, %v3152
      %3159 = vst [vmem:[#allocation2 + $0x40] sm:$0xff] %v3155
      %3160 = vst [vmem:[#allocation2 + $0x48] sm:$0xff] %v3156
      %3161 = vst [vmem:[#allocation2 + $0x50] sm:$0xff] %v3157
      %3162 = vst [vmem:[#allocation2 + $0x58] sm:$0xff] %v3158
      %3163 = vrot.lane.b32.xlu0 %v3039, 112
      %v3164 = vpop.permute.xlu0 %3163
      %3165 = vrot.lane.b32.xlu0 %v3023, 112
      %v3166 = vpop.permute.xlu0 %3165
      %3167 = vrot.lane.b32.xlu0 %v3043, 112
      %v3168 = vpop.permute.xlu0 %3167
      %3169 = vrot.lane.b32.xlu0 %v3040, 112
      %v3170 = vpop.permute.xlu0 %3169
      %3171 = vrot.lane.b32.xlu0 %v3024, 112
      %v3172 = vpop.permute.xlu0 %3171
      %3173 = vrot.lane.b32.xlu0 %v3044, 112
      %v3174 = vpop.permute.xlu0 %3173
      %3175 = vrot.lane.b32.xlu0 %v3041, 112
      %v3176 = vpop.permute.xlu0 %3175
      %3177 = vrot.lane.b32.xlu0 %v3025, 112
      %v3178 = vpop.permute.xlu0 %3177
      %3179 = vrot.lane.b32.xlu0 %v3045, 112
      %v3180 = vpop.permute.xlu0 %3179
      %3181 = vrot.lane.b32.xlu0 %v3042, 112
      %v3182 = vpop.permute.xlu0 %3181
      %3183 = vrot.lane.b32.xlu0 %v3026, 112
      %v3184 = vpop.permute.xlu0 %3183
      %3185 = vrot.lane.b32.xlu0 %v3046, 112
      %v3186 = vpop.permute.xlu0 %3185
      %v3187 = vsel %vm558, %v3164, %v3166
      %v3188 = vsel %vm558, %v3166, %v3168
      %v3189 = vsel %vm558, %v3170, %v3172
      %v3190 = vsel %vm558, %v3172, %v3174
      %v3191 = vsel %vm558, %v3176, %v3178
      %v3192 = vsel %vm558, %v3178, %v3180
      %v3193 = vsel %vm558, %v3182, %v3184
      %v3194 = vsel %vm558, %v3184, %v3186
      %v3203 = vsel %vm355, %v3187, 0.0
      %v3204 = vsel %vm356, %v3188, 0.0
      %v3205 = vsel %vm355, %v3189, 0.0
      %v3206 = vsel %vm356, %v3190, 0.0
      %v3207 = vsel %vm355, %v3191, 0.0
      %v3208 = vsel %vm356, %v3192, 0.0
      %v3209 = vsel %vm355, %v3193, 0.0
      %v3210 = vsel %vm356, %v3194, 0.0
      %v3211 = vpack.c.bf16 %v3205, %v3203
      %v3212 = vpack.c.bf16 %v3206, %v3204
      %v3213 = vpack.c.bf16 %v3209, %v3207
      %v3214 = vpack.c.bf16 %v3210, %v3208
      %3215 = vst [vmem:[#allocation2 + $0x60] sm:$0xff] %v3211
      %3216 = vst [vmem:[#allocation2 + $0x68] sm:$0xff] %v3212
      %3217 = vst [vmem:[#allocation2 + $0x70] sm:$0xff] %v3213
      %3218 = vst [vmem:[#allocation2 + $0x78] sm:$0xff] %v3214
      %3219 = vrot.lane.b32.xlu0 %v3063, 111
      %v3220 = vpop.permute.xlu0 %3219
      %3221 = vrot.lane.b32.xlu0 %v3064, 111
      %v3222 = vpop.permute.xlu0 %3221
      %3223 = vrot.lane.b32.xlu0 %v3065, 111
      %v3224 = vpop.permute.xlu0 %3223
      %3225 = vrot.lane.b32.xlu0 %v3066, 111
      %v3226 = vpop.permute.xlu0 %3225
      %3227 = vrot.lane.b32.xlu0 %v3067, 111
      %v3228 = vpop.permute.xlu0 %3227
      %3229 = vrot.lane.b32.xlu0 %v3068, 111
      %v3230 = vpop.permute.xlu0 %3229
      %v3231 = vsel %vm603, %v3220, %v3222
      %v3232 = vsel %vm603, %v3222, %v3224
      %v3233 = vsel %vm603, %v3226, %v3228
      %v3234 = vsel %vm603, %v3228, %v3230
      %3239 = vst [vmem:[#allocation2 + $0x80] sm:$0xff] %v3231
      %3240 = vst [vmem:[#allocation2 + $0x88] sm:$0xff] %v3232
      %3241 = vst [vmem:[#allocation2 + $0x90] sm:$0xff] %v3233
      %3242 = vst [vmem:[#allocation2 + $0x98] sm:$0xff] %v3234
      %3243 = vrot.lane.b32.xlu0 %v3039, 110
      %v3244 = vpop.permute.xlu0 %3243
      %3245 = vrot.lane.b32.xlu0 %v3023, 110
      %v3246 = vpop.permute.xlu0 %3245
      %3247 = vrot.lane.b32.xlu0 %v3043, 110
      %v3248 = vpop.permute.xlu0 %3247
      %3249 = vrot.lane.b32.xlu0 %v3040, 110
      %v3250 = vpop.permute.xlu0 %3249
      %3251 = vrot.lane.b32.xlu0 %v3024, 110
      %v3252 = vpop.permute.xlu0 %3251
      %3253 = vrot.lane.b32.xlu0 %v3044, 110
      %v3254 = vpop.permute.xlu0 %3253
      %3255 = vrot.lane.b32.xlu0 %v3041, 110
      %v3256 = vpop.permute.xlu0 %3255
      %3257 = vrot.lane.b32.xlu0 %v3025, 110
      %v3258 = vpop.permute.xlu0 %3257
      %3259 = vrot.lane.b32.xlu0 %v3045, 110
      %v3260 = vpop.permute.xlu0 %3259
      %3261 = vrot.lane.b32.xlu0 %v3042, 110
      %v3262 = vpop.permute.xlu0 %3261
      %3263 = vrot.lane.b32.xlu0 %v3026, 110
      %v3264 = vpop.permute.xlu0 %3263
      %3265 = vrot.lane.b32.xlu0 %v3046, 110
      %v3266 = vpop.permute.xlu0 %3265
      %v3267 = vsel %vm640, %v3244, %v3246
      %v3268 = vsel %vm640, %v3246, %v3248
      %v3269 = vsel %vm640, %v3250, %v3252
      %v3270 = vsel %vm640, %v3252, %v3254
      %v3271 = vsel %vm640, %v3256, %v3258
      %v3272 = vsel %vm640, %v3258, %v3260
      %v3273 = vsel %vm640, %v3262, %v3264
      %v3274 = vsel %vm640, %v3264, %v3266
      %v3283 = vsel %vm357, %v3267, 0.0
      %v3284 = vsel %vm358, %v3268, 0.0
      %v3285 = vsel %vm357, %v3269, 0.0
      %v3286 = vsel %vm358, %v3270, 0.0
      %v3287 = vsel %vm357, %v3271, 0.0
      %v3288 = vsel %vm358, %v3272, 0.0
      %v3289 = vsel %vm357, %v3273, 0.0
      %v3290 = vsel %vm358, %v3274, 0.0
      %v3291 = vpack.c.bf16 %v3285, %v3283
      %v3292 = vpack.c.bf16 %v3286, %v3284
      %v3293 = vpack.c.bf16 %v3289, %v3287
      %v3294 = vpack.c.bf16 %v3290, %v3288
      %3295 = vst [vmem:[#allocation2 + $0xa0] sm:$0xff] %v3291
      %3296 = vst [vmem:[#allocation2 + $0xa8] sm:$0xff] %v3292
      %3297 = vst [vmem:[#allocation2 + $0xb0] sm:$0xff] %v3293
      %3298 = vst [vmem:[#allocation2 + $0xb8] sm:$0xff] %v3294
      %3299 = vrot.lane.b32.xlu0 %v3039, 96
      %v3300 = vpop.permute.xlu0 %3299
      %3301 = vrot.lane.b32.xlu0 %v3023, 96
      %v3302 = vpop.permute.xlu0 %3301
      %3303 = vrot.lane.b32.xlu0 %v3043, 96
      %v3304 = vpop.permute.xlu0 %3303
      %3305 = vrot.lane.b32.xlu0 %v3040, 96
      %v3306 = vpop.permute.xlu0 %3305
      %3307 = vrot.lane.b32.xlu0 %v3024, 96
      %v3308 = vpop.permute.xlu0 %3307
      %3309 = vrot.lane.b32.xlu0 %v3044, 96
      %v3310 = vpop.permute.xlu0 %3309
      %3311 = vrot.lane.b32.xlu0 %v3041, 96
      %v3312 = vpop.permute.xlu0 %3311
      %3313 = vrot.lane.b32.xlu0 %v3025, 96
      %v3314 = vpop.permute.xlu0 %3313
      %3315 = vrot.lane.b32.xlu0 %v3045, 96
      %v3316 = vpop.permute.xlu0 %3315
      %3317 = vrot.lane.b32.xlu0 %v3042, 96
      %v3318 = vpop.permute.xlu0 %3317
      %3319 = vrot.lane.b32.xlu0 %v3026, 96
      %v3320 = vpop.permute.xlu0 %3319
      %3321 = vrot.lane.b32.xlu0 %v3046, 96
      %v3322 = vpop.permute.xlu0 %3321
      %v3323 = vsel %vm697, %v3300, %v3302
      %v3324 = vsel %vm697, %v3302, %v3304
      %v3325 = vsel %vm697, %v3306, %v3308
      %v3326 = vsel %vm697, %v3308, %v3310
      %v3327 = vsel %vm697, %v3312, %v3314
      %v3328 = vsel %vm697, %v3314, %v3316
      %v3329 = vsel %vm697, %v3318, %v3320
      %v3330 = vsel %vm697, %v3320, %v3322
      %v3339 = vsel %vm355, %v3323, 0.0
      %v3340 = vsel %vm356, %v3324, 0.0
      %v3341 = vsel %vm355, %v3325, 0.0
      %v3342 = vsel %vm356, %v3326, 0.0
      %v3343 = vsel %vm355, %v3327, 0.0
      %v3344 = vsel %vm356, %v3328, 0.0
      %v3345 = vsel %vm355, %v3329, 0.0
      %v3346 = vsel %vm356, %v3330, 0.0
      %v3347 = vpack.c.bf16 %v3341, %v3339
      %v3348 = vpack.c.bf16 %v3342, %v3340
      %v3349 = vpack.c.bf16 %v3345, %v3343
      %v3350 = vpack.c.bf16 %v3346, %v3344
      %3351 = vst [vmem:[#allocation2 + $0xc0] sm:$0xff] %v3347
      %3352 = vst [vmem:[#allocation2 + $0xc8] sm:$0xff] %v3348
      %3353 = vst [vmem:[#allocation2 + $0xd0] sm:$0xff] %v3349
      %3354 = vst [vmem:[#allocation2 + $0xd8] sm:$0xff] %v3350
      %3355 = vrot.lane.b32.xlu0 %v3063, 95
      %v3356 = vpop.permute.xlu0 %3355
      %3357 = vrot.lane.b32.xlu0 %v3064, 95
      %v3358 = vpop.permute.xlu0 %3357
      %3359 = vrot.lane.b32.xlu0 %v3065, 95
      %v3360 = vpop.permute.xlu0 %3359
      %3361 = vrot.lane.b32.xlu0 %v3066, 95
      %v3362 = vpop.permute.xlu0 %3361
      %3363 = vrot.lane.b32.xlu0 %v3067, 95
      %v3364 = vpop.permute.xlu0 %3363
      %3365 = vrot.lane.b32.xlu0 %v3068, 95
      %v3366 = vpop.permute.xlu0 %3365
      %v3367 = vsel %vm742, %v3356, %v3358
      %v3368 = vsel %vm742, %v3358, %v3360
      %v3369 = vsel %vm742, %v3362, %v3364
      %v3370 = vsel %vm742, %v3364, %v3366
      %3375 = vst [vmem:[#allocation2 + $0xe0] sm:$0xff] %v3367
      %3376 = vst [vmem:[#allocation2 + $0xe8] sm:$0xff] %v3368
      %3377 = vst [vmem:[#allocation2 + $0xf0] sm:$0xff] %v3369
      %3378 = vst [vmem:[#allocation2 + $0xf8] sm:$0xff] %v3370
      %3379 = vrot.lane.b32.xlu0 %v3039, 94
      %v3380 = vpop.permute.xlu0 %3379
      %3381 = vrot.lane.b32.xlu0 %v3023, 94
      %v3382 = vpop.permute.xlu0 %3381
      %3383 = vrot.lane.b32.xlu0 %v3043, 94
      %v3384 = vpop.permute.xlu0 %3383
      %3385 = vrot.lane.b32.xlu0 %v3040, 94
      %v3386 = vpop.permute.xlu0 %3385
      %3387 = vrot.lane.b32.xlu0 %v3024, 94
      %v3388 = vpop.permute.xlu0 %3387
      %3389 = vrot.lane.b32.xlu0 %v3044, 94
      %v3390 = vpop.permute.xlu0 %3389
      %3391 = vrot.lane.b32.xlu0 %v3041, 94
      %v3392 = vpop.permute.xlu0 %3391
      %3393 = vrot.lane.b32.xlu0 %v3025, 94
      %v3394 = vpop.permute.xlu0 %3393
      %3395 = vrot.lane.b32.xlu0 %v3045, 94
      %v3396 = vpop.permute.xlu0 %3395
      %3397 = vrot.lane.b32.xlu0 %v3042, 94
      %v3398 = vpop.permute.xlu0 %3397
      %3399 = vrot.lane.b32.xlu0 %v3026, 94
      %v3400 = vpop.permute.xlu0 %3399
      %3401 = vrot.lane.b32.xlu0 %v3046, 94
      %v3402 = vpop.permute.xlu0 %3401
      %v3403 = vsel %vm779, %v3380, %v3382
      %v3404 = vsel %vm779, %v3382, %v3384
      %v3405 = vsel %vm779, %v3386, %v3388
      %v3406 = vsel %vm779, %v3388, %v3390
      %v3407 = vsel %vm779, %v3392, %v3394
      %v3408 = vsel %vm779, %v3394, %v3396
      %v3409 = vsel %vm779, %v3398, %v3400
      %v3410 = vsel %vm779, %v3400, %v3402
      %v3419 = vsel %vm357, %v3403, 0.0
      %v3420 = vsel %vm358, %v3404, 0.0
      %v3421 = vsel %vm357, %v3405, 0.0
      %v3422 = vsel %vm358, %v3406, 0.0
      %v3423 = vsel %vm357, %v3407, 0.0
      %v3424 = vsel %vm358, %v3408, 0.0
      %v3425 = vsel %vm357, %v3409, 0.0
      %v3426 = vsel %vm358, %v3410, 0.0
      %v3427 = vpack.c.bf16 %v3421, %v3419
      %v3428 = vpack.c.bf16 %v3422, %v3420
      %v3429 = vpack.c.bf16 %v3425, %v3423
      %v3430 = vpack.c.bf16 %v3426, %v3424
      %3431 = vst [vmem:[#allocation2 + $0x100] sm:$0xff] %v3427
      %3432 = vst [vmem:[#allocation2 + $0x108] sm:$0xff] %v3428
      %3433 = vst [vmem:[#allocation2 + $0x110] sm:$0xff] %v3429
      %3434 = vst [vmem:[#allocation2 + $0x118] sm:$0xff] %v3430
      %v3435 = vld [vmem:[%s312] sm:$0xff]
      %v3436 = vld [vmem:[%s312 + $0x8] sm:$0xf]
      %v3437 = vld [vmem:[%s312 + $0xc] sm:$0xff]
      %v3438 = vld [vmem:[%s312 + $0x14] sm:$0xf]
      %v3439 = vld [vmem:[%s312 + $0x18] sm:$0xff]
      %v3440 = vld [vmem:[%s312 + $0x20] sm:$0xf]
      %v3441 = vld [vmem:[%s312 + $0x24] sm:$0xff]
      %v3442 = vld [vmem:[%s312 + $0x2c] sm:$0xf]
      %v3443 = vld [vmem:[%s312 + $0x30] sm:$0xff]
      %v3444 = vld [vmem:[%s312 + $0x38] sm:$0xf]
      %v3445 = vld [vmem:[#allocation2] sm:$0xff]
      %v3446 = vld [vmem:[#allocation2 + $0x8] sm:$0xff]
      %v3447 = vld [vmem:[#allocation2 + $0x10] sm:$0xff]
      %v3448 = vld [vmem:[#allocation2 + $0x18] sm:$0xff]
      %v3449 = vld [vmem:[#allocation2 + $0x20] sm:$0xff]
      %v3450 = vld [vmem:[#allocation2 + $0x28] sm:$0xff]
      %v3451 = vld [vmem:[#allocation2 + $0x30] sm:$0xff]
      %v3452 = vld [vmem:[#allocation2 + $0x38] sm:$0xff]
      %v3453 = vld [vmem:[#allocation2 + $0x40] sm:$0xff]
      %v3454 = vld [vmem:[#allocation2 + $0x48] sm:$0xff]
      %v3455 = vld [vmem:[#allocation2 + $0x50] sm:$0xff]
      %v3456 = vld [vmem:[#allocation2 + $0x58] sm:$0xff]
      %v3457 = vld [vmem:[#allocation2 + $0x60] sm:$0xff]
      %v3458 = vld [vmem:[#allocation2 + $0x68] sm:$0xff]
      %v3459 = vld [vmem:[#allocation2 + $0x70] sm:$0xff]
      %v3460 = vld [vmem:[#allocation2 + $0x78] sm:$0xff]
      %v3461 = vld [vmem:[#allocation2 + $0x80] sm:$0xff]
      %v3462 = vld [vmem:[#allocation2 + $0x88] sm:$0xff]
      %v3463 = vld [vmem:[#allocation2 + $0x90] sm:$0xff]
      %v3464 = vld [vmem:[#allocation2 + $0x98] sm:$0xff]
      %v3465 = vld [vmem:[#allocation2 + $0xa0] sm:$0xff]
      %v3466 = vld [vmem:[#allocation2 + $0xa8] sm:$0xff]
      %v3467 = vld [vmem:[#allocation2 + $0xb0] sm:$0xff]
      %v3468 = vld [vmem:[#allocation2 + $0xb8] sm:$0xff]
      %v3469 = vld [vmem:[#allocation2 + $0xc0] sm:$0xff]
      %v3470 = vld [vmem:[#allocation2 + $0xc8] sm:$0xff]
      %v3471 = vld [vmem:[#allocation2 + $0xd0] sm:$0xff]
      %v3472 = vld [vmem:[#allocation2 + $0xd8] sm:$0xff]
      %v3473 = vld [vmem:[#allocation2 + $0xe0] sm:$0xff]
      %v3474 = vld [vmem:[#allocation2 + $0xe8] sm:$0xff]
      %v3475 = vld [vmem:[#allocation2 + $0xf0] sm:$0xff]
      %v3476 = vld [vmem:[#allocation2 + $0xf8] sm:$0xff]
      %v3477 = vld [vmem:[#allocation2 + $0x100] sm:$0xff]
      %v3478 = vld [vmem:[#allocation2 + $0x108] sm:$0xff]
      %v3479 = vld [vmem:[#allocation2 + $0x110] sm:$0xff]
      %v3480 = vld [vmem:[#allocation2 + $0x118] sm:$0xff]
      %v3481 = vld [vmem:[%s317] sm:$0xff]
      %v3482 = vld [vmem:[%s317 + $0x8] sm:$0xff]
      %v3483 = vld [vmem:[%s317 + $0x10] sm:$0xff]
      %v3484 = vld [vmem:[%s317 + $0x18] sm:$0xff]
      %v3485 = vld [vmem:[%s317 + $0x20] sm:$0xff]
      %3487 = vset.pattern.permute.xlu0 0
      %3488 = vperm.xlu0 %3487, %v3481
      %v3489 = vpop.permute.xlu0 %3488
      %3492 = vset.pattern.permute.xlu0 0
      %3493 = vperm.xlu0 %3492, %v3482
      %v3494 = vpop.permute.xlu0 %3493
      %3497 = vset.pattern.permute.xlu0 0
      %3498 = vperm.xlu0 %3497, %v3483
      %v3499 = vpop.permute.xlu0 %3498
      %3502 = vset.pattern.permute.xlu0 0
      %3503 = vperm.xlu0 %3502, %v3484
      %v3504 = vpop.permute.xlu0 %3503
      %3507 = vset.pattern.permute.xlu0 0
      %3508 = vperm.xlu0 %3507, %v3485
      %v3509 = vpop.permute.xlu0 %3508
      %v3521 = vunpack.c.l.b16 %v3435
      %v3522 = vunpack.c.h.b16 %v3435
      %v3523 = vunpack.c.l.b16 %v3436
      %v3524 = vunpack.c.l.b16 %v3437
      %v3525 = vunpack.c.h.b16 %v3437
      %v3526 = vunpack.c.l.b16 %v3438
      %v3527 = vunpack.c.l.b16 %v3439
      %v3528 = vunpack.c.h.b16 %v3439
      %v3529 = vunpack.c.l.b16 %v3440
      %v3530 = vunpack.c.l.b16 %v3441
      %v3531 = vunpack.c.h.b16 %v3441
      %v3532 = vunpack.c.l.b16 %v3442
      %v3533 = vunpack.c.l.b16 %v3443
      %v3534 = vunpack.c.h.b16 %v3443
      %v3535 = vunpack.c.l.b16 %v3444
      %v3536 = vpack.c.b16 %v3524, %v3521
      %v3537 = vpack.c.b16 %v3525, %v3522
      %v3538 = vpack.c.b16 %v3526, %v3523
      %v3539 = vpack.c.b16 %v3530, %v3527
      %v3540 = vpack.c.b16 %v3531, %v3528
      %v3541 = vpack.c.b16 %v3532, %v3529
      %v3542 = vpack.c.b16 %v3533, %v3533
      %v3543 = vpack.c.b16 %v3534, %v3534
      %v3544 = vpack.c.b16 %v3535, %v3535
      %v3552 = vsel %vm910, %v3538, 0
      %v3555 = vsel %vm910, %v3541, 0
      %v3558 = vsel %vm910, %v3544, 0
      %3560 = vmatprep.subr.bf16.mxu0 %v3446
      %3561 = vmatpush1.bf16.msra.mxu0 %v3445
      %3562 = vmatprep.subr.bf16.mxu0 %v3448
      %3563 = vmatpush1.bf16.msra.mxu0 %v3447
      %3564 = vmatprep.subr.bf16.mxu0 %v3450
      %3565 = vmatpush1.bf16.msra.mxu0 %v3449
      %3566 = vmatprep.subr.bf16.mxu0 %v3452
      %3567 = vmatpush1.bf16.msra.mxu0 %v3451
      %3568 = vmatprep.subr.bf16.mxu0 %v3454
      %3569 = vmatpush1.bf16.msra.mxu0 %v3453
      %3570 = vmatprep.subr.bf16.mxu0 %v3456
      %3571 = vmatpush1.bf16.msra.mxu0 %v3455
      %3572 = vmatprep.subr.bf16.mxu0 %v3458
      %3573 = vmatpush1.bf16.msra.mxu0 %v3457
      %3574 = vmatprep.subr.bf16.mxu0 %v3460
      %3575 = vmatpush1.bf16.msra.mxu0 %v3459
      %3576 = vmatprep.subr.bf16.mxu0 %v3462
      %3577 = vmatpush1.bf16.msra.mxu0 %v3461
      %3578 = vmatprep.subr.bf16.mxu0 %v3464
      %3579 = vmatpush1.bf16.msra.mxu0 %v3463
      %3580 = vmatprep.subr.bf16.mxu0 %v3466
      %3581 = vmatpush1.bf16.msra.mxu0 %v3465
      %3582 = vmatprep.subr.bf16.mxu0 %v3468
      %3583 = vmatpush1.bf16.msra.mxu0 %v3467
      %3584 = vmatprep.subr.bf16.mxu0 %v3470
      %3585 = vmatpush1.bf16.msra.mxu0 %v3469
      %3586 = vmatprep.subr.bf16.mxu0 %v3472
      %3587 = vmatpush1.bf16.msra.mxu0 %v3471
      %3588 = vmatprep.subr.bf16.mxu0 %v3474
      %3589 = vmatpush1.bf16.msra.mxu0 %v3473
      %3590 = vmatprep.subr.bf16.mxu0 %v3476
      %3591 = vmatpush1.bf16.msra.mxu0 %v3475
      %3592 = vmatprep.mubr.bf16.mxu0 %v3537
      %3593 = vmatmul.mubr.bf16.gmra.mrb[0].mxu0 %v3536
      %v3594 = vpop.f32.mrb[0].mxu0
      %v3595 = vadd.f32 %v3489, %v3594
      %v3596 = vpop.f32.mrb[0].mxu0
      %v3597 = vadd.f32 %v3489, %v3596
      %v3598 = vpop.f32.mrb[0].mxu0
      %v3599 = vadd.f32 %v3494, %v3598
      %v3600 = vpop.f32.mrb[0].mxu0
      %v3601 = vadd.f32 %v3494, %v3600
      %3602 = vmatprep.mubr.bf16.mxu0 %v3540
      %3603 = vmatmul.mubr.bf16.gmra.mrb[0].mxu0 %v3539
      %v3604 = vpop.f32.mrb[0].mxu0
      %v3605 = vadd.f32 %v3499, %v3604
      %v3606 = vpop.f32.mrb[0].mxu0
      %v3607 = vadd.f32 %v3499, %v3606
      %v3608 = vpop.f32.mrb[0].mxu0
      %v3609 = vadd.f32 %v3504, %v3608
      %v3610 = vpop.f32.mrb[0].mxu0
      %v3611 = vadd.f32 %v3504, %v3610
      %3612 = vmatprep.mubr.bf16.mxu0 %v3543
      %3613 = vmatmul.mubr.bf16.gmra.mrb[0].mxu0 %v3542
      %v3614 = vpop.f32.mrb[0].mxu0
      %v3615 = vadd.f32 %v3509, %v3614
      %v3616 = vpop.f32.mrb[0].mxu0
      %v3617 = vadd.f32 %v3509, %v3616
      %v3618 = vpop.f32.mrb[0].mxu0
      %v3619 = vpop.f32.mrb[0].mxu0
      %3620 = vdwg.mxu0
      %3621 = vmatprep.subr.bf16.mxu0 %v3478
      %3622 = vmatpush1.bf16.msra.mxu0 %v3477
      %3623 = vmatprep.subr.bf16.mxu0 %v3480
      %3624 = vmatpush1.bf16.msra.mxu0 %v3479
      %3625 = vmatprep.subr.bf16.mxu0 0
      %3626 = vmatpush1.bf16.msra.mxu0 0
      %3627 = vmatprep.subr.bf16.mxu0 0
      %3628 = vmatpush1.bf16.msra.mxu0 0
      %3629 = vmatprep.subr.bf16.mxu0 0
      %3630 = vmatpush1.bf16.msra.mxu0 0
      %3631 = vmatprep.subr.bf16.mxu0 0
      %3632 = vmatpush1.bf16.msra.mxu0 0
      %3633 = vmatprep.subr.bf16.mxu0 0
      %3634 = vmatpush1.bf16.msra.mxu0 0
      %3635 = vmatprep.subr.bf16.mxu0 0
      %3636 = vmatpush1.bf16.msra.mxu0 0
      %3637 = vmatprep.subr.bf16.mxu0 0
      %3638 = vmatpush1.bf16.msra.mxu0 0
      %3639 = vmatprep.subr.bf16.mxu0 0
      %3640 = vmatpush1.bf16.msra.mxu0 0
      %3641 = vmatprep.subr.bf16.mxu0 0
      %3642 = vmatpush1.bf16.msra.mxu0 0
      %3643 = vmatprep.subr.bf16.mxu0 0
      %3644 = vmatpush1.bf16.msra.mxu0 0
      %3645 = vmatprep.subr.bf16.mxu0 0
      %3646 = vmatpush1.bf16.msra.mxu0 0
      %3647 = vmatprep.subr.bf16.mxu0 0
      %3648 = vmatpush1.bf16.msra.mxu0 0
      %3649 = vmatprep.subr.bf16.mxu0 0
      %3650 = vmatpush1.bf16.msra.mxu0 0
      %3651 = vmatprep.subr.bf16.mxu0 0
      %3652 = vmatpush1.bf16.msra.mxu0 0
      %3653 = vmatprep.mubr.bf16.mxu0 0
      %3654 = vmatmul.mubr.bf16.gmra.mrb[0].mxu0 %v3552
      %v3655 = vpop.f32.mrb[0].mxu0
      %v3656 = vadd.f32 %v3595, %v3655
      %v3657 = vpop.f32.mrb[0].mxu0
      %v3658 = vadd.f32 %v3597, %v3657
      %v3659 = vpop.f32.mrb[0].mxu0
      %v3660 = vadd.f32 %v3599, %v3659
      %v3661 = vpop.f32.mrb[0].mxu0
      %v3662 = vadd.f32 %v3601, %v3661
      %3663 = vmatprep.mubr.bf16.mxu0 0
      %3664 = vmatmul.mubr.bf16.gmra.mrb[0].mxu0 %v3555
      %v3665 = vpop.f32.mrb[0].mxu0
      %v3666 = vadd.f32 %v3605, %v3665
      %v3667 = vpop.f32.mrb[0].mxu0
      %v3668 = vadd.f32 %v3607, %v3667
      %v3669 = vpop.f32.mrb[0].mxu0
      %v3670 = vadd.f32 %v3609, %v3669
      %v3671 = vpop.f32.mrb[0].mxu0
      %v3672 = vadd.f32 %v3611, %v3671
      %3673 = vmatprep.mubr.bf16.mxu0 0
      %3674 = vmatmul.mubr.bf16.gmra.mrb[0].mxu0 %v3558
      %v3675 = vpop.f32.mrb[0].mxu0
      %v3676 = vadd.f32 %v3615, %v3675
      %v3677 = vpop.f32.mrb[0].mxu0
      %v3678 = vadd.f32 %v3617, %v3677
      %v3679 = vpop.f32.mrb[0].mxu0
      %v3680 = vpop.f32.mrb[0].mxu0
      %3681 = vdwg.mxu0
      %3682 = vst [vmem:[%s326] sm:$0xff] %v3656
      %3683 = vst [vmem:[%s326 + $0x8] sm:$0xff] %v3658
      %3684 = vst [vmem:[%s326 + $0x10] sm:$0xff] %v3660
      %3685 = vst [vmem:[%s326 + $0x18] sm:$0xff] %v3662
      %3686 = vst [vmem:[%s326 + $0x20] sm:$0xff] %v3666
      %3687 = vst [vmem:[%s326 + $0x28] sm:$0xff] %v3668
      %3688 = vst [vmem:[%s326 + $0x30] sm:$0xff] %v3670
      %3689 = vst [vmem:[%s326 + $0x38] sm:$0xff] %v3672
      %3690 = vst [vmem:[%s326 + $0x40] sm:$0xff] %v3676
      %3691 = vst [vmem:[%s326 + $0x48] sm:$0xff] %v3678
      %p3692 = scmp.lt.s32.totalorder %s20, 1
      %s3693 = scalar_select %p3692, %s20, 1
      %p3694 = scmp.lt.s32.totalorder %s21, 1
      %s3695 = scalar_select %p3694, %s21, 1
      %s3696 = smul.addr %s3695, 10
      %s3697 = smul.addr %s3693, 20
      %s3698 = sadd.s32 %s3696, %s3697
      %s3699 = smul.addr %s3698, 8
      %s3700 = scalar_lea.vmem %s5, %s3699
      // Predicated region
      $region41: #{_level_forward.1} parent=39 // pred_check
        %p3701 = pneg %p178
      $region42: #{_level_forward.1} parent=39 // pred_check_branch
        %3703 = sbr.rel (%p3701) target = $region44
      $region43: #{_level_forward.1} parent=39 // pred_region
        _
      $region44: #{_level_forward.1} parent=39 // pred_fallthru
        _
    $region40: #{_level_forward.1} parent=5 // pred_fallthru
      _
    %p3704 = scmp.le.s32.totalorder 2, %s11
    // Predicated region
    $region45: #{_level_forward.1} parent=5 // pred_check
      %p3705 = pneg %p3704
    $region46: #{_level_forward.1} parent=5 // pred_check_branch
      %3707 = sbr.rel (%p3705) target = $region48
    $region47: #{_level_forward.1} parent=5 // pred_region
      %s3708 = ssub.s32 %s11, 2
      // Predicated region
      $region49: #{_level_forward.1} parent=47 // pred_check
        %p3709 = pneg %p184
      $region50: #{_level_forward.1} parent=47 // pred_check_branch
        %3711 = sbr.rel (%p3709) target = $region52
      $region51: #{_level_forward.1} parent=47 // pred_region
        %p3712 = scmp.lt.s32.totalorder %s22, 1
        %s3713 = scalar_select %p3712, %s22, 1
        %p3714 = scmp.lt.s32.totalorder %s23, 1
        %s3715 = scalar_select %p3714, %s23, 1
        %s3716 = smul.addr %s3715, 10
        %s3717 = smul.addr %s3713, 20
        %s3718 = sadd.s32 %s3716, %s3717
        %s3719 = smul.addr %s3718, 8
        %s3720 = scalar_lea.vmem %s5, %s3719
      $region52: #{_level_forward.1} parent=47 // pred_fallthru
        _
    $region48: #{_level_forward.1} parent=5 // pred_fallthru
      _
  $region6: #{_level_forward.1} parent=0 // loop_footer
    %s15 = sadd.s32 1, %s11
  $region7: #{_level_forward.1} parent=0 // loop_footer_branch
    %10 = sbr.rel target = $region3
  $region8: #{_level_forward.1} parent=0 // loop_exit
    _

</llo_original>
